<compile_context>
chip_gen: v7x
topology: tpu7x:2x2x1
jax: 0.10.0
libtpu: 0.0.40
codegen_flags: <defaults>
</compile_context>

<pallas_src>
import functools

import jax
import jax.numpy as jnp
from jax import lax
from jax.experimental import pallas as pl
from jax.experimental.pallas import tpu as pltpu


def _prenorm_attn_qkv_kernel(xq_ref, xk_ref, xv_ref, g_ref, b_ref,
                             wq_ref, wk_ref, wv_ref, wo_ref, bo_ref,
                             o_ref,
                             lnq_ref, lnk_ref, lnv_ref, kc_ref, vc_ref,
                             oh_ref, acc_ref,
                             *, group, dim_head, eps):
    """Grid = (batch, q_tile, head_group); head-group axis accumulates the output proj."""
    t = pl.program_id(1)
    h = pl.program_id(2)

    def layernorm(x):                                     # (rows, D) f32
        mean = jnp.mean(x, axis=-1, keepdims=True)
        cen = x - mean
        var = jnp.mean(cen * cen, axis=-1, keepdims=True)
        return cen * lax.rsqrt(var + eps) * g_ref[...] + b_ref[...]

    # ---- once per batch: LayerNorm(k), LayerNorm(v) (reused by every q-tile) ----
    @pl.when(jnp.logical_and(t == 0, h == 0))
    def _ln_kv():
        lnk_ref[...] = layernorm(xk_ref[0].astype(jnp.float32)).astype(lnk_ref.dtype)
        lnv_ref[...] = layernorm(xv_ref[0].astype(jnp.float32)).astype(lnv_ref.dtype)

    # ---- once per (batch, q-tile): LayerNorm(q tile), seed residual+bias accumulator ----
    @pl.when(h == 0)
    def _init_tile():
        xq = xq_ref[0].astype(jnp.float32)                # (TQ, D)
        lnq_ref[...] = layernorm(xq).astype(lnq_ref.dtype)
        acc_ref[...] = xq + bo_ref[...]                   # residual + out-proj bias

    # ---- once per (batch, head-group): K/V projections, cached across q-tiles ----
    @pl.when(t == 0)
    def _project_kv():
        kc_ref[h] = jnp.dot(lnk_ref[...], wk_ref[0],
                            preferred_element_type=jnp.float32).astype(kc_ref.dtype)
        vc_ref[h] = jnp.dot(lnv_ref[...], wv_ref[0],
                            preferred_element_type=jnp.float32).astype(vc_ref.dtype)

    # ---- per (q-tile, head-group): Q projection (full-width MXU matmul) ----
    qh = jnp.dot(lnq_ref[...], wq_ref[0],
                 preferred_element_type=jnp.float32)      # (TQ, G*dh)
    qh = (qh * (dim_head ** -0.5)).astype(jnp.bfloat16)   # fold softmax scale into q

    kh = kc_ref[h]                                        # (N, G*dh) bf16
    vh = vc_ref[h]                                        # (N, G*dh) bf16

    # ---- per head inside the group: scores + deferred-normalization softmax ----
    for j in range(group):                                # static unroll
        lo, hi = j * dim_head, (j + 1) * dim_head
        qj = qh[:, lo:hi]                                 # (TQ, dh)
        kj = kh[:, lo:hi]                                 # (N,  dh)
        vj = vh[:, lo:hi]                                 # (N,  dh)

        # scores: contract last axis of both operands (no explicit k transpose)
        s = lax.dot_general(qj, kj,
                            dimension_numbers=(((1,), (1,)), ((), ())),
                            preferred_element_type=jnp.float32)   # (TQ, N)
        s = s - jnp.max(s, axis=-1, keepdims=True)
        p = jnp.exp(s)                                    # unnormalized, <= 1 (bf16-safe)
        r = pl.reciprocal(jnp.sum(p, axis=-1, keepdims=True), approx=True)   # (TQ, 1)
        oj = jnp.dot(p.astype(jnp.bfloat16), vj,
                     preferred_element_type=jnp.float32)  # (TQ, dh)
        # deferred softmax normalization on the small (TQ, dh) tile
        oh_ref[:, lo:hi] = (oj * r).astype(oh_ref.dtype)

    # ---- one wide output projection (G*dh-deep contraction) for the whole group ----
    acc_ref[...] += jnp.dot(oh_ref[...], wo_ref[0],
                            preferred_element_type=jnp.float32)   # (TQ, D)

    # ---- after the last head group: emit the output tile ----
    @pl.when(h == pl.num_programs(2) - 1)
    def _finalize():
        o_ref[0] = acc_ref[...].astype(o_ref.dtype)


def _pick_head_group(heads, dim_head, target_width=256):
    """Largest G dividing `heads` with G*dim_head <= ~target MXU width."""
    g = min(heads, max(1, target_width // max(dim_head, 1)))
    while heads % g:
        g -= 1
    return max(g, 1)


def _footprint_bytes(tq, n, d, gdh, gh, in_itemsize):
    """Rough per-core resident VMEM footprint for a given q-tile size."""
    blocks = (2 * tq * d + 2 * tq * d) * in_itemsize      # xq + out tiles (double-buffered)
    blocks += 2 * n * d * in_itemsize                     # xk + xv (single-buffered)
    weights = 2 * 2 * (3 * d * gdh + gdh * d)             # bf16 weight blocks (double-buffered)
    scratch = ((tq + 2 * n) * d * 2                       # lnq / lnk / lnv (bf16)
               + 2 * gh * n * gdh * 2                     # cached K/V projections (bf16)
               + tq * gdh * 2                             # per-group attention output (bf16)
               + tq * d * 4)                              # f32 output accumulator
    temps = 2 * tq * n * 4 + tq * gdh * 4                 # live (TQ, N) score tiles etc.
    return blocks + weights + scratch + temps


def _pick_q_tile(n, footprint, budget):
    for t in (1024, 512, 256, 128):
        if n % t == 0 and footprint(t) <= budget:
            return t
    for t in (512, 256, 128):
        if n % t == 0:
            return t
    # TODO(synk): ragged N (not a multiple of 128) has no masking/remainder path;
    # it falls back to a single full-N q tile.
    return n


def prenorm_attention_qkv(xq, xk, xv, gamma, beta, wq, wk, wv, wo, bo,
                          *, heads, dim_head):
    """PreNormattention_qkv forward.

    xq/xk/xv: (B, N, D); gamma/beta/bo: (1, D);
    wq/wk/wv: (D, heads*dim_head); wo: (heads*dim_head, D).  Returns (B, N, D).
    """
    B, N, D = xq.shape
    inner = heads * dim_head
    assert wq.shape == (D, inner) and wk.shape == (D, inner)
    assert wv.shape == (D, inner) and wo.shape == (inner, D)

    group = _pick_head_group(heads, dim_head)
    GH = heads // group
    gdh = group * dim_head

    # Generation-aware VMEM budget (64 MiB on v7x, 128 MiB on v5e/v6e).
    try:
        vmem_phys = int(pltpu.get_tpu_info().vmem_capacity_bytes)
    except Exception:  # conservative default if the query is unavailable
        vmem_phys = 64 * 1024 * 1024

    in_itemsize = jnp.dtype(xq.dtype).itemsize
    footprint = lambda tq: _footprint_bytes(tq, N, D, gdh, GH, in_itemsize)
    TQ = _pick_q_tile(N, footprint, int(vmem_phys * 0.6))
    QT = N // TQ

    vmem_limit = int(min(max(32 << 20, footprint(TQ) * 5 // 4 + (4 << 20)),
                         max(32 << 20, vmem_phys * 3 // 4)))

    # Group-blocked weight layouts (consecutive heads per group), bf16 for the MXU.
    def per_group_in(w):   # (D, H*dh) -> (H/G, D, G*dh)
        return jnp.transpose(w.reshape(D, GH, gdh), (1, 0, 2)).astype(jnp.bfloat16)

    wq_g = per_group_in(wq)
    wk_g = per_group_in(wk)
    wv_g = per_group_in(wv)
    wo_g = wo.reshape(GH, gdh, D).astype(jnp.bfloat16)     # (H/G, G*dh, D)

    kernel = functools.partial(_prenorm_attn_qkv_kernel,
                               group=group, dim_head=dim_head, eps=1e-5)

    # Executed FLOPs: K/V projections are computed once per batch (no q-tile recompute).
    flops = (6 * B * N * D * inner            # q/k/v projections
             + 4 * B * N * N * inner          # scores + p@v
             + 2 * B * N * inner * D)         # output projection
    bytes_accessed = (4 * in_itemsize * B * N * D   # xq/xk/xv read + out write
                      + 2 * 4 * D * inner           # 4 bf16 weight tensors
                      + 4 * 3 * D)                  # gamma / beta / bo

    def build_call(kv_pipeline_mode):
        kv_kwargs = ({} if kv_pipeline_mode is None
                     else {"pipeline_mode": kv_pipeline_mode})
        return pl.pallas_call(
            kernel,
            out_shape=jax.ShapeDtypeStruct((B, N, D), xq.dtype),
            grid_spec=pltpu.PrefetchScalarGridSpec(
                num_scalar_prefetch=0,
                grid=(B, QT, GH),
                in_specs=[
                    pl.BlockSpec((1, TQ, D), lambda b, t, h: (b, t, 0)),      # xq tile
                    pl.BlockSpec((1, N, D), lambda b, t, h: (b, 0, 0),
                                 **kv_kwargs),                                # xk (full keys)
                    pl.BlockSpec((1, N, D), lambda b, t, h: (b, 0, 0),
                                 **kv_kwargs),                                # xv (full values)
                    pl.BlockSpec((1, D), lambda b, t, h: (0, 0)),             # LN gamma
                    pl.BlockSpec((1, D), lambda b, t, h: (0, 0)),             # LN beta
                    pl.BlockSpec((1, D, gdh), lambda b, t, h: (h, 0, 0)),     # Wq group
                    pl.BlockSpec((1, D, gdh), lambda b, t, h: (h, 0, 0)),     # Wk group
                    pl.BlockSpec((1, D, gdh), lambda b, t, h: (h, 0, 0)),     # Wv group
                    pl.BlockSpec((1, gdh, D), lambda b, t, h: (h, 0, 0)),     # Wo group
                    pl.BlockSpec((1, D), lambda b, t, h: (0, 0)),             # bo
                ],
                out_specs=pl.BlockSpec((1, TQ, D), lambda b, t, h: (b, t, 0)),
                scratch_shapes=[
                    pltpu.VMEM((TQ, D), jnp.bfloat16),        # LayerNorm(q) tile
                    pltpu.VMEM((N, D), jnp.bfloat16),         # LayerNorm(k)  (per batch)
                    pltpu.VMEM((N, D), jnp.bfloat16),         # LayerNorm(v)  (per batch)
                    pltpu.VMEM((GH, N, gdh), jnp.bfloat16),   # cached K projections
                    pltpu.VMEM((GH, N, gdh), jnp.bfloat16),   # cached V projections
                    pltpu.VMEM((TQ, gdh), jnp.bfloat16),      # per-group attention output
                    pltpu.VMEM((TQ, D), jnp.float32),         # output accumulator over groups
                ],
            ),
            compiler_params=pltpu.CompilerParams(
                # q-tile / head-group axes must stay "arbitrary": LN(k/v) and the
                # K/V projections are cached in per-core scratch across q-tiles.
                dimension_semantics=("parallel", "arbitrary", "arbitrary"),
                vmem_limit_bytes=vmem_limit,
            ),
            cost_estimate=pl.CostEstimate(
                flops=int(flops),
                transcendentals=int(B * heads * N * N),
                bytes_accessed=int(bytes_accessed),
            ),
        )

    args = (xq, xk, xv, gamma, beta, wq_g, wk_g, wv_g, wo_g, bo)
    try:
        # xk/xv block index is constant across (t, h): single-buffer them.
        return build_call(pl.Buffered(1))(*args)
    except Exception:
        # Fallback: identical kernel without the pipeline_mode hint.
        return build_call(None)(*args)


def _reference(xq, xk, xv, gamma, beta, wq, wk, wv, wo, bo, *, heads, dim_head):
    """Pure-JAX reference mirroring the kernel's bf16 matmul-operand precision."""
    bf = jnp.bfloat16
    B, N, D = xq.shape

    def ln(x):
        xf = x.astype(jnp.float32)
        m = jnp.mean(xf, axis=-1, keepdims=True)
        v = jnp.mean((xf - m) ** 2, axis=-1, keepdims=True)
        return (xf - m) * lax.rsqrt(v + 1e-5) * gamma[0] + beta[0]

    def proj(x, w):       # (B,N,D) x (D,H*dh) -> (B,H,N,dh), f32
        y = jnp.dot(x.astype(bf), w.astype(bf), preferred_element_type=jnp.float32)
        return y.reshape(B, N, heads, dim_head).transpose(0, 2, 1, 3)

    q = proj(ln(xq), wq)
    k = proj(ln(xk), wk)
    v = proj(ln(xv), wv)
    s = jnp.einsum("bhqd,bhkd->bhqk",
                   (q * dim_head ** -0.5).astype(bf), k.astype(bf),
                   preferred_element_type=jnp.float32)
    p = jax.nn.softmax(s, axis=-1)
    o = jnp.einsum("bhqk,bhkd->bhqd", p.astype(bf), v.astype(bf),
                   preferred_element_type=jnp.float32)
    o = o.transpose(0, 2, 1, 3).reshape(B, N, heads * dim_head)
    out = jnp.dot(o.astype(bf), wo.astype(bf),
                  preferred_element_type=jnp.float32) + bo[0]
    return (out + xq.astype(jnp.float32)).astype(xq.dtype)


if __name__ == "__main__":
    B, N, D = 2, 8, 32
    heads, dim_head = 4, 8
    inner = heads * dim_head

    key = jax.random.PRNGKey(0)
    ks = jax.random.split(key, 10)
    xq = jax.random.normal(ks[0], (B, N, D), jnp.float32)
    xk = jax.random.normal(ks[1], (B, N, D), jnp.float32)
    xv = jax.random.normal(ks[2], (B, N, D), jnp.float32)
    gamma = 1.0 + 0.05 * jax.random.normal(ks[3], (1, D), jnp.float32)
    beta = 0.05 * jax.random.normal(ks[4], (1, D), jnp.float32)
    wq = jax.random.normal(ks[5], (D, inner), jnp.float32) * 0.1
    wk = jax.random.normal(ks[6], (D, inner), jnp.float32) * 0.1
    wv = jax.random.normal(ks[7], (D, inner), jnp.float32) * 0.1
    wo = jax.random.normal(ks[8], (inner, D), jnp.float32) * 0.1
    bo = jax.random.normal(ks[9], (1, D), jnp.float32) * 0.1

    out = prenorm_attention_qkv(xq, xk, xv, gamma, beta, wq, wk, wv, wo, bo,
                                heads=heads, dim_head=dim_head)
    out = jax.block_until_ready(out)

    ref = _reference(xq, xk, xv, gamma, beta, wq, wk, wv, wo, bo,
                     heads=heads, dim_head=dim_head)
    assert out.shape == (B, N, D)
    assert jnp.allclose(out, ref, atol=2e-2, rtol=2e-2), (
        "mismatch vs reference: max abs diff = %f" % float(jnp.max(jnp.abs(out - ref))))
    # TODO(synk): nn.Dropout inside fn's to_out is an eval-mode no-op and is omitted.
    print("KERNEL_OK")
</pallas_src>

<mosaic_0001>
module attributes {stable_mosaic.version = 11 : i64} {
  func.func @_prenorm_attn_qkv_kernel(%arg0: i32, %arg1: i32, %arg2: i32, %arg3: memref<1x8x32xf32, #tpu.memory_space<vmem>>, %arg4: memref<1x8x32xf32, #tpu.memory_space<vmem>>, %arg5: memref<1x8x32xf32, #tpu.memory_space<vmem>>, %arg6: memref<1x32xf32, #tpu.memory_space<vmem>>, %arg7: memref<1x32xf32, #tpu.memory_space<vmem>>, %arg8: memref<1x32x32xbf16, #tpu.memory_space<vmem>>, %arg9: memref<1x32x32xbf16, #tpu.memory_space<vmem>>, %arg10: memref<1x32x32xbf16, #tpu.memory_space<vmem>>, %arg11: memref<1x32x32xbf16, #tpu.memory_space<vmem>>, %arg12: memref<1x32xf32, #tpu.memory_space<vmem>>, %arg13: memref<1x8x32xf32, #tpu.memory_space<vmem>>, %arg14: memref<8x32xbf16, #tpu.memory_space<vmem>>, %arg15: memref<8x32xbf16, #tpu.memory_space<vmem>>, %arg16: memref<8x32xbf16, #tpu.memory_space<vmem>>, %arg17: memref<1x8x32xbf16, #tpu.memory_space<vmem>>, %arg18: memref<1x8x32xbf16, #tpu.memory_space<vmem>>, %arg19: memref<8x32xbf16, #tpu.memory_space<vmem>>, %arg20: memref<8x32xf32, #tpu.memory_space<vmem>>) attributes {dimension_semantics = [#tpu.dimension_semantics<parallel>, #tpu.dimension_semantics<arbitrary>, #tpu.dimension_semantics<arbitrary>], iteration_bounds = array<i64: 2, 1, 1>, scalar_prefetch = 0 : i64, scratch_operands = 7 : i64, tpu.core_type = #tpu.core_type<tc>, window_params = [{transform_indices = @transform_0, window_bounds = array<i64: 1, 8, 32>}, {pipeline_mode = #tpu.pipeline_mode<synchronous>, transform_indices = @transform_1, window_bounds = array<i64: 1, 8, 32>}, {pipeline_mode = #tpu.pipeline_mode<synchronous>, transform_indices = @transform_2, window_bounds = array<i64: 1, 8, 32>}, {pipeline_mode = #tpu.pipeline_mode<synchronous>, transform_indices = @transform_3, window_bounds = array<i64: 1, 32>}, {pipeline_mode = #tpu.pipeline_mode<synchronous>, transform_indices = @transform_4, window_bounds = array<i64: 1, 32>}, {transform_indices = @transform_5, window_bounds = array<i64: 1, 32, 32>}, {transform_indices = @transform_6, window_bounds = array<i64: 1, 32, 32>}, {transform_indices = @transform_7, window_bounds = array<i64: 1, 32, 32>}, {transform_indices = @transform_8, window_bounds = array<i64: 1, 32, 32>}, {pipeline_mode = #tpu.pipeline_mode<synchronous>, transform_indices = @transform_9, window_bounds = array<i64: 1, 32>}, {transform_indices = @transform_10, window_bounds = array<i64: 1, 8, 32>}]} {
    %c0_i32 = arith.constant 0 : i32
    %0 = arith.cmpi eq, %arg1, %c0_i32 : i32
    %c0_i32_0 = arith.constant 0 : i32
    %1 = arith.cmpi eq, %arg2, %c0_i32_0 : i32
    %2 = arith.andi %0, %1 : i1
    %3 = arith.extui %2 : i1 to i32
    %c0_i32_1 = arith.constant 0 : i32
    %4 = arith.cmpi ne, %3, %c0_i32_1 : i32
    scf.if %4 {
      %c0_48 = arith.constant 0 : index
      %c0_49 = arith.constant 0 : index
      %c0_50 = arith.constant 0 : index
      %106 = vector.load %arg4[%c0_48, %c0_49, %c0_50] : memref<1x8x32xf32, #tpu.memory_space<vmem>>, vector<1x8x32xf32>
      %107 = vector.shape_cast %106 : vector<1x8x32xf32> to vector<8x32xf32>
      %cst_51 = arith.constant dense<0.000000e+00> : vector<8xf32>
      %108 = vector.multi_reduction <add>, %107, %cst_51 [1] : vector<8x32xf32> to vector<8xf32>
      %109 = vector.shape_cast %108 : vector<8xf32> to vector<8x1xf32>
      %cst_52 = arith.constant 3.200000e+01 : f32
      %110 = vector.broadcast %cst_52 : f32 to vector<8x1xf32>
      %111 = arith.divf %109, %110 : vector<8x1xf32>
      %112 = vector.broadcast %111 : vector<8x1xf32> to vector<8x32xf32>
      %113 = arith.subf %107, %112 : vector<8x32xf32>
      %114 = arith.mulf %113, %113 : vector<8x32xf32>
      %cst_53 = arith.constant dense<0.000000e+00> : vector<8xf32>
      %115 = vector.multi_reduction <add>, %114, %cst_53 [1] : vector<8x32xf32> to vector<8xf32>
      %116 = vector.shape_cast %115 : vector<8xf32> to vector<8x1xf32>
      %cst_54 = arith.constant 3.200000e+01 : f32
      %117 = vector.broadcast %cst_54 : f32 to vector<8x1xf32>
      %118 = arith.divf %116, %117 : vector<8x1xf32>
      %cst_55 = arith.constant 9.99999974E-6 : f32
      %119 = vector.broadcast %cst_55 : f32 to vector<8x1xf32>
      %120 = arith.addf %118, %119 : vector<8x1xf32>
      %121 = math.rsqrt %120 : vector<8x1xf32>
      %122 = vector.broadcast %121 : vector<8x1xf32> to vector<8x32xf32>
      %123 = arith.mulf %113, %122 : vector<8x32xf32>
      %c0_56 = arith.constant 0 : index
      %c0_57 = arith.constant 0 : index
      %124 = vector.load %arg6[%c0_56, %c0_57] : memref<1x32xf32, #tpu.memory_space<vmem>>, vector<1x32xf32>
      %125 = vector.broadcast %124 : vector<1x32xf32> to vector<8x32xf32>
      %126 = arith.mulf %123, %125 : vector<8x32xf32>
      %c0_58 = arith.constant 0 : index
      %c0_59 = arith.constant 0 : index
      %127 = vector.load %arg7[%c0_58, %c0_59] : memref<1x32xf32, #tpu.memory_space<vmem>>, vector<1x32xf32>
      %128 = vector.broadcast %127 : vector<1x32xf32> to vector<8x32xf32>
      %129 = arith.addf %126, %128 : vector<8x32xf32>
      %130 = arith.truncf %129 : vector<8x32xf32> to vector<8x32xbf16>
      %c0_60 = arith.constant 0 : index
      %c0_61 = arith.constant 0 : index
      %131 = vector.load %arg15[%c0_60, %c0_61] : memref<8x32xbf16, #tpu.memory_space<vmem>>, vector<8x32xbf16>
      tpu.vector_store %arg15[%c0_60, %c0_61], %130 {strides = array<i32>} : memref<8x32xbf16, #tpu.memory_space<vmem>>, vector<8x32xbf16>,
      %c0_62 = arith.constant 0 : index
      %c0_63 = arith.constant 0 : index
      %c0_64 = arith.constant 0 : index
      %132 = vector.load %arg5[%c0_62, %c0_63, %c0_64] : memref<1x8x32xf32, #tpu.memory_space<vmem>>, vector<1x8x32xf32>
      %133 = vector.shape_cast %132 : vector<1x8x32xf32> to vector<8x32xf32>
      %cst_65 = arith.constant dense<0.000000e+00> : vector<8xf32>
      %134 = vector.multi_reduction <add>, %133, %cst_65 [1] : vector<8x32xf32> to vector<8xf32>
      %135 = vector.shape_cast %134 : vector<8xf32> to vector<8x1xf32>
      %cst_66 = arith.constant 3.200000e+01 : f32
      %136 = vector.broadcast %cst_66 : f32 to vector<8x1xf32>
      %137 = arith.divf %135, %136 : vector<8x1xf32>
      %138 = vector.broadcast %137 : vector<8x1xf32> to vector<8x32xf32>
      %139 = arith.subf %133, %138 : vector<8x32xf32>
      %140 = arith.mulf %139, %139 : vector<8x32xf32>
      %cst_67 = arith.constant dense<0.000000e+00> : vector<8xf32>
      %141 = vector.multi_reduction <add>, %140, %cst_67 [1] : vector<8x32xf32> to vector<8xf32>
      %142 = vector.shape_cast %141 : vector<8xf32> to vector<8x1xf32>
      %cst_68 = arith.constant 3.200000e+01 : f32
      %143 = vector.broadcast %cst_68 : f32 to vector<8x1xf32>
      %144 = arith.divf %142, %143 : vector<8x1xf32>
      %cst_69 = arith.constant 9.99999974E-6 : f32
      %145 = vector.broadcast %cst_69 : f32 to vector<8x1xf32>
      %146 = arith.addf %144, %145 : vector<8x1xf32>
      %147 = math.rsqrt %146 : vector<8x1xf32>
      %148 = vector.broadcast %147 : vector<8x1xf32> to vector<8x32xf32>
      %149 = arith.mulf %139, %148 : vector<8x32xf32>
      %c0_70 = arith.constant 0 : index
      %c0_71 = arith.constant 0 : index
      %150 = vector.load %arg6[%c0_70, %c0_71] : memref<1x32xf32, #tpu.memory_space<vmem>>, vector<1x32xf32>
      %151 = vector.broadcast %150 : vector<1x32xf32> to vector<8x32xf32>
      %152 = arith.mulf %149, %151 : vector<8x32xf32>
      %c0_72 = arith.constant 0 : index
      %c0_73 = arith.constant 0 : index
      %153 = vector.load %arg7[%c0_72, %c0_73] : memref<1x32xf32, #tpu.memory_space<vmem>>, vector<1x32xf32>
      %154 = vector.broadcast %153 : vector<1x32xf32> to vector<8x32xf32>
      %155 = arith.addf %152, %154 : vector<8x32xf32>
      %156 = arith.truncf %155 : vector<8x32xf32> to vector<8x32xbf16>
      %c0_74 = arith.constant 0 : index
      %c0_75 = arith.constant 0 : index
      %157 = vector.load %arg16[%c0_74, %c0_75] : memref<8x32xbf16, #tpu.memory_space<vmem>>, vector<8x32xbf16>
      tpu.vector_store %arg16[%c0_74, %c0_75], %156 {strides = array<i32>} : memref<8x32xbf16, #tpu.memory_space<vmem>>, vector<8x32xbf16>,
    } else {
    }
    %c0_i32_2 = arith.constant 0 : i32
    %5 = arith.cmpi eq, %arg2, %c0_i32_2 : i32
    %6 = arith.extui %5 : i1 to i32
    %c0_i32_3 = arith.constant 0 : i32
    %7 = arith.cmpi ne, %6, %c0_i32_3 : i32
    scf.if %7 {
      %c0_48 = arith.constant 0 : index
      %c0_49 = arith.constant 0 : index
      %c0_50 = arith.constant 0 : index
      %106 = vector.load %arg3[%c0_48, %c0_49, %c0_50] : memref<1x8x32xf32, #tpu.memory_space<vmem>>, vector<1x8x32xf32>
      %107 = vector.shape_cast %106 : vector<1x8x32xf32> to vector<8x32xf32>
      %cst_51 = arith.constant dense<0.000000e+00> : vector<8xf32>
      %108 = vector.multi_reduction <add>, %107, %cst_51 [1] : vector<8x32xf32> to vector<8xf32>
      %109 = vector.shape_cast %108 : vector<8xf32> to vector<8x1xf32>
      %cst_52 = arith.constant 3.200000e+01 : f32
      %110 = vector.broadcast %cst_52 : f32 to vector<8x1xf32>
      %111 = arith.divf %109, %110 : vector<8x1xf32>
      %112 = vector.broadcast %111 : vector<8x1xf32> to vector<8x32xf32>
      %113 = arith.subf %107, %112 : vector<8x32xf32>
      %114 = arith.mulf %113, %113 : vector<8x32xf32>
      %cst_53 = arith.constant dense<0.000000e+00> : vector<8xf32>
      %115 = vector.multi_reduction <add>, %114, %cst_53 [1] : vector<8x32xf32> to vector<8xf32>
      %116 = vector.shape_cast %115 : vector<8xf32> to vector<8x1xf32>
      %cst_54 = arith.constant 3.200000e+01 : f32
      %117 = vector.broadcast %cst_54 : f32 to vector<8x1xf32>
      %118 = arith.divf %116, %117 : vector<8x1xf32>
      %cst_55 = arith.constant 9.99999974E-6 : f32
      %119 = vector.broadcast %cst_55 : f32 to vector<8x1xf32>
      %120 = arith.addf %118, %119 : vector<8x1xf32>
      %121 = math.rsqrt %120 : vector<8x1xf32>
      %122 = vector.broadcast %121 : vector<8x1xf32> to vector<8x32xf32>
      %123 = arith.mulf %113, %122 : vector<8x32xf32>
      %c0_56 = arith.constant 0 : index
      %c0_57 = arith.constant 0 : index
      %124 = vector.load %arg6[%c0_56, %c0_57] : memref<1x32xf32, #tpu.memory_space<vmem>>, vector<1x32xf32>
      %125 = vector.broadcast %124 : vector<1x32xf32> to vector<8x32xf32>
      %126 = arith.mulf %123, %125 : vector<8x32xf32>
      %c0_58 = arith.constant 0 : index
      %c0_59 = arith.constant 0 : index
      %127 = vector.load %arg7[%c0_58, %c0_59] : memref<1x32xf32, #tpu.memory_space<vmem>>, vector<1x32xf32>
      %128 = vector.broadcast %127 : vector<1x32xf32> to vector<8x32xf32>
      %129 = arith.addf %126, %128 : vector<8x32xf32>
      %130 = arith.truncf %129 : vector<8x32xf32> to vector<8x32xbf16>
      %c0_60 = arith.constant 0 : index
      %c0_61 = arith.constant 0 : index
      %131 = vector.load %arg14[%c0_60, %c0_61] : memref<8x32xbf16, #tpu.memory_space<vmem>>, vector<8x32xbf16>
      tpu.vector_store %arg14[%c0_60, %c0_61], %130 {strides = array<i32>} : memref<8x32xbf16, #tpu.memory_space<vmem>>, vector<8x32xbf16>,
      %c0_62 = arith.constant 0 : index
      %c0_63 = arith.constant 0 : index
      %132 = vector.load %arg12[%c0_62, %c0_63] : memref<1x32xf32, #tpu.memory_space<vmem>>, vector<1x32xf32>
      %133 = vector.broadcast %132 : vector<1x32xf32> to vector<8x32xf32>
      %134 = arith.addf %107, %133 : vector<8x32xf32>
      %c0_64 = arith.constant 0 : index
      %c0_65 = arith.constant 0 : index
      %135 = vector.load %arg20[%c0_64, %c0_65] : memref<8x32xf32, #tpu.memory_space<vmem>>, vector<8x32xf32>
      tpu.vector_store %arg20[%c0_64, %c0_65], %134 {strides = array<i32>} : memref<8x32xf32, #tpu.memory_space<vmem>>, vector<8x32xf32>,
    } else {
    }
    %c0_i32_4 = arith.constant 0 : i32
    %8 = arith.cmpi eq, %arg1, %c0_i32_4 : i32
    %9 = arith.extui %8 : i1 to i32
    %c0_i32_5 = arith.constant 0 : i32
    %10 = arith.cmpi ne, %9, %c0_i32_5 : i32
    scf.if %10 {
      %c0_48 = arith.constant 0 : index
      %c0_49 = arith.constant 0 : index
      %106 = vector.load %arg15[%c0_48, %c0_49] : memref<8x32xbf16, #tpu.memory_space<vmem>>, vector<8x32xbf16>
      %c0_50 = arith.constant 0 : index
      %c0_51 = arith.constant 0 : index
      %c0_52 = arith.constant 0 : index
      %107 = vector.load %arg9[%c0_50, %c0_51, %c0_52] : memref<1x32x32xbf16, #tpu.memory_space<vmem>>, vector<1x32x32xbf16>
      %108 = vector.shape_cast %107 : vector<1x32x32xbf16> to vector<32x32xbf16>
      %cst_53 = arith.constant dense<0.000000e+00> : vector<8x32xf32>
      %109 = tpu.matmul %106, %108, %cst_53 {dimension_numbers = #tpu.dot_dimension_numbers<[1], [0], [0], [1], [0, 0, 1, 1], [], []>} : vector<8x32xbf16>, vector<32x32xbf16>, vector<8x32xf32> -> vector<8x32xf32>
      %110 = arith.truncf %109 : vector<8x32xf32> to vector<8x32xbf16>
      %111 = arith.index_cast %arg2 : i32 to index
      %c0_54 = arith.constant 0 : index
      %c0_55 = arith.constant 0 : index
      %112 = vector.load %arg17[%111, %c0_54, %c0_55] : memref<1x8x32xbf16, #tpu.memory_space<vmem>>, vector<1x8x32xbf16>
      %113 = vector.shape_cast %112 : vector<1x8x32xbf16> to vector<8x32xbf16>
      %114 = vector.shape_cast %110 : vector<8x32xbf16> to vector<1x8x32xbf16>
      tpu.vector_store %arg17[%111, %c0_54, %c0_55], %114 {strides = array<i32>} : memref<1x8x32xbf16, #tpu.memory_space<vmem>>, vector<1x8x32xbf16>,
      %c0_56 = arith.constant 0 : index
      %c0_57 = arith.constant 0 : index
      %115 = vector.load %arg16[%c0_56, %c0_57] : memref<8x32xbf16, #tpu.memory_space<vmem>>, vector<8x32xbf16>
      %c0_58 = arith.constant 0 : index
      %c0_59 = arith.constant 0 : index
      %c0_60 = arith.constant 0 : index
      %116 = vector.load %arg10[%c0_58, %c0_59, %c0_60] : memref<1x32x32xbf16, #tpu.memory_space<vmem>>, vector<1x32x32xbf16>
      %117 = vector.shape_cast %116 : vector<1x32x32xbf16> to vector<32x32xbf16>
      %cst_61 = arith.constant dense<0.000000e+00> : vector<8x32xf32>
      %118 = tpu.matmul %115, %117, %cst_61 {dimension_numbers = #tpu.dot_dimension_numbers<[1], [0], [0], [1], [0, 0, 1, 1], [], []>} : vector<8x32xbf16>, vector<32x32xbf16>, vector<8x32xf32> -> vector<8x32xf32>
      %119 = arith.truncf %118 : vector<8x32xf32> to vector<8x32xbf16>
      %120 = arith.index_cast %arg2 : i32 to index
      %c0_62 = arith.constant 0 : index
      %c0_63 = arith.constant 0 : index
      %121 = vector.load %arg18[%120, %c0_62, %c0_63] : memref<1x8x32xbf16, #tpu.memory_space<vmem>>, vector<1x8x32xbf16>
      %122 = vector.shape_cast %121 : vector<1x8x32xbf16> to vector<8x32xbf16>
      %123 = vector.shape_cast %119 : vector<8x32xbf16> to vector<1x8x32xbf16>
      tpu.vector_store %arg18[%120, %c0_62, %c0_63], %123 {strides = array<i32>} : memref<1x8x32xbf16, #tpu.memory_space<vmem>>, vector<1x8x32xbf16>,
    } else {
    }
    %c0 = arith.constant 0 : index
    %c0_6 = arith.constant 0 : index
    %11 = vector.load %arg14[%c0, %c0_6] : memref<8x32xbf16, #tpu.memory_space<vmem>>, vector<8x32xbf16>
    %c0_7 = arith.constant 0 : index
    %c0_8 = arith.constant 0 : index
    %c0_9 = arith.constant 0 : index
    %12 = vector.load %arg8[%c0_7, %c0_8, %c0_9] : memref<1x32x32xbf16, #tpu.memory_space<vmem>>, vector<1x32x32xbf16>
    %13 = vector.shape_cast %12 : vector<1x32x32xbf16> to vector<32x32xbf16>
    %cst = arith.constant dense<0.000000e+00> : vector<8x32xf32>
    %14 = tpu.matmul %11, %13, %cst {dimension_numbers = #tpu.dot_dimension_numbers<[1], [0], [0], [1], [0, 0, 1, 1], [], []>} : vector<8x32xbf16>, vector<32x32xbf16>, vector<8x32xf32> -> vector<8x32xf32>
    %cst_10 = arith.constant 0.353553385 : f32
    %15 = vector.broadcast %cst_10 : f32 to vector<8x32xf32>
    %16 = arith.mulf %14, %15 : vector<8x32xf32>
    %17 = arith.truncf %16 : vector<8x32xf32> to vector<8x32xbf16>
    %18 = arith.index_cast %arg2 : i32 to index
    %c0_11 = arith.constant 0 : index
    %c0_12 = arith.constant 0 : index
    %19 = vector.load %arg17[%18, %c0_11, %c0_12] : memref<1x8x32xbf16, #tpu.memory_space<vmem>>, vector<1x8x32xbf16>
    %20 = vector.shape_cast %19 : vector<1x8x32xbf16> to vector<8x32xbf16>
    %21 = arith.index_cast %arg2 : i32 to index
    %c0_13 = arith.constant 0 : index
    %c0_14 = arith.constant 0 : index
    %22 = vector.load %arg18[%21, %c0_13, %c0_14] : memref<1x8x32xbf16, #tpu.memory_space<vmem>>, vector<1x8x32xbf16>
    %23 = vector.shape_cast %22 : vector<1x8x32xbf16> to vector<8x32xbf16>
    %24 = vector.extract_strided_slice %17 {offsets = [0, 0], sizes = [8, 8], strides = [1, 1]} : vector<8x32xbf16> to vector<8x8xbf16>
    %25 = vector.extract_strided_slice %20 {offsets = [0, 0], sizes = [8, 8], strides = [1, 1]} : vector<8x32xbf16> to vector<8x8xbf16>
    %26 = vector.extract_strided_slice %23 {offsets = [0, 0], sizes = [8, 8], strides = [1, 1]} : vector<8x32xbf16> to vector<8x8xbf16>
    %cst_15 = arith.constant dense<0.000000e+00> : vector<8x8xf32>
    %27 = tpu.matmul %24, %25, %cst_15 {dimension_numbers = #tpu.dot_dimension_numbers<[1], [1], [0], [0], [0, 0, 1, 0], [], []>} : vector<8x8xbf16>, vector<8x8xbf16>, vector<8x8xf32> -> vector<8x8xf32>
    %cst_16 = arith.constant dense<0xFF800000> : vector<8xf32>
    %28 = vector.multi_reduction <maximumf>, %27, %cst_16 [1] : vector<8x8xf32> to vector<8xf32>
    %29 = vector.shape_cast %28 : vector<8xf32> to vector<8x1xf32>
    %30 = vector.broadcast %29 : vector<8x1xf32> to vector<8x8xf32>
    %31 = arith.subf %27, %30 : vector<8x8xf32>
    %32 = math.exp %31 : vector<8x8xf32>
    %cst_17 = arith.constant dense<0.000000e+00> : vector<8xf32>
    %33 = vector.multi_reduction <add>, %32, %cst_17 [1] : vector<8x8xf32> to vector<8xf32>
    %34 = vector.shape_cast %33 : vector<8xf32> to vector<8x1xf32>
    %35 = tpu.reciprocal %34 {approx = true} : vector<8x1xf32> -> vector<8x1xf32>
    %36 = arith.truncf %32 : vector<8x8xf32> to vector<8x8xbf16>
    %cst_18 = arith.constant dense<0.000000e+00> : vector<8x8xf32>
    %37 = tpu.matmul %36, %26, %cst_18 {dimension_numbers = #tpu.dot_dimension_numbers<[1], [0], [0], [1], [0, 0, 1, 1], [], []>} : vector<8x8xbf16>, vector<8x8xbf16>, vector<8x8xf32> -> vector<8x8xf32>
    %38 = vector.broadcast %35 : vector<8x1xf32> to vector<8x8xf32>
    %39 = arith.mulf %37, %38 : vector<8x8xf32>
    %40 = arith.truncf %39 : vector<8x8xf32> to vector<8x8xbf16>
    %c0_19 = arith.constant 0 : index
    %c0_20 = arith.constant 0 : index
    %41 = vector.load %arg19[%c0_19, %c0_20] : memref<8x32xbf16, #tpu.memory_space<vmem>>, vector<8x8xbf16>
    tpu.vector_store %arg19[%c0_19, %c0_20], %40 {strides = array<i32>} : memref<8x32xbf16, #tpu.memory_space<vmem>>, vector<8x8xbf16>,
    %42 = vector.extract_strided_slice %17 {offsets = [0, 8], sizes = [8, 8], strides = [1, 1]} : vector<8x32xbf16> to vector<8x8xbf16>
    %43 = vector.extract_strided_slice %20 {offsets = [0, 8], sizes = [8, 8], strides = [1, 1]} : vector<8x32xbf16> to vector<8x8xbf16>
    %44 = vector.extract_strided_slice %23 {offsets = [0, 8], sizes = [8, 8], strides = [1, 1]} : vector<8x32xbf16> to vector<8x8xbf16>
    %cst_21 = arith.constant dense<0.000000e+00> : vector<8x8xf32>
    %45 = tpu.matmul %42, %43, %cst_21 {dimension_numbers = #tpu.dot_dimension_numbers<[1], [1], [0], [0], [0, 0, 1, 0], [], []>} : vector<8x8xbf16>, vector<8x8xbf16>, vector<8x8xf32> -> vector<8x8xf32>
    %cst_22 = arith.constant dense<0xFF800000> : vector<8xf32>
    %46 = vector.multi_reduction <maximumf>, %45, %cst_22 [1] : vector<8x8xf32> to vector<8xf32>
    %47 = vector.shape_cast %46 : vector<8xf32> to vector<8x1xf32>
    %48 = vector.broadcast %47 : vector<8x1xf32> to vector<8x8xf32>
    %49 = arith.subf %45, %48 : vector<8x8xf32>
    %50 = math.exp %49 : vector<8x8xf32>
    %cst_23 = arith.constant dense<0.000000e+00> : vector<8xf32>
    %51 = vector.multi_reduction <add>, %50, %cst_23 [1] : vector<8x8xf32> to vector<8xf32>
    %52 = vector.shape_cast %51 : vector<8xf32> to vector<8x1xf32>
    %53 = tpu.reciprocal %52 {approx = true} : vector<8x1xf32> -> vector<8x1xf32>
    %54 = arith.truncf %50 : vector<8x8xf32> to vector<8x8xbf16>
    %cst_24 = arith.constant dense<0.000000e+00> : vector<8x8xf32>
    %55 = tpu.matmul %54, %44, %cst_24 {dimension_numbers = #tpu.dot_dimension_numbers<[1], [0], [0], [1], [0, 0, 1, 1], [], []>} : vector<8x8xbf16>, vector<8x8xbf16>, vector<8x8xf32> -> vector<8x8xf32>
    %56 = vector.broadcast %53 : vector<8x1xf32> to vector<8x8xf32>
    %57 = arith.mulf %55, %56 : vector<8x8xf32>
    %58 = arith.truncf %57 : vector<8x8xf32> to vector<8x8xbf16>
    %c0_25 = arith.constant 0 : index
    %c8 = arith.constant 8 : index
    %59 = vector.load %arg19[%c0_25, %c8] : memref<8x32xbf16, #tpu.memory_space<vmem>>, vector<8x8xbf16>
    tpu.vector_store %arg19[%c0_25, %c8], %58 {strides = array<i32>} : memref<8x32xbf16, #tpu.memory_space<vmem>>, vector<8x8xbf16>,
    %60 = vector.extract_strided_slice %17 {offsets = [0, 16], sizes = [8, 8], strides = [1, 1]} : vector<8x32xbf16> to vector<8x8xbf16>
    %61 = vector.extract_strided_slice %20 {offsets = [0, 16], sizes = [8, 8], strides = [1, 1]} : vector<8x32xbf16> to vector<8x8xbf16>
    %62 = vector.extract_strided_slice %23 {offsets = [0, 16], sizes = [8, 8], strides = [1, 1]} : vector<8x32xbf16> to vector<8x8xbf16>
    %cst_26 = arith.constant dense<0.000000e+00> : vector<8x8xf32>
    %63 = tpu.matmul %60, %61, %cst_26 {dimension_numbers = #tpu.dot_dimension_numbers<[1], [1], [0], [0], [0, 0, 1, 0], [], []>} : vector<8x8xbf16>, vector<8x8xbf16>, vector<8x8xf32> -> vector<8x8xf32>
    %cst_27 = arith.constant dense<0xFF800000> : vector<8xf32>
    %64 = vector.multi_reduction <maximumf>, %63, %cst_27 [1] : vector<8x8xf32> to vector<8xf32>
    %65 = vector.shape_cast %64 : vector<8xf32> to vector<8x1xf32>
    %66 = vector.broadcast %65 : vector<8x1xf32> to vector<8x8xf32>
    %67 = arith.subf %63, %66 : vector<8x8xf32>
    %68 = math.exp %67 : vector<8x8xf32>
    %cst_28 = arith.constant dense<0.000000e+00> : vector<8xf32>
    %69 = vector.multi_reduction <add>, %68, %cst_28 [1] : vector<8x8xf32> to vector<8xf32>
    %70 = vector.shape_cast %69 : vector<8xf32> to vector<8x1xf32>
    %71 = tpu.reciprocal %70 {approx = true} : vector<8x1xf32> -> vector<8x1xf32>
    %72 = arith.truncf %68 : vector<8x8xf32> to vector<8x8xbf16>
    %cst_29 = arith.constant dense<0.000000e+00> : vector<8x8xf32>
    %73 = tpu.matmul %72, %62, %cst_29 {dimension_numbers = #tpu.dot_dimension_numbers<[1], [0], [0], [1], [0, 0, 1, 1], [], []>} : vector<8x8xbf16>, vector<8x8xbf16>, vector<8x8xf32> -> vector<8x8xf32>
    %74 = vector.broadcast %71 : vector<8x1xf32> to vector<8x8xf32>
    %75 = arith.mulf %73, %74 : vector<8x8xf32>
    %76 = arith.truncf %75 : vector<8x8xf32> to vector<8x8xbf16>
    %c0_30 = arith.constant 0 : index
    %c16 = arith.constant 16 : index
    %77 = vector.load %arg19[%c0_30, %c16] : memref<8x32xbf16, #tpu.memory_space<vmem>>, vector<8x8xbf16>
    tpu.vector_store %arg19[%c0_30, %c16], %76 {strides = array<i32>} : memref<8x32xbf16, #tpu.memory_space<vmem>>, vector<8x8xbf16>,
    %78 = vector.extract_strided_slice %17 {offsets = [0, 24], sizes = [8, 8], strides = [1, 1]} : vector<8x32xbf16> to vector<8x8xbf16>
    %79 = vector.extract_strided_slice %20 {offsets = [0, 24], sizes = [8, 8], strides = [1, 1]} : vector<8x32xbf16> to vector<8x8xbf16>
    %80 = vector.extract_strided_slice %23 {offsets = [0, 24], sizes = [8, 8], strides = [1, 1]} : vector<8x32xbf16> to vector<8x8xbf16>
    %cst_31 = arith.constant dense<0.000000e+00> : vector<8x8xf32>
    %81 = tpu.matmul %78, %79, %cst_31 {dimension_numbers = #tpu.dot_dimension_numbers<[1], [1], [0], [0], [0, 0, 1, 0], [], []>} : vector<8x8xbf16>, vector<8x8xbf16>, vector<8x8xf32> -> vector<8x8xf32>
    %cst_32 = arith.constant dense<0xFF800000> : vector<8xf32>
    %82 = vector.multi_reduction <maximumf>, %81, %cst_32 [1] : vector<8x8xf32> to vector<8xf32>
    %83 = vector.shape_cast %82 : vector<8xf32> to vector<8x1xf32>
    %84 = vector.broadcast %83 : vector<8x1xf32> to vector<8x8xf32>
    %85 = arith.subf %81, %84 : vector<8x8xf32>
    %86 = math.exp %85 : vector<8x8xf32>
    %cst_33 = arith.constant dense<0.000000e+00> : vector<8xf32>
    %87 = vector.multi_reduction <add>, %86, %cst_33 [1] : vector<8x8xf32> to vector<8xf32>
    %88 = vector.shape_cast %87 : vector<8xf32> to vector<8x1xf32>
    %89 = tpu.reciprocal %88 {approx = true} : vector<8x1xf32> -> vector<8x1xf32>
    %90 = arith.truncf %86 : vector<8x8xf32> to vector<8x8xbf16>
    %cst_34 = arith.constant dense<0.000000e+00> : vector<8x8xf32>
    %91 = tpu.matmul %90, %80, %cst_34 {dimension_numbers = #tpu.dot_dimension_numbers<[1], [0], [0], [1], [0, 0, 1, 1], [], []>} : vector<8x8xbf16>, vector<8x8xbf16>, vector<8x8xf32> -> vector<8x8xf32>
    %92 = vector.broadcast %89 : vector<8x1xf32> to vector<8x8xf32>
    %93 = arith.mulf %91, %92 : vector<8x8xf32>
    %94 = arith.truncf %93 : vector<8x8xf32> to vector<8x8xbf16>
    %c0_35 = arith.constant 0 : index
    %c24 = arith.constant 24 : index
    %95 = vector.load %arg19[%c0_35, %c24] : memref<8x32xbf16, #tpu.memory_space<vmem>>, vector<8x8xbf16>
    tpu.vector_store %arg19[%c0_35, %c24], %94 {strides = array<i32>} : memref<8x32xbf16, #tpu.memory_space<vmem>>, vector<8x8xbf16>,
    %c0_36 = arith.constant 0 : index
    %c0_37 = arith.constant 0 : index
    %96 = vector.load %arg20[%c0_36, %c0_37] : memref<8x32xf32, #tpu.memory_space<vmem>>, vector<8x32xf32>
    %c0_38 = arith.constant 0 : index
    %c0_39 = arith.constant 0 : index
    %97 = vector.load %arg19[%c0_38, %c0_39] : memref<8x32xbf16, #tpu.memory_space<vmem>>, vector<8x32xbf16>
    %c0_40 = arith.constant 0 : index
    %c0_41 = arith.constant 0 : index
    %c0_42 = arith.constant 0 : index
    %98 = vector.load %arg11[%c0_40, %c0_41, %c0_42] : memref<1x32x32xbf16, #tpu.memory_space<vmem>>, vector<1x32x32xbf16>
    %99 = vector.shape_cast %98 : vector<1x32x32xbf16> to vector<32x32xbf16>
    %cst_43 = arith.constant dense<0.000000e+00> : vector<8x32xf32>
    %100 = tpu.matmul %97, %99, %cst_43 {dimension_numbers = #tpu.dot_dimension_numbers<[1], [0], [0], [1], [0, 0, 1, 1], [], []>} : vector<8x32xbf16>, vector<32x32xbf16>, vector<8x32xf32> -> vector<8x32xf32>
    %101 = arith.addf %96, %100 : vector<8x32xf32>
    %c0_44 = arith.constant 0 : index
    %c0_45 = arith.constant 0 : index
    %102 = vector.load %arg20[%c0_44, %c0_45] : memref<8x32xf32, #tpu.memory_space<vmem>>, vector<8x32xf32>
    tpu.vector_store %arg20[%c0_44, %c0_45], %101 {strides = array<i32>} : memref<8x32xf32, #tpu.memory_space<vmem>>, vector<8x32xf32>,
    %c0_i32_46 = arith.constant 0 : i32
    %103 = arith.cmpi eq, %arg2, %c0_i32_46 : i32
    %104 = arith.extui %103 : i1 to i32
    %c0_i32_47 = arith.constant 0 : i32
    %105 = arith.cmpi ne, %104, %c0_i32_47 : i32
    scf.if %105 {
      %c0_48 = arith.constant 0 : index
      %c0_49 = arith.constant 0 : index
      %106 = vector.load %arg20[%c0_48, %c0_49] : memref<8x32xf32, #tpu.memory_space<vmem>>, vector<8x32xf32>
      %c0_50 = arith.constant 0 : index
      %c0_51 = arith.constant 0 : index
      %c0_52 = arith.constant 0 : index
      %107 = vector.load %arg13[%c0_50, %c0_51, %c0_52] : memref<1x8x32xf32, #tpu.memory_space<vmem>>, vector<1x8x32xf32>
      %108 = vector.shape_cast %107 : vector<1x8x32xf32> to vector<8x32xf32>
      %109 = vector.shape_cast %106 : vector<8x32xf32> to vector<1x8x32xf32>
      tpu.vector_store %arg13[%c0_50, %c0_51, %c0_52], %109 {strides = array<i32>} : memref<1x8x32xf32, #tpu.memory_space<vmem>>, vector<1x8x32xf32>,
    } else {
    }
    return
  }
  func.func @transform_0(%arg0: i32, %arg1: i32, %arg2: i32) -> (i32, i32, i32) {
    %c0_i32 = arith.constant 0 : i32
    %c0_i32_0 = arith.constant 0 : i32
    return %arg0, %arg1, %c0_i32 : i32, i32, i32
  }
  func.func @transform_1(%arg0: i32, %arg1: i32, %arg2: i32) -> (i32, i32, i32) {
    %c0_i32 = arith.constant 0 : i32
    %c0_i32_0 = arith.constant 0 : i32
    %c0_i32_1 = arith.constant 0 : i32
    return %arg0, %c0_i32, %c0_i32_0 : i32, i32, i32
  }
  func.func @transform_2(%arg0: i32, %arg1: i32, %arg2: i32) -> (i32, i32, i32) {
    %c0_i32 = arith.constant 0 : i32
    %c0_i32_0 = arith.constant 0 : i32
    %c0_i32_1 = arith.constant 0 : i32
    return %arg0, %c0_i32, %c0_i32_0 : i32, i32, i32
  }
  func.func @transform_3(%arg0: i32, %arg1: i32, %arg2: i32) -> (i32, i32) {
    %c0_i32 = arith.constant 0 : i32
    %c0_i32_0 = arith.constant 0 : i32
    %c0_i32_1 = arith.constant 0 : i32
    return %c0_i32, %c0_i32_0 : i32, i32
  }
  func.func @transform_4(%arg0: i32, %arg1: i32, %arg2: i32) -> (i32, i32) {
    %c0_i32 = arith.constant 0 : i32
    %c0_i32_0 = arith.constant 0 : i32
    %c0_i32_1 = arith.constant 0 : i32
    return %c0_i32, %c0_i32_0 : i32, i32
  }
  func.func @transform_5(%arg0: i32, %arg1: i32, %arg2: i32) -> (i32, i32, i32) {
    %c0_i32 = arith.constant 0 : i32
    %c0_i32_0 = arith.constant 0 : i32
    %c0_i32_1 = arith.constant 0 : i32
    return %arg2, %c0_i32, %c0_i32_0 : i32, i32, i32
  }
  func.func @transform_6(%arg0: i32, %arg1: i32, %arg2: i32) -> (i32, i32, i32) {
    %c0_i32 = arith.constant 0 : i32
    %c0_i32_0 = arith.constant 0 : i32
    %c0_i32_1 = arith.constant 0 : i32
    return %arg2, %c0_i32, %c0_i32_0 : i32, i32, i32
  }
  func.func @transform_7(%arg0: i32, %arg1: i32, %arg2: i32) -> (i32, i32, i32) {
    %c0_i32 = arith.constant 0 : i32
    %c0_i32_0 = arith.constant 0 : i32
    %c0_i32_1 = arith.constant 0 : i32
    return %arg2, %c0_i32, %c0_i32_0 : i32, i32, i32
  }
  func.func @transform_8(%arg0: i32, %arg1: i32, %arg2: i32) -> (i32, i32, i32) {
    %c0_i32 = arith.constant 0 : i32
    %c0_i32_0 = arith.constant 0 : i32
    %c0_i32_1 = arith.constant 0 : i32
    return %arg2, %c0_i32, %c0_i32_0 : i32, i32, i32
  }
  func.func @transform_9(%arg0: i32, %arg1: i32, %arg2: i32) -> (i32, i32) {
    %c0_i32 = arith.constant 0 : i32
    %c0_i32_0 = arith.constant 0 : i32
    %c0_i32_1 = arith.constant 0 : i32
    return %c0_i32, %c0_i32_0 : i32, i32
  }
  func.func @transform_10(%arg0: i32, %arg1: i32, %arg2: i32) -> (i32, i32, i32) {
    %c0_i32 = arith.constant 0 : i32
    %c0_i32_0 = arith.constant 0 : i32
    return %arg0, %arg1, %c0_i32 : i32, i32, i32
  }
}

module attributes {stable_mosaic.version = 11 : i64} {
  func.func @_prenorm_attn_qkv_kernel(%arg0: i32, %arg1: i32, %arg2: i32, %arg3: memref<1x8x32xf32, #tpu.memory_space<vmem>>, %arg4: memref<1x8x32xf32, #tpu.memory_space<vmem>>, %arg5: memref<1x8x32xf32, #tpu.memory_space<vmem>>, %arg6: memref<1x32xf32, #tpu.memory_space<vmem>>, %arg7: memref<1x32xf32, #tpu.memory_space<vmem>>, %arg8: memref<1x32x32xbf16, #tpu.memory_space<vmem>>, %arg9: memref<1x32x32xbf16, #tpu.memory_space<vmem>>, %arg10: memref<1x32x32xbf16, #tpu.memory_space<vmem>>, %arg11: memref<1x32x32xbf16, #tpu.memory_space<vmem>>, %arg12: memref<1x32xf32, #tpu.memory_space<vmem>>, %arg13: memref<1x8x32xf32, #tpu.memory_space<vmem>>, %arg14: memref<8x32xbf16, #tpu.memory_space<vmem>>, %arg15: memref<8x32xbf16, #tpu.memory_space<vmem>>, %arg16: memref<8x32xbf16, #tpu.memory_space<vmem>>, %arg17: memref<1x8x32xbf16, #tpu.memory_space<vmem>>, %arg18: memref<1x8x32xbf16, #tpu.memory_space<vmem>>, %arg19: memref<8x32xbf16, #tpu.memory_space<vmem>>, %arg20: memref<8x32xf32, #tpu.memory_space<vmem>>) attributes {dimension_semantics = [#tpu.dimension_semantics<parallel>, #tpu.dimension_semantics<arbitrary>, #tpu.dimension_semantics<arbitrary>], iteration_bounds = array<i64: 2, 1, 1>, scalar_prefetch = 0 : i64, scratch_operands = 7 : i64, tpu.core_type = #tpu.core_type<tc>, window_params = [{transform_indices = @transform_0, window_bounds = array<i64: 1, 8, 32>}, {transform_indices = @transform_1, window_bounds = array<i64: 1, 8, 32>}, {transform_indices = @transform_2, window_bounds = array<i64: 1, 8, 32>}, {pipeline_mode = #tpu.pipeline_mode<synchronous>, transform_indices = @transform_3, window_bounds = array<i64: 1, 32>}, {pipeline_mode = #tpu.pipeline_mode<synchronous>, transform_indices = @transform_4, window_bounds = array<i64: 1, 32>}, {transform_indices = @transform_5, window_bounds = array<i64: 1, 32, 32>}, {transform_indices = @transform_6, window_bounds = array<i64: 1, 32, 32>}, {transform_indices = @transform_7, window_bounds = array<i64: 1, 32, 32>}, {transform_indices = @transform_8, window_bounds = array<i64: 1, 32, 32>}, {pipeline_mode = #tpu.pipeline_mode<synchronous>, transform_indices = @transform_9, window_bounds = array<i64: 1, 32>}, {transform_indices = @transform_10, window_bounds = array<i64: 1, 8, 32>}]} {
    %c0_i32 = arith.constant 0 : i32
    %0 = arith.cmpi eq, %arg1, %c0_i32 : i32
    %c0_i32_0 = arith.constant 0 : i32
    %1 = arith.cmpi eq, %arg2, %c0_i32_0 : i32
    %2 = arith.andi %0, %1 : i1
    %3 = arith.extui %2 : i1 to i32
    %c0_i32_1 = arith.constant 0 : i32
    %4 = arith.cmpi ne, %3, %c0_i32_1 : i32
    scf.if %4 {
      %c0_48 = arith.constant 0 : index
      %c0_49 = arith.constant 0 : index
      %c0_50 = arith.constant 0 : index
      %106 = vector.load %arg4[%c0_48, %c0_49, %c0_50] : memref<1x8x32xf32, #tpu.memory_space<vmem>>, vector<1x8x32xf32>
      %107 = vector.shape_cast %106 : vector<1x8x32xf32> to vector<8x32xf32>
      %cst_51 = arith.constant dense<0.000000e+00> : vector<8xf32>
      %108 = vector.multi_reduction <add>, %107, %cst_51 [1] : vector<8x32xf32> to vector<8xf32>
      %109 = vector.shape_cast %108 : vector<8xf32> to vector<8x1xf32>
      %cst_52 = arith.constant 3.200000e+01 : f32
      %110 = vector.broadcast %cst_52 : f32 to vector<8x1xf32>
      %111 = arith.divf %109, %110 : vector<8x1xf32>
      %112 = vector.broadcast %111 : vector<8x1xf32> to vector<8x32xf32>
      %113 = arith.subf %107, %112 : vector<8x32xf32>
      %114 = arith.mulf %113, %113 : vector<8x32xf32>
      %cst_53 = arith.constant dense<0.000000e+00> : vector<8xf32>
      %115 = vector.multi_reduction <add>, %114, %cst_53 [1] : vector<8x32xf32> to vector<8xf32>
      %116 = vector.shape_cast %115 : vector<8xf32> to vector<8x1xf32>
      %cst_54 = arith.constant 3.200000e+01 : f32
      %117 = vector.broadcast %cst_54 : f32 to vector<8x1xf32>
      %118 = arith.divf %116, %117 : vector<8x1xf32>
      %cst_55 = arith.constant 9.99999974E-6 : f32
      %119 = vector.broadcast %cst_55 : f32 to vector<8x1xf32>
      %120 = arith.addf %118, %119 : vector<8x1xf32>
      %121 = math.rsqrt %120 : vector<8x1xf32>
      %122 = vector.broadcast %121 : vector<8x1xf32> to vector<8x32xf32>
      %123 = arith.mulf %113, %122 : vector<8x32xf32>
      %c0_56 = arith.constant 0 : index
      %c0_57 = arith.constant 0 : index
      %124 = vector.load %arg6[%c0_56, %c0_57] : memref<1x32xf32, #tpu.memory_space<vmem>>, vector<1x32xf32>
      %125 = vector.broadcast %124 : vector<1x32xf32> to vector<8x32xf32>
      %126 = arith.mulf %123, %125 : vector<8x32xf32>
      %c0_58 = arith.constant 0 : index
      %c0_59 = arith.constant 0 : index
      %127 = vector.load %arg7[%c0_58, %c0_59] : memref<1x32xf32, #tpu.memory_space<vmem>>, vector<1x32xf32>
      %128 = vector.broadcast %127 : vector<1x32xf32> to vector<8x32xf32>
      %129 = arith.addf %126, %128 : vector<8x32xf32>
      %130 = arith.truncf %129 : vector<8x32xf32> to vector<8x32xbf16>
      %c0_60 = arith.constant 0 : index
      %c0_61 = arith.constant 0 : index
      %131 = vector.load %arg15[%c0_60, %c0_61] : memref<8x32xbf16, #tpu.memory_space<vmem>>, vector<8x32xbf16>
      tpu.vector_store %arg15[%c0_60, %c0_61], %130 {strides = array<i32>} : memref<8x32xbf16, #tpu.memory_space<vmem>>, vector<8x32xbf16>,
      %c0_62 = arith.constant 0 : index
      %c0_63 = arith.constant 0 : index
      %c0_64 = arith.constant 0 : index
      %132 = vector.load %arg5[%c0_62, %c0_63, %c0_64] : memref<1x8x32xf32, #tpu.memory_space<vmem>>, vector<1x8x32xf32>
      %133 = vector.shape_cast %132 : vector<1x8x32xf32> to vector<8x32xf32>
      %cst_65 = arith.constant dense<0.000000e+00> : vector<8xf32>
      %134 = vector.multi_reduction <add>, %133, %cst_65 [1] : vector<8x32xf32> to vector<8xf32>
      %135 = vector.shape_cast %134 : vector<8xf32> to vector<8x1xf32>
      %cst_66 = arith.constant 3.200000e+01 : f32
      %136 = vector.broadcast %cst_66 : f32 to vector<8x1xf32>
      %137 = arith.divf %135, %136 : vector<8x1xf32>
      %138 = vector.broadcast %137 : vector<8x1xf32> to vector<8x32xf32>
      %139 = arith.subf %133, %138 : vector<8x32xf32>
      %140 = arith.mulf %139, %139 : vector<8x32xf32>
      %cst_67 = arith.constant dense<0.000000e+00> : vector<8xf32>
      %141 = vector.multi_reduction <add>, %140, %cst_67 [1] : vector<8x32xf32> to vector<8xf32>
      %142 = vector.shape_cast %141 : vector<8xf32> to vector<8x1xf32>
      %cst_68 = arith.constant 3.200000e+01 : f32
      %143 = vector.broadcast %cst_68 : f32 to vector<8x1xf32>
      %144 = arith.divf %142, %143 : vector<8x1xf32>
      %cst_69 = arith.constant 9.99999974E-6 : f32
      %145 = vector.broadcast %cst_69 : f32 to vector<8x1xf32>
      %146 = arith.addf %144, %145 : vector<8x1xf32>
      %147 = math.rsqrt %146 : vector<8x1xf32>
      %148 = vector.broadcast %147 : vector<8x1xf32> to vector<8x32xf32>
      %149 = arith.mulf %139, %148 : vector<8x32xf32>
      %c0_70 = arith.constant 0 : index
      %c0_71 = arith.constant 0 : index
      %150 = vector.load %arg6[%c0_70, %c0_71] : memref<1x32xf32, #tpu.memory_space<vmem>>, vector<1x32xf32>
      %151 = vector.broadcast %150 : vector<1x32xf32> to vector<8x32xf32>
      %152 = arith.mulf %149, %151 : vector<8x32xf32>
      %c0_72 = arith.constant 0 : index
      %c0_73 = arith.constant 0 : index
      %153 = vector.load %arg7[%c0_72, %c0_73] : memref<1x32xf32, #tpu.memory_space<vmem>>, vector<1x32xf32>
      %154 = vector.broadcast %153 : vector<1x32xf32> to vector<8x32xf32>
      %155 = arith.addf %152, %154 : vector<8x32xf32>
      %156 = arith.truncf %155 : vector<8x32xf32> to vector<8x32xbf16>
      %c0_74 = arith.constant 0 : index
      %c0_75 = arith.constant 0 : index
      %157 = vector.load %arg16[%c0_74, %c0_75] : memref<8x32xbf16, #tpu.memory_space<vmem>>, vector<8x32xbf16>
      tpu.vector_store %arg16[%c0_74, %c0_75], %156 {strides = array<i32>} : memref<8x32xbf16, #tpu.memory_space<vmem>>, vector<8x32xbf16>,
    } else {
    }
    %c0_i32_2 = arith.constant 0 : i32
    %5 = arith.cmpi eq, %arg2, %c0_i32_2 : i32
    %6 = arith.extui %5 : i1 to i32
    %c0_i32_3 = arith.constant 0 : i32
    %7 = arith.cmpi ne, %6, %c0_i32_3 : i32
    scf.if %7 {
      %c0_48 = arith.constant 0 : index
      %c0_49 = arith.constant 0 : index
      %c0_50 = arith.constant 0 : index
      %106 = vector.load %arg3[%c0_48, %c0_49, %c0_50] : memref<1x8x32xf32, #tpu.memory_space<vmem>>, vector<1x8x32xf32>
      %107 = vector.shape_cast %106 : vector<1x8x32xf32> to vector<8x32xf32>
      %cst_51 = arith.constant dense<0.000000e+00> : vector<8xf32>
      %108 = vector.multi_reduction <add>, %107, %cst_51 [1] : vector<8x32xf32> to vector<8xf32>
      %109 = vector.shape_cast %108 : vector<8xf32> to vector<8x1xf32>
      %cst_52 = arith.constant 3.200000e+01 : f32
      %110 = vector.broadcast %cst_52 : f32 to vector<8x1xf32>
      %111 = arith.divf %109, %110 : vector<8x1xf32>
      %112 = vector.broadcast %111 : vector<8x1xf32> to vector<8x32xf32>
      %113 = arith.subf %107, %112 : vector<8x32xf32>
      %114 = arith.mulf %113, %113 : vector<8x32xf32>
      %cst_53 = arith.constant dense<0.000000e+00> : vector<8xf32>
      %115 = vector.multi_reduction <add>, %114, %cst_53 [1] : vector<8x32xf32> to vector<8xf32>
      %116 = vector.shape_cast %115 : vector<8xf32> to vector<8x1xf32>
      %cst_54 = arith.constant 3.200000e+01 : f32
      %117 = vector.broadcast %cst_54 : f32 to vector<8x1xf32>
      %118 = arith.divf %116, %117 : vector<8x1xf32>
      %cst_55 = arith.constant 9.99999974E-6 : f32
      %119 = vector.broadcast %cst_55 : f32 to vector<8x1xf32>
      %120 = arith.addf %118, %119 : vector<8x1xf32>
      %121 = math.rsqrt %120 : vector<8x1xf32>
      %122 = vector.broadcast %121 : vector<8x1xf32> to vector<8x32xf32>
      %123 = arith.mulf %113, %122 : vector<8x32xf32>
      %c0_56 = arith.constant 0 : index
      %c0_57 = arith.constant 0 : index
      %124 = vector.load %arg6[%c0_56, %c0_57] : memref<1x32xf32, #tpu.memory_space<vmem>>, vector<1x32xf32>
      %125 = vector.broadcast %124 : vector<1x32xf32> to vector<8x32xf32>
      %126 = arith.mulf %123, %125 : vector<8x32xf32>
      %c0_58 = arith.constant 0 : index
      %c0_59 = arith.constant 0 : index
      %127 = vector.load %arg7[%c0_58, %c0_59] : memref<1x32xf32, #tpu.memory_space<vmem>>, vector<1x32xf32>
      %128 = vector.broadcast %127 : vector<1x32xf32> to vector<8x32xf32>
      %129 = arith.addf %126, %128 : vector<8x32xf32>
      %130 = arith.truncf %129 : vector<8x32xf32> to vector<8x32xbf16>
      %c0_60 = arith.constant 0 : index
      %c0_61 = arith.constant 0 : index
      %131 = vector.load %arg14[%c0_60, %c0_61] : memref<8x32xbf16, #tpu.memory_space<vmem>>, vector<8x32xbf16>
      tpu.vector_store %arg14[%c0_60, %c0_61], %130 {strides = array<i32>} : memref<8x32xbf16, #tpu.memory_space<vmem>>, vector<8x32xbf16>,
      %c0_62 = arith.constant 0 : index
      %c0_63 = arith.constant 0 : index
      %132 = vector.load %arg12[%c0_62, %c0_63] : memref<1x32xf32, #tpu.memory_space<vmem>>, vector<1x32xf32>
      %133 = vector.broadcast %132 : vector<1x32xf32> to vector<8x32xf32>
      %134 = arith.addf %107, %133 : vector<8x32xf32>
      %c0_64 = arith.constant 0 : index
      %c0_65 = arith.constant 0 : index
      %135 = vector.load %arg20[%c0_64, %c0_65] : memref<8x32xf32, #tpu.memory_space<vmem>>, vector<8x32xf32>
      tpu.vector_store %arg20[%c0_64, %c0_65], %134 {strides = array<i32>} : memref<8x32xf32, #tpu.memory_space<vmem>>, vector<8x32xf32>,
    } else {
    }
    %c0_i32_4 = arith.constant 0 : i32
    %8 = arith.cmpi eq, %arg1, %c0_i32_4 : i32
    %9 = arith.extui %8 : i1 to i32
    %c0_i32_5 = arith.constant 0 : i32
    %10 = arith.cmpi ne, %9, %c0_i32_5 : i32
    scf.if %10 {
      %c0_48 = arith.constant 0 : index
      %c0_49 = arith.constant 0 : index
      %106 = vector.load %arg15[%c0_48, %c0_49] : memref<8x32xbf16, #tpu.memory_space<vmem>>, vector<8x32xbf16>
      %c0_50 = arith.constant 0 : index
      %c0_51 = arith.constant 0 : index
      %c0_52 = arith.constant 0 : index
      %107 = vector.load %arg9[%c0_50, %c0_51, %c0_52] : memref<1x32x32xbf16, #tpu.memory_space<vmem>>, vector<1x32x32xbf16>
      %108 = vector.shape_cast %107 : vector<1x32x32xbf16> to vector<32x32xbf16>
      %cst_53 = arith.constant dense<0.000000e+00> : vector<8x32xf32>
      %109 = tpu.matmul %106, %108, %cst_53 {dimension_numbers = #tpu.dot_dimension_numbers<[1], [0], [0], [1], [0, 0, 1, 1], [], []>} : vector<8x32xbf16>, vector<32x32xbf16>, vector<8x32xf32> -> vector<8x32xf32>
      %110 = arith.truncf %109 : vector<8x32xf32> to vector<8x32xbf16>
      %111 = arith.index_cast %arg2 : i32 to index
      %c0_54 = arith.constant 0 : index
      %c0_55 = arith.constant 0 : index
      %112 = vector.load %arg17[%111, %c0_54, %c0_55] : memref<1x8x32xbf16, #tpu.memory_space<vmem>>, vector<1x8x32xbf16>
      %113 = vector.shape_cast %112 : vector<1x8x32xbf16> to vector<8x32xbf16>
      %114 = vector.shape_cast %110 : vector<8x32xbf16> to vector<1x8x32xbf16>
      tpu.vector_store %arg17[%111, %c0_54, %c0_55], %114 {strides = array<i32>} : memref<1x8x32xbf16, #tpu.memory_space<vmem>>, vector<1x8x32xbf16>,
      %c0_56 = arith.constant 0 : index
      %c0_57 = arith.constant 0 : index
      %115 = vector.load %arg16[%c0_56, %c0_57] : memref<8x32xbf16, #tpu.memory_space<vmem>>, vector<8x32xbf16>
      %c0_58 = arith.constant 0 : index
      %c0_59 = arith.constant 0 : index
      %c0_60 = arith.constant 0 : index
      %116 = vector.load %arg10[%c0_58, %c0_59, %c0_60] : memref<1x32x32xbf16, #tpu.memory_space<vmem>>, vector<1x32x32xbf16>
      %117 = vector.shape_cast %116 : vector<1x32x32xbf16> to vector<32x32xbf16>
      %cst_61 = arith.constant dense<0.000000e+00> : vector<8x32xf32>
      %118 = tpu.matmul %115, %117, %cst_61 {dimension_numbers = #tpu.dot_dimension_numbers<[1], [0], [0], [1], [0, 0, 1, 1], [], []>} : vector<8x32xbf16>, vector<32x32xbf16>, vector<8x32xf32> -> vector<8x32xf32>
      %119 = arith.truncf %118 : vector<8x32xf32> to vector<8x32xbf16>
      %120 = arith.index_cast %arg2 : i32 to index
      %c0_62 = arith.constant 0 : index
      %c0_63 = arith.constant 0 : index
      %121 = vector.load %arg18[%120, %c0_62, %c0_63] : memref<1x8x32xbf16, #tpu.memory_space<vmem>>, vector<1x8x32xbf16>
      %122 = vector.shape_cast %121 : vector<1x8x32xbf16> to vector<8x32xbf16>
      %123 = vector.shape_cast %119 : vector<8x32xbf16> to vector<1x8x32xbf16>
      tpu.vector_store %arg18[%120, %c0_62, %c0_63], %123 {strides = array<i32>} : memref<1x8x32xbf16, #tpu.memory_space<vmem>>, vector<1x8x32xbf16>,
    } else {
    }
    %c0 = arith.constant 0 : index
    %c0_6 = arith.constant 0 : index
    %11 = vector.load %arg14[%c0, %c0_6] : memref<8x32xbf16, #tpu.memory_space<vmem>>, vector<8x32xbf16>
    %c0_7 = arith.constant 0 : index
    %c0_8 = arith.constant 0 : index
    %c0_9 = arith.constant 0 : index
    %12 = vector.load %arg8[%c0_7, %c0_8, %c0_9] : memref<1x32x32xbf16, #tpu.memory_space<vmem>>, vector<1x32x32xbf16>
    %13 = vector.shape_cast %12 : vector<1x32x32xbf16> to vector<32x32xbf16>
    %cst = arith.constant dense<0.000000e+00> : vector<8x32xf32>
    %14 = tpu.matmul %11, %13, %cst {dimension_numbers = #tpu.dot_dimension_numbers<[1], [0], [0], [1], [0, 0, 1, 1], [], []>} : vector<8x32xbf16>, vector<32x32xbf16>, vector<8x32xf32> -> vector<8x32xf32>
    %cst_10 = arith.constant 0.353553385 : f32
    %15 = vector.broadcast %cst_10 : f32 to vector<8x32xf32>
    %16 = arith.mulf %14, %15 : vector<8x32xf32>
    %17 = arith.truncf %16 : vector<8x32xf32> to vector<8x32xbf16>
    %18 = arith.index_cast %arg2 : i32 to index
    %c0_11 = arith.constant 0 : index
    %c0_12 = arith.constant 0 : index
    %19 = vector.load %arg17[%18, %c0_11, %c0_12] : memref<1x8x32xbf16, #tpu.memory_space<vmem>>, vector<1x8x32xbf16>
    %20 = vector.shape_cast %19 : vector<1x8x32xbf16> to vector<8x32xbf16>
    %21 = arith.index_cast %arg2 : i32 to index
    %c0_13 = arith.constant 0 : index
    %c0_14 = arith.constant 0 : index
    %22 = vector.load %arg18[%21, %c0_13, %c0_14] : memref<1x8x32xbf16, #tpu.memory_space<vmem>>, vector<1x8x32xbf16>
    %23 = vector.shape_cast %22 : vector<1x8x32xbf16> to vector<8x32xbf16>
    %24 = vector.extract_strided_slice %17 {offsets = [0, 0], sizes = [8, 8], strides = [1, 1]} : vector<8x32xbf16> to vector<8x8xbf16>
    %25 = vector.extract_strided_slice %20 {offsets = [0, 0], sizes = [8, 8], strides = [1, 1]} : vector<8x32xbf16> to vector<8x8xbf16>
    %26 = vector.extract_strided_slice %23 {offsets = [0, 0], sizes = [8, 8], strides = [1, 1]} : vector<8x32xbf16> to vector<8x8xbf16>
    %cst_15 = arith.constant dense<0.000000e+00> : vector<8x8xf32>
    %27 = tpu.matmul %24, %25, %cst_15 {dimension_numbers = #tpu.dot_dimension_numbers<[1], [1], [0], [0], [0, 0, 1, 0], [], []>} : vector<8x8xbf16>, vector<8x8xbf16>, vector<8x8xf32> -> vector<8x8xf32>
    %cst_16 = arith.constant dense<0xFF800000> : vector<8xf32>
    %28 = vector.multi_reduction <maximumf>, %27, %cst_16 [1] : vector<8x8xf32> to vector<8xf32>
    %29 = vector.shape_cast %28 : vector<8xf32> to vector<8x1xf32>
    %30 = vector.broadcast %29 : vector<8x1xf32> to vector<8x8xf32>
    %31 = arith.subf %27, %30 : vector<8x8xf32>
    %32 = math.exp %31 : vector<8x8xf32>
    %cst_17 = arith.constant dense<0.000000e+00> : vector<8xf32>
    %33 = vector.multi_reduction <add>, %32, %cst_17 [1] : vector<8x8xf32> to vector<8xf32>
    %34 = vector.shape_cast %33 : vector<8xf32> to vector<8x1xf32>
    %35 = tpu.reciprocal %34 {approx = true} : vector<8x1xf32> -> vector<8x1xf32>
    %36 = arith.truncf %32 : vector<8x8xf32> to vector<8x8xbf16>
    %cst_18 = arith.constant dense<0.000000e+00> : vector<8x8xf32>
    %37 = tpu.matmul %36, %26, %cst_18 {dimension_numbers = #tpu.dot_dimension_numbers<[1], [0], [0], [1], [0, 0, 1, 1], [], []>} : vector<8x8xbf16>, vector<8x8xbf16>, vector<8x8xf32> -> vector<8x8xf32>
    %38 = vector.broadcast %35 : vector<8x1xf32> to vector<8x8xf32>
    %39 = arith.mulf %37, %38 : vector<8x8xf32>
    %40 = arith.truncf %39 : vector<8x8xf32> to vector<8x8xbf16>
    %c0_19 = arith.constant 0 : index
    %c0_20 = arith.constant 0 : index
    %41 = vector.load %arg19[%c0_19, %c0_20] : memref<8x32xbf16, #tpu.memory_space<vmem>>, vector<8x8xbf16>
    tpu.vector_store %arg19[%c0_19, %c0_20], %40 {strides = array<i32>} : memref<8x32xbf16, #tpu.memory_space<vmem>>, vector<8x8xbf16>,
    %42 = vector.extract_strided_slice %17 {offsets = [0, 8], sizes = [8, 8], strides = [1, 1]} : vector<8x32xbf16> to vector<8x8xbf16>
    %43 = vector.extract_strided_slice %20 {offsets = [0, 8], sizes = [8, 8], strides = [1, 1]} : vector<8x32xbf16> to vector<8x8xbf16>
    %44 = vector.extract_strided_slice %23 {offsets = [0, 8], sizes = [8, 8], strides = [1, 1]} : vector<8x32xbf16> to vector<8x8xbf16>
    %cst_21 = arith.constant dense<0.000000e+00> : vector<8x8xf32>
    %45 = tpu.matmul %42, %43, %cst_21 {dimension_numbers = #tpu.dot_dimension_numbers<[1], [1], [0], [0], [0, 0, 1, 0], [], []>} : vector<8x8xbf16>, vector<8x8xbf16>, vector<8x8xf32> -> vector<8x8xf32>
    %cst_22 = arith.constant dense<0xFF800000> : vector<8xf32>
    %46 = vector.multi_reduction <maximumf>, %45, %cst_22 [1] : vector<8x8xf32> to vector<8xf32>
    %47 = vector.shape_cast %46 : vector<8xf32> to vector<8x1xf32>
    %48 = vector.broadcast %47 : vector<8x1xf32> to vector<8x8xf32>
    %49 = arith.subf %45, %48 : vector<8x8xf32>
    %50 = math.exp %49 : vector<8x8xf32>
    %cst_23 = arith.constant dense<0.000000e+00> : vector<8xf32>
    %51 = vector.multi_reduction <add>, %50, %cst_23 [1] : vector<8x8xf32> to vector<8xf32>
    %52 = vector.shape_cast %51 : vector<8xf32> to vector<8x1xf32>
    %53 = tpu.reciprocal %52 {approx = true} : vector<8x1xf32> -> vector<8x1xf32>
    %54 = arith.truncf %50 : vector<8x8xf32> to vector<8x8xbf16>
    %cst_24 = arith.constant dense<0.000000e+00> : vector<8x8xf32>
    %55 = tpu.matmul %54, %44, %cst_24 {dimension_numbers = #tpu.dot_dimension_numbers<[1], [0], [0], [1], [0, 0, 1, 1], [], []>} : vector<8x8xbf16>, vector<8x8xbf16>, vector<8x8xf32> -> vector<8x8xf32>
    %56 = vector.broadcast %53 : vector<8x1xf32> to vector<8x8xf32>
    %57 = arith.mulf %55, %56 : vector<8x8xf32>
    %58 = arith.truncf %57 : vector<8x8xf32> to vector<8x8xbf16>
    %c0_25 = arith.constant 0 : index
    %c8 = arith.constant 8 : index
    %59 = vector.load %arg19[%c0_25, %c8] : memref<8x32xbf16, #tpu.memory_space<vmem>>, vector<8x8xbf16>
    tpu.vector_store %arg19[%c0_25, %c8], %58 {strides = array<i32>} : memref<8x32xbf16, #tpu.memory_space<vmem>>, vector<8x8xbf16>,
    %60 = vector.extract_strided_slice %17 {offsets = [0, 16], sizes = [8, 8], strides = [1, 1]} : vector<8x32xbf16> to vector<8x8xbf16>
    %61 = vector.extract_strided_slice %20 {offsets = [0, 16], sizes = [8, 8], strides = [1, 1]} : vector<8x32xbf16> to vector<8x8xbf16>
    %62 = vector.extract_strided_slice %23 {offsets = [0, 16], sizes = [8, 8], strides = [1, 1]} : vector<8x32xbf16> to vector<8x8xbf16>
    %cst_26 = arith.constant dense<0.000000e+00> : vector<8x8xf32>
    %63 = tpu.matmul %60, %61, %cst_26 {dimension_numbers = #tpu.dot_dimension_numbers<[1], [1], [0], [0], [0, 0, 1, 0], [], []>} : vector<8x8xbf16>, vector<8x8xbf16>, vector<8x8xf32> -> vector<8x8xf32>
    %cst_27 = arith.constant dense<0xFF800000> : vector<8xf32>
    %64 = vector.multi_reduction <maximumf>, %63, %cst_27 [1] : vector<8x8xf32> to vector<8xf32>
    %65 = vector.shape_cast %64 : vector<8xf32> to vector<8x1xf32>
    %66 = vector.broadcast %65 : vector<8x1xf32> to vector<8x8xf32>
    %67 = arith.subf %63, %66 : vector<8x8xf32>
    %68 = math.exp %67 : vector<8x8xf32>
    %cst_28 = arith.constant dense<0.000000e+00> : vector<8xf32>
    %69 = vector.multi_reduction <add>, %68, %cst_28 [1] : vector<8x8xf32> to vector<8xf32>
    %70 = vector.shape_cast %69 : vector<8xf32> to vector<8x1xf32>
    %71 = tpu.reciprocal %70 {approx = true} : vector<8x1xf32> -> vector<8x1xf32>
    %72 = arith.truncf %68 : vector<8x8xf32> to vector<8x8xbf16>
    %cst_29 = arith.constant dense<0.000000e+00> : vector<8x8xf32>
    %73 = tpu.matmul %72, %62, %cst_29 {dimension_numbers = #tpu.dot_dimension_numbers<[1], [0], [0], [1], [0, 0, 1, 1], [], []>} : vector<8x8xbf16>, vector<8x8xbf16>, vector<8x8xf32> -> vector<8x8xf32>
    %74 = vector.broadcast %71 : vector<8x1xf32> to vector<8x8xf32>
    %75 = arith.mulf %73, %74 : vector<8x8xf32>
    %76 = arith.truncf %75 : vector<8x8xf32> to vector<8x8xbf16>
    %c0_30 = arith.constant 0 : index
    %c16 = arith.constant 16 : index
    %77 = vector.load %arg19[%c0_30, %c16] : memref<8x32xbf16, #tpu.memory_space<vmem>>, vector<8x8xbf16>
    tpu.vector_store %arg19[%c0_30, %c16], %76 {strides = array<i32>} : memref<8x32xbf16, #tpu.memory_space<vmem>>, vector<8x8xbf16>,
    %78 = vector.extract_strided_slice %17 {offsets = [0, 24], sizes = [8, 8], strides = [1, 1]} : vector<8x32xbf16> to vector<8x8xbf16>
    %79 = vector.extract_strided_slice %20 {offsets = [0, 24], sizes = [8, 8], strides = [1, 1]} : vector<8x32xbf16> to vector<8x8xbf16>
    %80 = vector.extract_strided_slice %23 {offsets = [0, 24], sizes = [8, 8], strides = [1, 1]} : vector<8x32xbf16> to vector<8x8xbf16>
    %cst_31 = arith.constant dense<0.000000e+00> : vector<8x8xf32>
    %81 = tpu.matmul %78, %79, %cst_31 {dimension_numbers = #tpu.dot_dimension_numbers<[1], [1], [0], [0], [0, 0, 1, 0], [], []>} : vector<8x8xbf16>, vector<8x8xbf16>, vector<8x8xf32> -> vector<8x8xf32>
    %cst_32 = arith.constant dense<0xFF800000> : vector<8xf32>
    %82 = vector.multi_reduction <maximumf>, %81, %cst_32 [1] : vector<8x8xf32> to vector<8xf32>
    %83 = vector.shape_cast %82 : vector<8xf32> to vector<8x1xf32>
    %84 = vector.broadcast %83 : vector<8x1xf32> to vector<8x8xf32>
    %85 = arith.subf %81, %84 : vector<8x8xf32>
    %86 = math.exp %85 : vector<8x8xf32>
    %cst_33 = arith.constant dense<0.000000e+00> : vector<8xf32>
    %87 = vector.multi_reduction <add>, %86, %cst_33 [1] : vector<8x8xf32> to vector<8xf32>
    %88 = vector.shape_cast %87 : vector<8xf32> to vector<8x1xf32>
    %89 = tpu.reciprocal %88 {approx = true} : vector<8x1xf32> -> vector<8x1xf32>
    %90 = arith.truncf %86 : vector<8x8xf32> to vector<8x8xbf16>
    %cst_34 = arith.constant dense<0.000000e+00> : vector<8x8xf32>
    %91 = tpu.matmul %90, %80, %cst_34 {dimension_numbers = #tpu.dot_dimension_numbers<[1], [0], [0], [1], [0, 0, 1, 1], [], []>} : vector<8x8xbf16>, vector<8x8xbf16>, vector<8x8xf32> -> vector<8x8xf32>
    %92 = vector.broadcast %89 : vector<8x1xf32> to vector<8x8xf32>
    %93 = arith.mulf %91, %92 : vector<8x8xf32>
    %94 = arith.truncf %93 : vector<8x8xf32> to vector<8x8xbf16>
    %c0_35 = arith.constant 0 : index
    %c24 = arith.constant 24 : index
    %95 = vector.load %arg19[%c0_35, %c24] : memref<8x32xbf16, #tpu.memory_space<vmem>>, vector<8x8xbf16>
    tpu.vector_store %arg19[%c0_35, %c24], %94 {strides = array<i32>} : memref<8x32xbf16, #tpu.memory_space<vmem>>, vector<8x8xbf16>,
    %c0_36 = arith.constant 0 : index
    %c0_37 = arith.constant 0 : index
    %96 = vector.load %arg20[%c0_36, %c0_37] : memref<8x32xf32, #tpu.memory_space<vmem>>, vector<8x32xf32>
    %c0_38 = arith.constant 0 : index
    %c0_39 = arith.constant 0 : index
    %97 = vector.load %arg19[%c0_38, %c0_39] : memref<8x32xbf16, #tpu.memory_space<vmem>>, vector<8x32xbf16>
    %c0_40 = arith.constant 0 : index
    %c0_41 = arith.constant 0 : index
    %c0_42 = arith.constant 0 : index
    %98 = vector.load %arg11[%c0_40, %c0_41, %c0_42] : memref<1x32x32xbf16, #tpu.memory_space<vmem>>, vector<1x32x32xbf16>
    %99 = vector.shape_cast %98 : vector<1x32x32xbf16> to vector<32x32xbf16>
    %cst_43 = arith.constant dense<0.000000e+00> : vector<8x32xf32>
    %100 = tpu.matmul %97, %99, %cst_43 {dimension_numbers = #tpu.dot_dimension_numbers<[1], [0], [0], [1], [0, 0, 1, 1], [], []>} : vector<8x32xbf16>, vector<32x32xbf16>, vector<8x32xf32> -> vector<8x32xf32>
    %101 = arith.addf %96, %100 : vector<8x32xf32>
    %c0_44 = arith.constant 0 : index
    %c0_45 = arith.constant 0 : index
    %102 = vector.load %arg20[%c0_44, %c0_45] : memref<8x32xf32, #tpu.memory_space<vmem>>, vector<8x32xf32>
    tpu.vector_store %arg20[%c0_44, %c0_45], %101 {strides = array<i32>} : memref<8x32xf32, #tpu.memory_space<vmem>>, vector<8x32xf32>,
    %c0_i32_46 = arith.constant 0 : i32
    %103 = arith.cmpi eq, %arg2, %c0_i32_46 : i32
    %104 = arith.extui %103 : i1 to i32
    %c0_i32_47 = arith.constant 0 : i32
    %105 = arith.cmpi ne, %104, %c0_i32_47 : i32
    scf.if %105 {
      %c0_48 = arith.constant 0 : index
      %c0_49 = arith.constant 0 : index
      %106 = vector.load %arg20[%c0_48, %c0_49] : memref<8x32xf32, #tpu.memory_space<vmem>>, vector<8x32xf32>
      %c0_50 = arith.constant 0 : index
      %c0_51 = arith.constant 0 : index
      %c0_52 = arith.constant 0 : index
      %107 = vector.load %arg13[%c0_50, %c0_51, %c0_52] : memref<1x8x32xf32, #tpu.memory_space<vmem>>, vector<1x8x32xf32>
      %108 = vector.shape_cast %107 : vector<1x8x32xf32> to vector<8x32xf32>
      %109 = vector.shape_cast %106 : vector<8x32xf32> to vector<1x8x32xf32>
      tpu.vector_store %arg13[%c0_50, %c0_51, %c0_52], %109 {strides = array<i32>} : memref<1x8x32xf32, #tpu.memory_space<vmem>>, vector<1x8x32xf32>,
    } else {
    }
    return
  }
  func.func @transform_0(%arg0: i32, %arg1: i32, %arg2: i32) -> (i32, i32, i32) {
    %c0_i32 = arith.constant 0 : i32
    %c0_i32_0 = arith.constant 0 : i32
    return %arg0, %arg1, %c0_i32 : i32, i32, i32
  }
  func.func @transform_1(%arg0: i32, %arg1: i32, %arg2: i32) -> (i32, i32, i32) {
    %c0_i32 = arith.constant 0 : i32
    %c0_i32_0 = arith.constant 0 : i32
    %c0_i32_1 = arith.constant 0 : i32
    return %arg0, %c0_i32, %c0_i32_0 : i32, i32, i32
  }
  func.func @transform_2(%arg0: i32, %arg1: i32, %arg2: i32) -> (i32, i32, i32) {
    %c0_i32 = arith.constant 0 : i32
    %c0_i32_0 = arith.constant 0 : i32
    %c0_i32_1 = arith.constant 0 : i32
    return %arg0, %c0_i32, %c0_i32_0 : i32, i32, i32
  }
  func.func @transform_3(%arg0: i32, %arg1: i32, %arg2: i32) -> (i32, i32) {
    %c0_i32 = arith.constant 0 : i32
    %c0_i32_0 = arith.constant 0 : i32
    %c0_i32_1 = arith.constant 0 : i32
    return %c0_i32, %c0_i32_0 : i32, i32
  }
  func.func @transform_4(%arg0: i32, %arg1: i32, %arg2: i32) -> (i32, i32) {
    %c0_i32 = arith.constant 0 : i32
    %c0_i32_0 = arith.constant 0 : i32
    %c0_i32_1 = arith.constant 0 : i32
    return %c0_i32, %c0_i32_0 : i32, i32
  }
  func.func @transform_5(%arg0: i32, %arg1: i32, %arg2: i32) -> (i32, i32, i32) {
    %c0_i32 = arith.constant 0 : i32
    %c0_i32_0 = arith.constant 0 : i32
    %c0_i32_1 = arith.constant 0 : i32
    return %arg2, %c0_i32, %c0_i32_0 : i32, i32, i32
  }
  func.func @transform_6(%arg0: i32, %arg1: i32, %arg2: i32) -> (i32, i32, i32) {
    %c0_i32 = arith.constant 0 : i32
    %c0_i32_0 = arith.constant 0 : i32
    %c0_i32_1 = arith.constant 0 : i32
    return %arg2, %c0_i32, %c0_i32_0 : i32, i32, i32
  }
  func.func @transform_7(%arg0: i32, %arg1: i32, %arg2: i32) -> (i32, i32, i32) {
    %c0_i32 = arith.constant 0 : i32
    %c0_i32_0 = arith.constant 0 : i32
    %c0_i32_1 = arith.constant 0 : i32
    return %arg2, %c0_i32, %c0_i32_0 : i32, i32, i32
  }
  func.func @transform_8(%arg0: i32, %arg1: i32, %arg2: i32) -> (i32, i32, i32) {
    %c0_i32 = arith.constant 0 : i32
    %c0_i32_0 = arith.constant 0 : i32
    %c0_i32_1 = arith.constant 0 : i32
    return %arg2, %c0_i32, %c0_i32_0 : i32, i32, i32
  }
  func.func @transform_9(%arg0: i32, %arg1: i32, %arg2: i32) -> (i32, i32) {
    %c0_i32 = arith.constant 0 : i32
    %c0_i32_0 = arith.constant 0 : i32
    %c0_i32_1 = arith.constant 0 : i32
    return %c0_i32, %c0_i32_0 : i32, i32
  }
  func.func @transform_10(%arg0: i32, %arg1: i32, %arg2: i32) -> (i32, i32, i32) {
    %c0_i32 = arith.constant 0 : i32
    %c0_i32_0 = arith.constant 0 : i32
    return %arg0, %arg1, %c0_i32 : i32, i32, i32
  }
}

</mosaic_0001>

<llo_original>
// kernel: tpu_custom_call.1
$region0: #{tpu_custom_call.1}
  #allocation0 [shape = 'u32[]', space=smem, size = 0x4, offset = 0x4, fixed_abs, tag = 'smem constant byte address 0x4 - core index']
  #allocation1 [shape = 'u32[144,128]{1,0:T(1,128)}', space=vmem, size = 0x12000, scoped, tag = 'internal scratch']
  #allocation2 [shape = 'bf16[8,32]{1,0:T(8,128)(2,1)}', space=vmem, size = 0x800, scoped, tag = 'scratch operand']
  #allocation3 [shape = 'bf16[8,32]{1,0:T(8,128)(2,1)}', space=vmem, size = 0x800, scoped, tag = 'scratch operand']
  #allocation4 [shape = 'bf16[8,32]{1,0:T(8,128)(2,1)}', space=vmem, size = 0x800, scoped, tag = 'scratch operand']
  #allocation5 [shape = 'bf16[1,8,32]{2,1,0:T(8,128)(2,1)}', space=vmem, size = 0x800, scoped, tag = 'scratch operand']
  #allocation6 [shape = 'bf16[1,8,32]{2,1,0:T(8,128)(2,1)}', space=vmem, size = 0x800, scoped, tag = 'scratch operand']
  #allocation7 [shape = 'bf16[8,32]{1,0:T(8,128)(2,1)}', space=vmem, size = 0x800, scoped, tag = 'scratch operand']
  #allocation8 [shape = 'f32[8,32]{1,0:T(8,128)}', space=vmem, size = 0x1000, scoped, tag = 'scratch operand']
  %s0 = inlined_call_operand.hbm [shape: f32[2,8,32], index: 0, kind: input, shape index: {}]
  %s1 = inlined_call_operand.hbm [shape: f32[2,8,32], index: 1, kind: input, shape index: {}]
  %s2 = inlined_call_operand.hbm [shape: f32[2,8,32], index: 2, kind: input, shape index: {}]
  %s3 = inlined_call_operand.vmem [shape: f32[1,32], index: 3, kind: input, shape index: {}]
  %s4 = inlined_call_operand.vmem [shape: f32[1,32], index: 4, kind: input, shape index: {}]
  %s5 = inlined_call_operand.vmem [shape: bf16[1,32,32], index: 5, kind: input, shape index: {}]
  %s6 = inlined_call_operand.hbm [shape: bf16[1,32,32], index: 6, kind: input, shape index: {}]
  %s7 = inlined_call_operand.hbm [shape: bf16[1,32,32], index: 7, kind: input, shape index: {}]
  %s8 = inlined_call_operand.hbm [shape: bf16[1,32,32], index: 8, kind: input, shape index: {}]
  %s9 = inlined_call_operand.vmem [shape: f32[1,32], index: 9, kind: input, shape index: {}]
  %s10 = inlined_call_operand.hbm [shape: f32[2,8,32], index: 10, kind: output, shape index: {}]
  %s11 = sld [smem:[#allocation0]]
  $region113: #{tpu_custom_call.1} parent=0
    _
  %s13 = ssub.s32 1, %s11
  %s14 = scalar_select 0, %s13, %s11
  $region1: #{tpu_custom_call.1} parent=0
    #allocation9 [shape = 'u8[8192]{0}', space=vmem, size = 0x2000, scoped, tag = 'input window, operand 0']
    #allocation10 [shape = 's32[2]{0}', space=sflag, size = 0x8, scoped, tag = 'scoped memory for tpu_custom_call.1']
    #allocation11 [shape = 's32[2]{0}', space=sflag, size = 0x8, scoped, tag = 'scoped memory for tpu_custom_call.1']
    #allocation12 [shape = 'u8[4096]{0}', space=vmem, size = 0x1000, scoped, tag = 'input window, operand 1, single buffered']
    #allocation13 [shape = 's32[1]{0}', space=sflag, size = 0x4, scoped, tag = 'scoped memory for tpu_custom_call.1']
    #allocation14 [shape = 'u8[4096]{0}', space=vmem, size = 0x1000, scoped, tag = 'input window, operand 2, single buffered']
    #allocation15 [shape = 'u8[8192]{0}', space=vmem, size = 0x2000, scoped, tag = 'input window, operand 6, single buffered']
    #allocation16 [shape = 's32[1]{0}', space=sflag, size = 0x4, scoped, tag = 'scoped memory for tpu_custom_call.1']
    #allocation17 [shape = 'u8[8192]{0}', space=vmem, size = 0x2000, scoped, tag = 'input window, operand 7, single buffered']
    #allocation18 [shape = 'u8[8192]{0}', space=vmem, size = 0x2000, scoped, tag = 'input window, operand 8, single buffered']
    #allocation19 [shape = 's32[1]{0}', space=sflag, size = 0x4, scoped, tag = 'scoped memory for tpu_custom_call.1']
    #allocation20 [shape = 'u8[8192]{0}', space=vmem, size = 0x2000, scoped, tag = 'output window, operand 0']
    %15 = vsyncpa [#allocation10], 0
    %s16 = scalar_lea.sflag [#allocation10], 1
    %17 = vsyncpa %s16, 0
    %18 = vsyncpa [#allocation13], 0
    %19 = vsyncpa [#allocation16], 0
    %20 = vsyncpa [#allocation19], 0
    %21 = vsyncpa [#allocation11], 0
    %s22 = scalar_lea.sflag [#allocation11], 1
    %23 = vsyncpa %s22, 0
    loop: start=0, step=1, limit=4
    $region2: #{tpu_custom_call.1} parent=1 // loop_pre_header
      _
    $region3: #{tpu_custom_call.1} parent=1 // loop_header
      %s25 = sphi 0, %s29
      %p26 = scmp.ge.s32.totalorder %s25, 4
      %s32 = sphi 0, %s51
      %s33 = sphi 0, %s47
      %s34 = sphi 0, %s43
      %s35 = sphi 0, %s32
      %s36 = sphi 0, %s33
      %s37 = sphi 0, %s34
      %s38 = sphi 0, %s35
      %s39 = sphi 0, %s36
      %s40 = sphi 0, %s37
      %s56 = sphi 0, %s58
      %s59 = sphi 0, %s56
      %s60 = sphi 0, %s59
      %s76 = sphi 0, %s60
      %s82 = sphi 0, %s84
      %s85 = sphi 0, %s82
      %s86 = sphi 0, %s85
      %s102 = sphi 0, %s86
      %s108 = sphi 0, %s110
      %s111 = sphi 0, %s108
      %s112 = sphi 0, %s111
      %s128 = sphi 0, %s112
      %s132 = sphi 0, %s132
      %s134 = sphi 0, %s132
      %s135 = sphi 0, %s134
      %s149 = sphi 0, %s135
      %s153 = sphi 0, %s153
      %s155 = sphi 0, %s153
      %s156 = sphi 0, %s155
      %s170 = sphi 0, %s156
      %s176 = sphi 0, %s178
      %s179 = sphi 0, %s176
      %s180 = sphi 0, %s179
      %s196 = sphi 0, %s180
      %s202 = sphi 0, %s204
      %s205 = sphi 0, %s202
      %s206 = sphi 0, %s205
      %s222 = sphi 0, %s206
      %s228 = sphi 0, %s230
      %s231 = sphi 0, %s228
      %s232 = sphi 0, %s231
      %s248 = sphi 0, %s232
      %s254 = sphi 0, %s256
      %s257 = sphi 0, %s254
      %s258 = sphi 0, %s257
      %s274 = sphi 0, %s258
      %s278 = sphi 0, %s278
      %s280 = sphi 0, %s278
      %s281 = sphi 0, %s280
      %s295 = sphi 0, %s281
      %s303 = sphi 0, %s305
      %s306 = sphi 0, %s303
      %s307 = sphi 0, %s306
      %s323 = sphi 0, %s307
    $region4: #{tpu_custom_call.1} parent=1 // loop_header_branch
      %28 = sbr.rel (%p26) target = $region8
    $region5: #{tpu_custom_call.1} parent=1 // loop_body
      %s30 = ssub.s32 %s25, 1
      %s31 = ssub.s32 %s25, 2
      %s41 = sadd.s32 1, %s34
      %p42 = scmp.ge.s32.totalorder %s41, 1
      %s43 = scalar_select %p42, 0, %s41
      %s44 = sadd.s32 1, %s33
      %s45 = scalar_select %p42, %s44, %s33
      %p46 = scmp.ge.s32.totalorder %s45, 1
      %s47 = scalar_select %p46, 0, %s45
      %s48 = sadd.s32 1, %s32
      %s49 = scalar_select %p46, %s48, %s32
      %p50 = scmp.ge.s32.totalorder %s49, 2
      %s51 = scalar_select %p50, 0, %s49
      %s52 = ssub.s32 %s32, %s51
      %s53 = ssub.s32 %s33, %s47
      %s54 = sor.u32 %s52, %s53
      %p55 = scmp.eq.s32.totalorder %s54, 0
      %s57 = sadd.s32 %s56, 1
      %s58 = scalar_select %p55, %s56, %s57
      %p61 = pneg %p55
      %p62 = scmp.eq.s32.totalorder %s25, 1
      %p63 = por %p61, %p62
      %p64 = scmp.ne.s32.totalorder %s56, %s59
      %p65 = scmp.eq.s32.totalorder %s25, 0
      %p66 = por %p64, %p65
      %p67 = scmp.ne.s32.totalorder %s56, %s59
      %p68 = scmp.eq.s32.totalorder %s30, 1
      %p69 = por %p67, %p68
      %p70 = scmp.ne.s32.totalorder %s59, %s60
      %p71 = scmp.eq.s32.totalorder %s30, 0
      %p72 = por %p70, %p71
      %p73 = scmp.ne.s32.totalorder %s59, %s60
      %p74 = scmp.eq.s32.totalorder %s31, 1
      %p75 = por %p73, %p74
      %p77 = scmp.ne.s32.totalorder %s60, %s76
      %p78 = scmp.eq.s32.totalorder %s31, 0
      %p79 = por %p77, %p78
      %s80 = ssub.s32 %s32, %s51
      %p81 = scmp.eq.s32.totalorder %s80, 0
      %s83 = sadd.s32 %s82, 1
      %s84 = scalar_select %p81, %s82, %s83
      %p87 = pneg %p81
      %p88 = scmp.eq.s32.totalorder %s25, 1
      %p89 = por %p87, %p88
      %p90 = scmp.ne.s32.totalorder %s82, %s85
      %p91 = scmp.eq.s32.totalorder %s25, 0
      %p92 = por %p90, %p91
      %p93 = scmp.ne.s32.totalorder %s82, %s85
      %p94 = scmp.eq.s32.totalorder %s30, 1
      %p95 = por %p93, %p94
      %p96 = scmp.ne.s32.totalorder %s85, %s86
      %p97 = scmp.eq.s32.totalorder %s30, 0
      %p98 = por %p96, %p97
      %p99 = scmp.ne.s32.totalorder %s85, %s86
      %p100 = scmp.eq.s32.totalorder %s31, 1
      %p101 = por %p99, %p100
      %p103 = scmp.ne.s32.totalorder %s86, %s102
      %p104 = scmp.eq.s32.totalorder %s31, 0
      %p105 = por %p103, %p104
      %s106 = ssub.s32 %s32, %s51
      %p107 = scmp.eq.s32.totalorder %s106, 0
      %s109 = sadd.s32 %s108, 1
      %s110 = scalar_select %p107, %s108, %s109
      %p113 = pneg %p107
      %p114 = scmp.eq.s32.totalorder %s25, 1
      %p115 = por %p113, %p114
      %p116 = scmp.ne.s32.totalorder %s108, %s111
      %p117 = scmp.eq.s32.totalorder %s25, 0
      %p118 = por %p116, %p117
      %p119 = scmp.ne.s32.totalorder %s108, %s111
      %p120 = scmp.eq.s32.totalorder %s30, 1
      %p121 = por %p119, %p120
      %p122 = scmp.ne.s32.totalorder %s111, %s112
      %p123 = scmp.eq.s32.totalorder %s30, 0
      %p124 = por %p122, %p123
      %p125 = scmp.ne.s32.totalorder %s111, %s112
      %p126 = scmp.eq.s32.totalorder %s31, 1
      %p127 = por %p125, %p126
      %p129 = scmp.ne.s32.totalorder %s112, %s128
      %p130 = scmp.eq.s32.totalorder %s31, 0
      %p131 = por %p129, %p130
      %s133 = sadd.s32 %s132, 1
      %p136 = scmp.eq.s32.totalorder %s25, 1
      %p137 = scmp.ne.s32.totalorder %s132, %s134
      %p138 = scmp.eq.s32.totalorder %s25, 0
      %p139 = por %p137, %p138
      %p140 = scmp.ne.s32.totalorder %s132, %s134
      %p141 = scmp.eq.s32.totalorder %s30, 1
      %p142 = por %p140, %p141
      %p143 = scmp.ne.s32.totalorder %s134, %s135
      %p144 = scmp.eq.s32.totalorder %s30, 0
      %p145 = por %p143, %p144
      %p146 = scmp.ne.s32.totalorder %s134, %s135
      %p147 = scmp.eq.s32.totalorder %s31, 1
      %p148 = por %p146, %p147
      %p150 = scmp.ne.s32.totalorder %s135, %s149
      %p151 = scmp.eq.s32.totalorder %s31, 0
      %p152 = por %p150, %p151
      %s154 = sadd.s32 %s153, 1
      %p157 = scmp.eq.s32.totalorder %s25, 1
      %p158 = scmp.ne.s32.totalorder %s153, %s155
      %p159 = scmp.eq.s32.totalorder %s25, 0
      %p160 = por %p158, %p159
      %p161 = scmp.ne.s32.totalorder %s153, %s155
      %p162 = scmp.eq.s32.totalorder %s30, 1
      %p163 = por %p161, %p162
      %p164 = scmp.ne.s32.totalorder %s155, %s156
      %p165 = scmp.eq.s32.totalorder %s30, 0
      %p166 = por %p164, %p165
      %p167 = scmp.ne.s32.totalorder %s155, %s156
      %p168 = scmp.eq.s32.totalorder %s31, 1
      %p169 = por %p167, %p168
      %p171 = scmp.ne.s32.totalorder %s156, %s170
      %p172 = scmp.eq.s32.totalorder %s31, 0
      %p173 = por %p171, %p172
      %s174 = ssub.s32 %s34, %s43
      %p175 = scmp.eq.s32.totalorder %s174, 0
      %s177 = sadd.s32 %s176, 1
      %s178 = scalar_select %p175, %s176, %s177
      %p181 = pneg %p175
      %p182 = scmp.eq.s32.totalorder %s25, 1
      %p183 = por %p181, %p182
      %p184 = scmp.ne.s32.totalorder %s176, %s179
      %p185 = scmp.eq.s32.totalorder %s25, 0
      %p186 = por %p184, %p185
      %p187 = scmp.ne.s32.totalorder %s176, %s179
      %p188 = scmp.eq.s32.totalorder %s30, 1
      %p189 = por %p187, %p188
      %p190 = scmp.ne.s32.totalorder %s179, %s180
      %p191 = scmp.eq.s32.totalorder %s30, 0
      %p192 = por %p190, %p191
      %p193 = scmp.ne.s32.totalorder %s179, %s180
      %p194 = scmp.eq.s32.totalorder %s31, 1
      %p195 = por %p193, %p194
      %p197 = scmp.ne.s32.totalorder %s180, %s196
      %p198 = scmp.eq.s32.totalorder %s31, 0
      %p199 = por %p197, %p198
      %s200 = ssub.s32 %s34, %s43
      %p201 = scmp.eq.s32.totalorder %s200, 0
      %s203 = sadd.s32 %s202, 1
      %s204 = scalar_select %p201, %s202, %s203
      %p207 = pneg %p201
      %p208 = scmp.eq.s32.totalorder %s25, 1
      %p209 = por %p207, %p208
      %p210 = scmp.ne.s32.totalorder %s202, %s205
      %p211 = scmp.eq.s32.totalorder %s25, 0
      %p212 = por %p210, %p211
      %p213 = scmp.ne.s32.totalorder %s202, %s205
      %p214 = scmp.eq.s32.totalorder %s30, 1
      %p215 = por %p213, %p214
      %p216 = scmp.ne.s32.totalorder %s205, %s206
      %p217 = scmp.eq.s32.totalorder %s30, 0
      %p218 = por %p216, %p217
      %p219 = scmp.ne.s32.totalorder %s205, %s206
      %p220 = scmp.eq.s32.totalorder %s31, 1
      %p221 = por %p219, %p220
      %p223 = scmp.ne.s32.totalorder %s206, %s222
      %p224 = scmp.eq.s32.totalorder %s31, 0
      %p225 = por %p223, %p224
      %s226 = ssub.s32 %s34, %s43
      %p227 = scmp.eq.s32.totalorder %s226, 0
      %s229 = sadd.s32 %s228, 1
      %s230 = scalar_select %p227, %s228, %s229
      %p233 = pneg %p227
      %p234 = scmp.eq.s32.totalorder %s25, 1
      %p235 = por %p233, %p234
      %p236 = scmp.ne.s32.totalorder %s228, %s231
      %p237 = scmp.eq.s32.totalorder %s25, 0
      %p238 = por %p236, %p237
      %p239 = scmp.ne.s32.totalorder %s228, %s231
      %p240 = scmp.eq.s32.totalorder %s30, 1
      %p241 = por %p239, %p240
      %p242 = scmp.ne.s32.totalorder %s231, %s232
      %p243 = scmp.eq.s32.totalorder %s30, 0
      %p244 = por %p242, %p243
      %p245 = scmp.ne.s32.totalorder %s231, %s232
      %p246 = scmp.eq.s32.totalorder %s31, 1
      %p247 = por %p245, %p246
      %p249 = scmp.ne.s32.totalorder %s232, %s248
      %p250 = scmp.eq.s32.totalorder %s31, 0
      %p251 = por %p249, %p250
      %s252 = ssub.s32 %s34, %s43
      %p253 = scmp.eq.s32.totalorder %s252, 0
      %s255 = sadd.s32 %s254, 1
      %s256 = scalar_select %p253, %s254, %s255
      %p259 = pneg %p253
      %p260 = scmp.eq.s32.totalorder %s25, 1
      %p261 = por %p259, %p260
      %p262 = scmp.ne.s32.totalorder %s254, %s257
      %p263 = scmp.eq.s32.totalorder %s25, 0
      %p264 = por %p262, %p263
      %p265 = scmp.ne.s32.totalorder %s254, %s257
      %p266 = scmp.eq.s32.totalorder %s30, 1
      %p267 = por %p265, %p266
      %p268 = scmp.ne.s32.totalorder %s257, %s258
      %p269 = scmp.eq.s32.totalorder %s30, 0
      %p270 = por %p268, %p269
      %p271 = scmp.ne.s32.totalorder %s257, %s258
      %p272 = scmp.eq.s32.totalorder %s31, 1
      %p273 = por %p271, %p272
      %p275 = scmp.ne.s32.totalorder %s258, %s274
      %p276 = scmp.eq.s32.totalorder %s31, 0
      %p277 = por %p275, %p276
      %s279 = sadd.s32 %s278, 1
      %p282 = scmp.eq.s32.totalorder %s25, 1
      %p283 = scmp.ne.s32.totalorder %s278, %s280
      %p284 = scmp.eq.s32.totalorder %s25, 0
      %p285 = por %p283, %p284
      %p286 = scmp.ne.s32.totalorder %s278, %s280
      %p287 = scmp.eq.s32.totalorder %s30, 1
      %p288 = por %p286, %p287
      %p289 = scmp.ne.s32.totalorder %s280, %s281
      %p290 = scmp.eq.s32.totalorder %s30, 0
      %p291 = por %p289, %p290
      %p292 = scmp.ne.s32.totalorder %s280, %s281
      %p293 = scmp.eq.s32.totalorder %s31, 1
      %p294 = por %p292, %p293
      %p296 = scmp.ne.s32.totalorder %s281, %s295
      %p297 = scmp.eq.s32.totalorder %s31, 0
      %p298 = por %p296, %p297
      %s299 = ssub.s32 %s32, %s51
      %s300 = ssub.s32 %s33, %s47
      %s301 = sor.u32 %s299, %s300
      %p302 = scmp.eq.s32.totalorder %s301, 0
      %s304 = sadd.s32 %s303, 1
      %s305 = scalar_select %p302, %s303, %s304
      %p308 = pneg %p302
      %p309 = scmp.eq.s32.totalorder %s25, 1
      %p310 = por %p308, %p309
      %p311 = scmp.ne.s32.totalorder %s303, %s306
      %p312 = scmp.eq.s32.totalorder %s25, 0
      %p313 = por %p311, %p312
      %p314 = scmp.ne.s32.totalorder %s303, %s306
      %p315 = scmp.eq.s32.totalorder %s30, 1
      %p316 = por %p314, %p315
      %p317 = scmp.ne.s32.totalorder %s306, %s307
      %p318 = scmp.eq.s32.totalorder %s30, 0
      %p319 = por %p317, %p318
      %p320 = scmp.ne.s32.totalorder %s306, %s307
      %p321 = scmp.eq.s32.totalorder %s31, 1
      %p322 = por %p320, %p321
      %p324 = scmp.ne.s32.totalorder %s307, %s323
      %p325 = scmp.eq.s32.totalorder %s31, 0
      %p326 = por %p324, %p325
      %p327 = scmp.le.s32.totalorder 1, %s25
      %p328 = scmp.lt.s32.totalorder %s25, 3
      %p329 = pnand %p327, %p328
      %p330 = pneg %p329
      // Predicated region
      $region9: #{tpu_custom_call.1} parent=5 // pred_check
        _
      $region10: #{tpu_custom_call.1} parent=5 // pred_check_branch
        %332 = sbr.rel (%p329) target = $region12
      $region11: #{tpu_custom_call.1} parent=5 // pred_region
        %s333 = ssub.s32 %s25, 1
        // Predicated region
        $region13: #{tpu_custom_call.1} parent=11 // pred_check
          %p334 = pneg %p98
        $region14: #{tpu_custom_call.1} parent=11 // pred_check_branch
          %336 = sbr.rel (%p334) target = $region16
        $region15: #{tpu_custom_call.1} parent=11 // pred_region
          %s338 = ssub.s32 128, 128
          %339 = vsyncadd [#allocation13], %s338
          %s340 = smul.addr %s35, 128
          %s341 = scalar_lea.hbm %s1, %s340
          %s343 = sshll.u32 [#allocation12], 4
          %s344 = int_to_ptr.vmem [resolvable:$true] %s343
          %346 = dma.hbm_to_vmem [thread:$0]  %s341, 128, %s344, [#allocation13]
        $region16: #{tpu_custom_call.1} parent=11 // pred_fallthru
          _
        // Predicated region
        $region17: #{tpu_custom_call.1} parent=11 // pred_check
          %p347 = pneg %p124
        $region18: #{tpu_custom_call.1} parent=11 // pred_check_branch
          %349 = sbr.rel (%p347) target = $region20
        $region19: #{tpu_custom_call.1} parent=11 // pred_region
          %s351 = ssub.s32 128, 128
          %352 = vsyncadd [#allocation13], %s351
          %s353 = smul.addr %s35, 128
          %s354 = scalar_lea.hbm %s2, %s353
          %s356 = sshll.u32 [#allocation14], 4
          %s357 = int_to_ptr.vmem [resolvable:$true] %s356
          %359 = dma.hbm_to_vmem [thread:$0]  %s354, 128, %s357, [#allocation13]
        $region20: #{tpu_custom_call.1} parent=11 // pred_fallthru
          _
        // Predicated region
        $region21: #{tpu_custom_call.1} parent=11 // pred_check
          %p360 = pneg %p145
        $region22: #{tpu_custom_call.1} parent=11 // pred_check_branch
          %362 = sbr.rel (%p360) target = $region24
        $region23: #{tpu_custom_call.1} parent=11 // pred_region
          _
        $region24: #{tpu_custom_call.1} parent=11 // pred_fallthru
          _
        // Predicated region
        $region25: #{tpu_custom_call.1} parent=11 // pred_check
          %p363 = pneg %p166
        $region26: #{tpu_custom_call.1} parent=11 // pred_check_branch
          %365 = sbr.rel (%p363) target = $region28
        $region27: #{tpu_custom_call.1} parent=11 // pred_region
          _
        $region28: #{tpu_custom_call.1} parent=11 // pred_fallthru
          _
        // Predicated region
        $region29: #{tpu_custom_call.1} parent=11 // pred_check
          %p366 = pneg %p192
        $region30: #{tpu_custom_call.1} parent=11 // pred_check_branch
          %368 = sbr.rel (%p366) target = $region32
        $region31: #{tpu_custom_call.1} parent=11 // pred_region
          %p369 = scmp.lt.s32.totalorder %s37, 0
          %s370 = scalar_select %p369, %s37, 0
          %s371 = smul.addr %s370, 4
          %s372 = smul.addr %s371, 4
          %s373 = scalar_lea.vmem %s5, %s372
        $region32: #{tpu_custom_call.1} parent=11 // pred_fallthru
          _
        // Predicated region
        $region33: #{tpu_custom_call.1} parent=11 // pred_check
          %p374 = pneg %p218
        $region34: #{tpu_custom_call.1} parent=11 // pred_check_branch
          %376 = sbr.rel (%p374) target = $region36
        $region35: #{tpu_custom_call.1} parent=11 // pred_region
          %s378 = ssub.s32 256, 256
          %379 = vsyncadd [#allocation16], %s378
          %s380 = smul.addr %s37, 4
          %s381 = smul.addr %s380, 64
          %s382 = scalar_lea.hbm %s6, %s381
          %s383 = sshll.u32 [#allocation15], 4
          %s384 = int_to_ptr.vmem [resolvable:$true] %s383
          %389 = dma.hbm_to_vmem [thread:$0]  %s382, 256, %s384, [#allocation16], 64, 64, 4
        $region36: #{tpu_custom_call.1} parent=11 // pred_fallthru
          _
        // Predicated region
        $region37: #{tpu_custom_call.1} parent=11 // pred_check
          %p390 = pneg %p244
        $region38: #{tpu_custom_call.1} parent=11 // pred_check_branch
          %392 = sbr.rel (%p390) target = $region40
        $region39: #{tpu_custom_call.1} parent=11 // pred_region
          %s394 = ssub.s32 256, 256
          %395 = vsyncadd [#allocation16], %s394
          %s396 = smul.addr %s37, 4
          %s397 = smul.addr %s396, 64
          %s398 = scalar_lea.hbm %s7, %s397
          %s399 = sshll.u32 [#allocation17], 4
          %s400 = int_to_ptr.vmem [resolvable:$true] %s399
          %405 = dma.hbm_to_vmem [thread:$0]  %s398, 256, %s400, [#allocation16], 64, 64, 4
        $region40: #{tpu_custom_call.1} parent=11 // pred_fallthru
          _
        // Predicated region
        $region41: #{tpu_custom_call.1} parent=11 // pred_check
          %p406 = pneg %p270
        $region42: #{tpu_custom_call.1} parent=11 // pred_check_branch
          %408 = sbr.rel (%p406) target = $region44
        $region43: #{tpu_custom_call.1} parent=11 // pred_region
          %s410 = ssub.s32 256, 256
          %411 = vsyncadd [#allocation19], %s410
          %s412 = smul.addr %s37, 4
          %s413 = smul.addr %s412, 64
          %s414 = scalar_lea.hbm %s8, %s413
          %s415 = sshll.u32 [#allocation18], 4
          %s416 = int_to_ptr.vmem [resolvable:$true] %s415
          %421 = dma.hbm_to_vmem [thread:$0]  %s414, 256, %s416, [#allocation19], 64, 64, 4
        $region44: #{tpu_custom_call.1} parent=11 // pred_fallthru
          _
        // Predicated region
        $region45: #{tpu_custom_call.1} parent=11 // pred_check
          %p422 = pneg %p291
        $region46: #{tpu_custom_call.1} parent=11 // pred_check_branch
          %424 = sbr.rel (%p422) target = $region48
        $region47: #{tpu_custom_call.1} parent=11 // pred_region
          _
        $region48: #{tpu_custom_call.1} parent=11 // pred_fallthru
          _
      $region12: #{tpu_custom_call.1} parent=5 // pred_fallthru
        _
      %p425 = scmp.lt.s32.totalorder %s25, 2
      // Predicated region
      $region49: #{tpu_custom_call.1} parent=5 // pred_check
        %p426 = pneg %p425
      $region50: #{tpu_custom_call.1} parent=5 // pred_check_branch
        %428 = sbr.rel (%p426) target = $region52
      $region51: #{tpu_custom_call.1} parent=5 // pred_region
        // Predicated region
        $region53: #{tpu_custom_call.1} parent=51 // pred_check
          %p429 = pneg %p66
        $region54: #{tpu_custom_call.1} parent=51 // pred_check_branch
          %431 = sbr.rel (%p429) target = $region56
        $region55: #{tpu_custom_call.1} parent=51 // pred_region
          %s432 = sand.u32 %s56, 1
          %s433 = scalar_lea.sflag [#allocation10], %s432
          %s434 = sand.u32 %s56, 1
          %s435 = smul.addr %s434, 8
          %s436 = scalar_lea.vmem [#allocation9], %s435
          %s438 = ssub.s32 128, 128
          %439 = vsyncadd %s433, %s438
          %s440 = sadd.s32 %s33, %s32
          %s441 = smul.addr %s440, 128
          %s442 = scalar_lea.hbm %s0, %s441
          %s444 = sshll.u32 %s436, 4
          %s445 = int_to_ptr.vmem [resolvable:$true] %s444
          %447 = dma.hbm_to_vmem [thread:$0]  %s442, 128, %s445, %s433
        $region56: #{tpu_custom_call.1} parent=51 // pred_fallthru
          _
      $region52: #{tpu_custom_call.1} parent=5 // pred_fallthru
        _
      %p448 = scmp.le.s32.totalorder 1, %s25
      %p449 = scmp.lt.s32.totalorder %s25, 3
      %p450 = pnand %p448, %p449
      %p451 = pneg %p450
      // Predicated region
      $region57: #{tpu_custom_call.1} parent=5 // pred_check
        _
      $region58: #{tpu_custom_call.1} parent=5 // pred_check_branch
        %453 = sbr.rel (%p450) target = $region60
      $region59: #{tpu_custom_call.1} parent=5 // pred_region
        %s454 = ssub.s32 %s25, 1
        %s455 = sand.u32 %s59, 1
        %s456 = scalar_lea.sflag [#allocation10], %s455
        %s457 = sand.u32 %s59, 1
        %s458 = smul.addr %s457, 8
        %s459 = scalar_lea.vmem [#allocation9], %s458
        // Predicated region
        $region61: #{tpu_custom_call.1} parent=59 // pred_check
          %p460 = pneg %p72
        $region62: #{tpu_custom_call.1} parent=59 // pred_check_branch
          %462 = sbr.rel (%p460) target = $region64
        $region63: #{tpu_custom_call.1} parent=59 // pred_region
          %463 = dma.done %s456, 128
        $region64: #{tpu_custom_call.1} parent=59 // pred_fallthru
          _
        // Predicated region
        $region65: #{tpu_custom_call.1} parent=59 // pred_check
          %p464 = pneg %p98
        $region66: #{tpu_custom_call.1} parent=59 // pred_check_branch
          %466 = sbr.rel (%p464) target = $region68
        $region67: #{tpu_custom_call.1} parent=59 // pred_region
          %467 = dma.done [#allocation13], 128
        $region68: #{tpu_custom_call.1} parent=59 // pred_fallthru
          _
        // Predicated region
        $region69: #{tpu_custom_call.1} parent=59 // pred_check
          %p468 = pneg %p124
        $region70: #{tpu_custom_call.1} parent=59 // pred_check_branch
          %470 = sbr.rel (%p468) target = $region72
        $region71: #{tpu_custom_call.1} parent=59 // pred_region
          %471 = dma.done [#allocation13], 128
        $region72: #{tpu_custom_call.1} parent=59 // pred_fallthru
          _
        // Predicated region
        $region73: #{tpu_custom_call.1} parent=59 // pred_check
          %p472 = pneg %p218
        $region74: #{tpu_custom_call.1} parent=59 // pred_check_branch
          %474 = sbr.rel (%p472) target = $region76
        $region75: #{tpu_custom_call.1} parent=59 // pred_region
          %475 = dma.done [#allocation16], 256
        $region76: #{tpu_custom_call.1} parent=59 // pred_fallthru
          _
        // Predicated region
        $region77: #{tpu_custom_call.1} parent=59 // pred_check
          %p476 = pneg %p244
        $region78: #{tpu_custom_call.1} parent=59 // pred_check_branch
          %478 = sbr.rel (%p476) target = $region80
        $region79: #{tpu_custom_call.1} parent=59 // pred_region
          %479 = dma.done [#allocation16], 256
        $region80: #{tpu_custom_call.1} parent=59 // pred_fallthru
          _
        // Predicated region
        $region81: #{tpu_custom_call.1} parent=59 // pred_check
          %p480 = pneg %p270
        $region82: #{tpu_custom_call.1} parent=59 // pred_check_branch
          %482 = sbr.rel (%p480) target = $region84
        $region83: #{tpu_custom_call.1} parent=59 // pred_region
          %483 = dma.done [#allocation19], 256
        $region84: #{tpu_custom_call.1} parent=59 // pred_fallthru
          _
        %s484 = sand.u32 %s59, 1
        %s485 = scalar_lea.sflag [#allocation10], %s484
        %s486 = sand.u32 %s59, 1
        %s487 = smul.addr %s486, 8
        %s488 = scalar_lea.vmem [#allocation9], %s487
        %p489 = pneg %p72
        %p490 = pneg %p69
        %p491 = pneg %p98
        %p492 = pneg %p95
        %p493 = pneg %p124
        %p494 = pneg %p121
        %p495 = pneg %p145
        %p496 = pneg %p142
        %p497 = pneg %p166
        %p498 = pneg %p163
        %p499 = scmp.lt.s32.totalorder %s37, 0
        %s500 = scalar_select %p499, %s37, 0
        %s501 = smul.addr %s500, 4
        %s502 = smul.addr %s501, 4
        %s503 = scalar_lea.vmem %s5, %s502
        %p504 = pneg %p192
        %p505 = pneg %p189
        %p506 = pneg %p218
        %p507 = pneg %p215
        %p508 = pneg %p244
        %p509 = pneg %p241
        %p510 = pneg %p270
        %p511 = pneg %p267
        %p512 = pneg %p291
        %p513 = pneg %p288
        %p514 = pneg %p319
        %p515 = pneg %p316
        %s516 = sand.u32 %s306, 1
        %s517 = scalar_lea.sflag [#allocation11], %s516
        %s518 = sand.u32 %s306, 1
        %s519 = smul.addr %s518, 8
        %s520 = scalar_lea.vmem [#allocation20], %s519
        %p521 = scmp.lt.s32.totalorder %s37, 0
        %s522 = scalar_select %p521, %s37, 0
        %s523 = smul.addr %s522, 4
        %s524 = smul.addr %s523, 4
        %s525 = scalar_lea.vmem %s5, %s524
        %p527 = scmp.eq.s32.totalorder %s36, 0
        %p528 = scmp.eq.s32.totalorder %s37, 0
        %p529 = pnand %p527, %p528
        %p530 = pneg %p529
        // Predicated region
        $region85: #{tpu_custom_call.1} parent=59 // pred_check
          _
        $region86: #{tpu_custom_call.1} parent=59 // pred_check_branch
          %532 = sbr.rel (%p529) target = $region88
        $region87: #{tpu_custom_call.1} parent=59 // pred_region
          %v533 = vld [vmem:[#allocation12] sm:$0xff]
          %vm534 = vcmask 261120
          %v535 = vsel %vm534, %v533, 0.0
          %536 = vadd.xlane.f32.xlu0 %v535
          %v537 = vpop.xlane.xlu0 %536
          %v538 = vrcp.pop 32.0
          %v539 = vmul.f32 %v537, %v538
          %v540 = vsub.f32 %v533, %v539
          %v541 = vmul.f32 %v540, %v540
          %v542 = vsel %vm534, %v541, 0.0
          %543 = vadd.xlane.f32.xlu0 %v542
          %v544 = vpop.xlane.xlu0 %543
          %v545 = vmul.f32 %v544, %v538
          %v546 = vadd.f32 %v545, 1e-05
          %v547 = vrsqrt.pop %v546
          %v548 = vmul.f32 %v540, %v547
          %v549 = vld [vmem:[%s3] sm:$0x1]
          %v551 = vlaneseq
          %v552 = vshrl.u32 %v551, 7
          %v553 = vsub.s32 0, %v552
          %v554 = vrot.slane %v549, %v553
          %v556 = vmul.f32 %v548, %v554
          %v557 = vld [vmem:[%s4] sm:$0x1]
          %v559 = vlaneseq
          %v560 = vshrl.u32 %v559, 7
          %v561 = vsub.s32 0, %v560
          %v562 = vrot.slane %v557, %v561
          %v564 = vadd.f32 %v556, %v562
          %v565 = vpack.c.bf16 %v564, %v564
          %vm566 = vcmask 257024
          %567 = vst.msk [vmem:[#allocation3] sm:$0xf] %vm566, %v565
          %v568 = vld [vmem:[#allocation14] sm:$0xff]
          %v569 = vsel %vm534, %v568, 0.0
          %570 = vadd.xlane.f32.xlu0 %v569
          %v571 = vpop.xlane.xlu0 %570
          %v572 = vmul.f32 %v571, %v538
          %v573 = vsub.f32 %v568, %v572
          %v574 = vmul.f32 %v573, %v573
          %v575 = vsel %vm534, %v574, 0.0
          %576 = vadd.xlane.f32.xlu0 %v575
          %v577 = vpop.xlane.xlu0 %576
          %v578 = vmul.f32 %v577, %v538
          %v579 = vadd.f32 %v578, 1e-05
          %v580 = vrsqrt.pop %v579
          %v581 = vmul.f32 %v573, %v580
          %v582 = vld [vmem:[%s3] sm:$0x1]
          %v584 = vlaneseq
          %v585 = vshrl.u32 %v584, 7
          %v586 = vsub.s32 0, %v585
          %v587 = vrot.slane %v582, %v586
          %v589 = vmul.f32 %v581, %v587
          %v590 = vld [vmem:[%s4] sm:$0x1]
          %v592 = vlaneseq
          %v593 = vshrl.u32 %v592, 7
          %v594 = vsub.s32 0, %v593
          %v595 = vrot.slane %v590, %v594
          %v597 = vadd.f32 %v589, %v595
          %v598 = vpack.c.bf16 %v597, %v597
          %599 = vst.msk [vmem:[#allocation4] sm:$0xf] %vm566, %v598
        $region88: #{tpu_custom_call.1} parent=59 // pred_fallthru
          _
        // Predicated region
        $region89: #{tpu_custom_call.1} parent=59 // pred_check
          %p600 = pneg %p528
        $region90: #{tpu_custom_call.1} parent=59 // pred_check_branch
          %602 = sbr.rel (%p600) target = $region92
        $region91: #{tpu_custom_call.1} parent=59 // pred_region
          %v603 = vld [vmem:[%s459] sm:$0xff]
          %vm604 = vcmask 261120
          %v605 = vsel %vm604, %v603, 0.0
          %606 = vadd.xlane.f32.xlu0 %v605
          %v607 = vpop.xlane.xlu0 %606
          %v608 = vrcp.pop 32.0
          %v609 = vmul.f32 %v607, %v608
          %v610 = vsub.f32 %v603, %v609
          %v611 = vmul.f32 %v610, %v610
          %v612 = vsel %vm604, %v611, 0.0
          %613 = vadd.xlane.f32.xlu0 %v612
          %v614 = vpop.xlane.xlu0 %613
          %v615 = vmul.f32 %v614, %v608
          %v616 = vadd.f32 %v615, 1e-05
          %v617 = vrsqrt.pop %v616
          %v618 = vmul.f32 %v610, %v617
          %v619 = vld [vmem:[%s3] sm:$0x1]
          %v621 = vlaneseq
          %v622 = vshrl.u32 %v621, 7
          %v623 = vsub.s32 0, %v622
          %v624 = vrot.slane %v619, %v623
          %v626 = vmul.f32 %v618, %v624
          %v627 = vld [vmem:[%s4] sm:$0x1]
          %v629 = vlaneseq
          %v630 = vshrl.u32 %v629, 7
          %v631 = vsub.s32 0, %v630
          %v632 = vrot.slane %v627, %v631
          %v634 = vadd.f32 %v626, %v632
          %v635 = vpack.c.bf16 %v634, %v634
          %vm636 = vcmask 257024
          %637 = vst.msk [vmem:[#allocation2] sm:$0xf] %vm636, %v635
          %v638 = vld [vmem:[%s9] sm:$0x1]
          %v640 = vlaneseq
          %v641 = vshrl.u32 %v640, 7
          %v642 = vsub.s32 0, %v641
          %v643 = vrot.slane %v638, %v642
          %v645 = vadd.f32 %v603, %v643
          %646 = vst.msk [vmem:[#allocation8] sm:$0xff] %vm604, %v645
        $region92: #{tpu_custom_call.1} parent=59 // pred_fallthru
          _
        // Predicated region
        $region93: #{tpu_custom_call.1} parent=59 // pred_check
          %p647 = pneg %p527
        $region94: #{tpu_custom_call.1} parent=59 // pred_check_branch
          %649 = sbr.rel (%p647) target = $region96
        $region95: #{tpu_custom_call.1} parent=59 // pred_region
          %v650 = vld [vmem:[#allocation3] sm:$0xf]
          %v651 = vld [vmem:[#allocation15] sm:$0xf]
          %v652 = vld [vmem:[#allocation15 + $0x4] sm:$0xf]
          %v653 = vld [vmem:[#allocation15 + $0x8] sm:$0xf]
          %v654 = vld [vmem:[#allocation15 + $0xc] sm:$0xf]
          %v659 = vunpack.c.l.b16 %v651
          %v660 = vunpack.c.l.b16 %v652
          %v661 = vunpack.c.l.b16 %v653
          %v662 = vunpack.c.l.b16 %v654
          %v663 = vpack.c.b16 %v660, %v659
          %v664 = vpack.c.b16 %v662, %v661
          %vm667 = vcmask 261120
          %v669 = vsel %vm667, %v650, 0
          %671 = vmatprep.subr.bf16.mxu0 0
          %672 = vmatpush1.bf16.msra.mxu0 %v663
          %673 = vmatprep.subr.bf16.mxu0 0
          %674 = vmatpush1.bf16.msra.mxu0 %v664
          %675 = vmatprep.subr.bf16.mxu0 0
          %676 = vmatpush1.bf16.msra.mxu0 0
          %677 = vmatprep.subr.bf16.mxu0 0
          %678 = vmatpush1.bf16.msra.mxu0 0
          %679 = vmatprep.subr.bf16.mxu0 0
          %680 = vmatpush1.bf16.msra.mxu0 0
          %681 = vmatprep.subr.bf16.mxu0 0
          %682 = vmatpush1.bf16.msra.mxu0 0
          %683 = vmatprep.subr.bf16.mxu0 0
          %684 = vmatpush1.bf16.msra.mxu0 0
          %685 = vmatprep.subr.bf16.mxu0 0
          %686 = vmatpush1.bf16.msra.mxu0 0
          %687 = vmatprep.subr.bf16.mxu0 0
          %688 = vmatpush1.bf16.msra.mxu0 0
          %689 = vmatprep.subr.bf16.mxu0 0
          %690 = vmatpush1.bf16.msra.mxu0 0
          %691 = vmatprep.subr.bf16.mxu0 0
          %692 = vmatpush1.bf16.msra.mxu0 0
          %693 = vmatprep.subr.bf16.mxu0 0
          %694 = vmatpush1.bf16.msra.mxu0 0
          %695 = vmatprep.subr.bf16.mxu0 0
          %696 = vmatpush1.bf16.msra.mxu0 0
          %697 = vmatprep.subr.bf16.mxu0 0
          %698 = vmatpush1.bf16.msra.mxu0 0
          %699 = vmatprep.subr.bf16.mxu0 0
          %700 = vmatpush1.bf16.msra.mxu0 0
          %701 = vmatprep.subr.bf16.mxu0 0
          %702 = vmatpush1.bf16.msra.mxu0 0
          %703 = vmatprep.mubr.bf16.mxu0 0
          %704 = vmatmul.mubr.bf16.gmra.mrb[0].mxu0 %v669
          %v705 = vpop.f32.mrb[0].mxu0
          %v706 = vadd.f32 0.0, %v705
          %v707 = vpop.f32.mrb[0].mxu0
          %v708 = vpop.f32.mrb[0].mxu0
          %v709 = vpop.f32.mrb[0].mxu0
          %710 = vdwg.mxu0
          %v711 = vpack.c.bf16 %v706, %v706
          %s712 = smul.addr %s37, 4
          %s713 = scalar_lea.vmem [#allocation5], %s712
          %vm714 = vcmask 257024
          %715 = vst.msk [vmem:[%s713] sm:$0xf] %vm714, %v711
          %v716 = vld [vmem:[#allocation4] sm:$0xf]
          %v717 = vld [vmem:[#allocation17] sm:$0xf]
          %v718 = vld [vmem:[#allocation17 + $0x4] sm:$0xf]
          %v719 = vld [vmem:[#allocation17 + $0x8] sm:$0xf]
          %v720 = vld [vmem:[#allocation17 + $0xc] sm:$0xf]
          %v725 = vunpack.c.l.b16 %v717
          %v726 = vunpack.c.l.b16 %v718
          %v727 = vunpack.c.l.b16 %v719
          %v728 = vunpack.c.l.b16 %v720
          %v729 = vpack.c.b16 %v726, %v725
          %v730 = vpack.c.b16 %v728, %v727
          %v734 = vsel %vm667, %v716, 0
          %736 = vmatprep.subr.bf16.mxu0 0
          %737 = vmatpush1.bf16.msra.mxu0 %v729
          %738 = vmatprep.subr.bf16.mxu0 0
          %739 = vmatpush1.bf16.msra.mxu0 %v730
          %740 = vmatprep.subr.bf16.mxu0 0
          %741 = vmatpush1.bf16.msra.mxu0 0
          %742 = vmatprep.subr.bf16.mxu0 0
          %743 = vmatpush1.bf16.msra.mxu0 0
          %744 = vmatprep.subr.bf16.mxu0 0
          %745 = vmatpush1.bf16.msra.mxu0 0
          %746 = vmatprep.subr.bf16.mxu0 0
          %747 = vmatpush1.bf16.msra.mxu0 0
          %748 = vmatprep.subr.bf16.mxu0 0
          %749 = vmatpush1.bf16.msra.mxu0 0
          %750 = vmatprep.subr.bf16.mxu0 0
          %751 = vmatpush1.bf16.msra.mxu0 0
          %752 = vmatprep.subr.bf16.mxu0 0
          %753 = vmatpush1.bf16.msra.mxu0 0
          %754 = vmatprep.subr.bf16.mxu0 0
          %755 = vmatpush1.bf16.msra.mxu0 0
          %756 = vmatprep.subr.bf16.mxu0 0
          %757 = vmatpush1.bf16.msra.mxu0 0
          %758 = vmatprep.subr.bf16.mxu0 0
          %759 = vmatpush1.bf16.msra.mxu0 0
          %760 = vmatprep.subr.bf16.mxu0 0
          %761 = vmatpush1.bf16.msra.mxu0 0
          %762 = vmatprep.subr.bf16.mxu0 0
          %763 = vmatpush1.bf16.msra.mxu0 0
          %764 = vmatprep.subr.bf16.mxu0 0
          %765 = vmatpush1.bf16.msra.mxu0 0
          %766 = vmatprep.subr.bf16.mxu0 0
          %767 = vmatpush1.bf16.msra.mxu0 0
          %768 = vmatprep.mubr.bf16.mxu0 0
          %769 = vmatmul.mubr.bf16.gmra.mrb[0].mxu0 %v734
          %v770 = vpop.f32.mrb[0].mxu0
          %v771 = vadd.f32 0.0, %v770
          %v772 = vpop.f32.mrb[0].mxu0
          %v773 = vpop.f32.mrb[0].mxu0
          %v774 = vpop.f32.mrb[0].mxu0
          %775 = vdwg.mxu0
          %v776 = vpack.c.bf16 %v771, %v771
          %s777 = smul.addr %s37, 4
          %s778 = scalar_lea.vmem [#allocation6], %s777
          %779 = vst.msk [vmem:[%s778] sm:$0xf] %vm714, %v776
        $region96: #{tpu_custom_call.1} parent=59 // pred_fallthru
          _
        %v780 = vld [vmem:[#allocation2] sm:$0xf]
        %v781 = vld [vmem:[%s525] sm:$0xf]
        %v782 = vld [vmem:[%s525 + $0x4] sm:$0xf]
        %v783 = vld [vmem:[%s525 + $0x8] sm:$0xf]
        %v784 = vld [vmem:[%s525 + $0xc] sm:$0xf]
        %v789 = vunpack.c.l.b16 %v781
        %v790 = vunpack.c.l.b16 %v782
        %v791 = vunpack.c.l.b16 %v783
        %v792 = vunpack.c.l.b16 %v784
        %v793 = vpack.c.b16 %v790, %v789
        %v794 = vpack.c.b16 %v792, %v791
        %vm797 = vcmask 261120
        %v799 = vsel %vm797, %v780, 0
        %801 = vmatprep.subr.bf16.mxu0 0
        %802 = vmatpush1.bf16.msra.mxu0 %v793
        %803 = vmatprep.subr.bf16.mxu0 0
        %804 = vmatpush1.bf16.msra.mxu0 %v794
        %805 = vmatprep.subr.bf16.mxu0 0
        %806 = vmatpush1.bf16.msra.mxu0 0
        %807 = vmatprep.subr.bf16.mxu0 0
        %808 = vmatpush1.bf16.msra.mxu0 0
        %809 = vmatprep.subr.bf16.mxu0 0
        %810 = vmatpush1.bf16.msra.mxu0 0
        %811 = vmatprep.subr.bf16.mxu0 0
        %812 = vmatpush1.bf16.msra.mxu0 0
        %813 = vmatprep.subr.bf16.mxu0 0
        %814 = vmatpush1.bf16.msra.mxu0 0
        %815 = vmatprep.subr.bf16.mxu0 0
        %816 = vmatpush1.bf16.msra.mxu0 0
        %817 = vmatprep.subr.bf16.mxu0 0
        %818 = vmatpush1.bf16.msra.mxu0 0
        %819 = vmatprep.subr.bf16.mxu0 0
        %820 = vmatpush1.bf16.msra.mxu0 0
        %821 = vmatprep.subr.bf16.mxu0 0
        %822 = vmatpush1.bf16.msra.mxu0 0
        %823 = vmatprep.subr.bf16.mxu0 0
        %824 = vmatpush1.bf16.msra.mxu0 0
        %825 = vmatprep.subr.bf16.mxu0 0
        %826 = vmatpush1.bf16.msra.mxu0 0
        %827 = vmatprep.subr.bf16.mxu0 0
        %828 = vmatpush1.bf16.msra.mxu0 0
        %829 = vmatprep.subr.bf16.mxu0 0
        %830 = vmatpush1.bf16.msra.mxu0 0
        %831 = vmatprep.subr.bf16.mxu0 0
        %832 = vmatpush1.bf16.msra.mxu0 0
        %833 = vmatprep.mubr.bf16.mxu0 0
        %834 = vmatmul.mubr.bf16.gmra.mrb[0].mxu0 %v799
        %v835 = vpop.f32.mrb[0].mxu0
        %v836 = vadd.f32 0.0, %v835
        %v837 = vpop.f32.mrb[0].mxu0
        %v838 = vpop.f32.mrb[0].mxu0
        %v839 = vpop.f32.mrb[0].mxu0
        %840 = vdwg.mxu0
        %v841 = vmul.f32 %v836, 0.35355338
        %v842 = vpack.c.bf16 %v841, %v841
        %s843 = smul.addr %s37, 4
        %s844 = scalar_lea.vmem [#allocation5], %s843
        %v845 = vld [vmem:[%s844] sm:$0xf]
        %s846 = smul.addr %s37, 4
        %s847 = scalar_lea.vmem [#allocation6], %s846
        %v848 = vld [vmem:[%s847] sm:$0xf]
        %vm849 = vcmask 64512
        %v851 = vsel %vm849, %v842, 0
        %v854 = vsel %vm849, %v845, 0
        %856 = vmatprep.subr.bf16.mxu0 0
        %857 = vmatpush1.bf16.xpose.msra.mxu0 %v854
        %858 = vmatprep.subr.bf16.mxu0 0
        %859 = vmatpush1.bf16.xpose.msra.mxu0 0
        %860 = vmatprep.subr.bf16.mxu0 0
        %861 = vmatpush1.bf16.xpose.msra.mxu0 0
        %862 = vmatprep.subr.bf16.mxu0 0
        %863 = vmatpush1.bf16.xpose.msra.mxu0 0
        %864 = vmatprep.subr.bf16.mxu0 0
        %865 = vmatpush1.bf16.xpose.msra.mxu0 0
        %866 = vmatprep.subr.bf16.mxu0 0
        %867 = vmatpush1.bf16.xpose.msra.mxu0 0
        %868 = vmatprep.subr.bf16.mxu0 0
        %869 = vmatpush1.bf16.xpose.msra.mxu0 0
        %870 = vmatprep.subr.bf16.mxu0 0
        %871 = vmatpush1.bf16.xpose.msra.mxu0 0
        %872 = vmatprep.subr.bf16.mxu0 0
        %873 = vmatpush1.bf16.xpose.msra.mxu0 0
        %874 = vmatprep.subr.bf16.mxu0 0
        %875 = vmatpush1.bf16.xpose.msra.mxu0 0
        %876 = vmatprep.subr.bf16.mxu0 0
        %877 = vmatpush1.bf16.xpose.msra.mxu0 0
        %878 = vmatprep.subr.bf16.mxu0 0
        %879 = vmatpush1.bf16.xpose.msra.mxu0 0
        %880 = vmatprep.subr.bf16.mxu0 0
        %881 = vmatpush1.bf16.xpose.msra.mxu0 0
        %882 = vmatprep.subr.bf16.mxu0 0
        %883 = vmatpush1.bf16.xpose.msra.mxu0 0
        %884 = vmatprep.subr.bf16.mxu0 0
        %885 = vmatpush1.bf16.xpose.msra.mxu0 0
        %886 = vmatprep.subr.bf16.mxu0 0
        %887 = vmatpush1.bf16.xpose.msra.mxu0 0
        %888 = vmatprep.mubr.bf16.mxu0 0
        %889 = vmatmul.mubr.bf16.gmra.mrb[0].mxu0 %v851
        %v890 = vpop.f32.mrb[0].mxu0
        %v891 = vadd.f32 0.0, %v890
        %v892 = vpop.f32.mrb[0].mxu0
        %v893 = vpop.f32.mrb[0].mxu0
        %v894 = vpop.f32.mrb[0].mxu0
        %895 = vdwg.mxu0
        %v896 = vsel %vm849, %v891, -inf
        %897 = vmax.xlane.f32.xlu0 %v896
        %v898 = vpop.xlane.xlu0 %897
        %v899 = vsub.f32 %v891, %v898
        %v900 = vmul.f32 %v899, 1.442695
        %v901 = vpow.pop %v900
        %v902 = vsel %vm849, %v901, 0.0
        %903 = vadd.xlane.f32.xlu0 %v902
        %v904 = vpop.xlane.xlu0 %903
        %v905 = vrcp.pop %v904
        %v906 = vpack.c.bf16 %v901, %v901
        %v908 = vsel %vm849, %v906, 0
        %vm910 = vcmask 1043456
        %v912 = vsel %vm910, %v848, 0
        %914 = vmatprep.subr.bf16.mxu0 0
        %915 = vmatpush1.bf16.msra.mxu0 %v912
        %916 = vmatprep.subr.bf16.mxu0 0
        %917 = vmatpush1.bf16.msra.mxu0 0
        %918 = vmatprep.subr.bf16.mxu0 0
        %919 = vmatpush1.bf16.msra.mxu0 0
        %920 = vmatprep.subr.bf16.mxu0 0
        %921 = vmatpush1.bf16.msra.mxu0 0
        %922 = vmatprep.subr.bf16.mxu0 0
        %923 = vmatpush1.bf16.msra.mxu0 0
        %924 = vmatprep.subr.bf16.mxu0 0
        %925 = vmatpush1.bf16.msra.mxu0 0
        %926 = vmatprep.subr.bf16.mxu0 0
        %927 = vmatpush1.bf16.msra.mxu0 0
        %928 = vmatprep.subr.bf16.mxu0 0
        %929 = vmatpush1.bf16.msra.mxu0 0
        %930 = vmatprep.subr.bf16.mxu0 0
        %931 = vmatpush1.bf16.msra.mxu0 0
        %932 = vmatprep.subr.bf16.mxu0 0
        %933 = vmatpush1.bf16.msra.mxu0 0
        %934 = vmatprep.subr.bf16.mxu0 0
        %935 = vmatpush1.bf16.msra.mxu0 0
        %936 = vmatprep.subr.bf16.mxu0 0
        %937 = vmatpush1.bf16.msra.mxu0 0
        %938 = vmatprep.subr.bf16.mxu0 0
        %939 = vmatpush1.bf16.msra.mxu0 0
        %940 = vmatprep.subr.bf16.mxu0 0
        %941 = vmatpush1.bf16.msra.mxu0 0
        %942 = vmatprep.subr.bf16.mxu0 0
        %943 = vmatpush1.bf16.msra.mxu0 0
        %944 = vmatprep.subr.bf16.mxu0 0
        %945 = vmatpush1.bf16.msra.mxu0 0
        %946 = vmatprep.mubr.bf16.mxu0 0
        %947 = vmatmul.mubr.bf16.gmra.mrb[0].mxu0 %v908
        %v948 = vpop.f32.mrb[0].mxu0
        %v949 = vadd.f32 0.0, %v948
        %v950 = vpop.f32.mrb[0].mxu0
        %v951 = vpop.f32.mrb[0].mxu0
        %v952 = vpop.f32.mrb[0].mxu0
        %953 = vdwg.mxu0
        %v954 = vmul.f32 %v949, %v905
        %v955 = vpack.c.bf16 %v954, %v954
        %vm956 = vcmask 60416
        %957 = vst.msk [vmem:[#allocation7] sm:$0xf] %vm956, %v955
        %959 = vrot.lane.b32.xlu0 %v842, 120
        %v960 = vpop.permute.xlu0 %959
        %v962 = vunpack.c.l.b16 %v845
        %v963 = vpack.c.b16 %v962, %v962
        %964 = vrot.lane.b32.xlu0 %v963, 120
        %v965 = vpop.permute.xlu0 %964
        %v967 = vsel %vm849, %v960, 0
        %v970 = vsel %vm849, %v965, 0
        %972 = vmatprep.subr.bf16.mxu0 0
        %973 = vmatpush1.bf16.xpose.msra.mxu0 %v970
        %974 = vmatprep.subr.bf16.mxu0 0
        %975 = vmatpush1.bf16.xpose.msra.mxu0 0
        %976 = vmatprep.subr.bf16.mxu0 0
        %977 = vmatpush1.bf16.xpose.msra.mxu0 0
        %978 = vmatprep.subr.bf16.mxu0 0
        %979 = vmatpush1.bf16.xpose.msra.mxu0 0
        %980 = vmatprep.subr.bf16.mxu0 0
        %981 = vmatpush1.bf16.xpose.msra.mxu0 0
        %982 = vmatprep.subr.bf16.mxu0 0
        %983 = vmatpush1.bf16.xpose.msra.mxu0 0
        %984 = vmatprep.subr.bf16.mxu0 0
        %985 = vmatpush1.bf16.xpose.msra.mxu0 0
        %986 = vmatprep.subr.bf16.mxu0 0
        %987 = vmatpush1.bf16.xpose.msra.mxu0 0
        %988 = vmatprep.subr.bf16.mxu0 0
        %989 = vmatpush1.bf16.xpose.msra.mxu0 0
        %990 = vmatprep.subr.bf16.mxu0 0
        %991 = vmatpush1.bf16.xpose.msra.mxu0 0
        %992 = vmatprep.subr.bf16.mxu0 0
        %993 = vmatpush1.bf16.xpose.msra.mxu0 0
        %994 = vmatprep.subr.bf16.mxu0 0
        %995 = vmatpush1.bf16.xpose.msra.mxu0 0
        %996 = vmatprep.subr.bf16.mxu0 0
        %997 = vmatpush1.bf16.xpose.msra.mxu0 0
        %998 = vmatprep.subr.bf16.mxu0 0
        %999 = vmatpush1.bf16.xpose.msra.mxu0 0
        %1000 = vmatprep.subr.bf16.mxu0 0
        %1001 = vmatpush1.bf16.xpose.msra.mxu0 0
        %1002 = vmatprep.subr.bf16.mxu0 0
        %1003 = vmatpush1.bf16.xpose.msra.mxu0 0
        %1004 = vmatprep.mubr.bf16.mxu0 0
        %1005 = vmatmul.mubr.bf16.gmra.mrb[0].mxu0 %v967
        %v1006 = vpop.f32.mrb[0].mxu0
        %v1007 = vadd.f32 0.0, %v1006
        %v1008 = vpop.f32.mrb[0].mxu0
        %v1009 = vpop.f32.mrb[0].mxu0
        %v1010 = vpop.f32.mrb[0].mxu0
        %1011 = vdwg.mxu0
        %v1012 = vsel %vm849, %v1007, -inf
        %1013 = vmax.xlane.f32.xlu0 %v1012
        %v1014 = vpop.xlane.xlu0 %1013
        %v1015 = vsub.f32 %v1007, %v1014
        %v1016 = vmul.f32 %v1015, 1.442695
        %v1017 = vpow.pop %v1016
        %v1018 = vsel %vm849, %v1017, 0.0
        %1019 = vadd.xlane.f32.xlu0 %v1018
        %v1020 = vpop.xlane.xlu0 %1019
        %v1021 = vrcp.pop %v1020
        %v1022 = vpack.c.bf16 %v1017, %v1017
        %v1024 = vunpack.c.l.b16 %v848
        %v1025 = vpack.c.b16 %v1024, %v1024
        %1026 = vrot.lane.b32.xlu0 %v1025, 120
        %v1027 = vpop.permute.xlu0 %1026
        %v1029 = vsel %vm849, %v1022, 0
        %v1032 = vsel %vm910, %v1027, 0
        %1034 = vmatprep.subr.bf16.mxu0 0
        %1035 = vmatpush1.bf16.msra.mxu0 %v1032
        %1036 = vmatprep.subr.bf16.mxu0 0
        %1037 = vmatpush1.bf16.msra.mxu0 0
        %1038 = vmatprep.subr.bf16.mxu0 0
        %1039 = vmatpush1.bf16.msra.mxu0 0
        %1040 = vmatprep.subr.bf16.mxu0 0
        %1041 = vmatpush1.bf16.msra.mxu0 0
        %1042 = vmatprep.subr.bf16.mxu0 0
        %1043 = vmatpush1.bf16.msra.mxu0 0
        %1044 = vmatprep.subr.bf16.mxu0 0
        %1045 = vmatpush1.bf16.msra.mxu0 0
        %1046 = vmatprep.subr.bf16.mxu0 0
        %1047 = vmatpush1.bf16.msra.mxu0 0
        %1048 = vmatprep.subr.bf16.mxu0 0
        %1049 = vmatpush1.bf16.msra.mxu0 0
        %1050 = vmatprep.subr.bf16.mxu0 0
        %1051 = vmatpush1.bf16.msra.mxu0 0
        %1052 = vmatprep.subr.bf16.mxu0 0
        %1053 = vmatpush1.bf16.msra.mxu0 0
        %1054 = vmatprep.subr.bf16.mxu0 0
        %1055 = vmatpush1.bf16.msra.mxu0 0
        %1056 = vmatprep.subr.bf16.mxu0 0
        %1057 = vmatpush1.bf16.msra.mxu0 0
        %1058 = vmatprep.subr.bf16.mxu0 0
        %1059 = vmatpush1.bf16.msra.mxu0 0
        %1060 = vmatprep.subr.bf16.mxu0 0
        %1061 = vmatpush1.bf16.msra.mxu0 0
        %1062 = vmatprep.subr.bf16.mxu0 0
        %1063 = vmatpush1.bf16.msra.mxu0 0
        %1064 = vmatprep.subr.bf16.mxu0 0
        %1065 = vmatpush1.bf16.msra.mxu0 0
        %1066 = vmatprep.mubr.bf16.mxu0 0
        %1067 = vmatmul.mubr.bf16.gmra.mrb[0].mxu0 %v1029
        %v1068 = vpop.f32.mrb[0].mxu0
        %v1069 = vadd.f32 0.0, %v1068
        %v1070 = vpop.f32.mrb[0].mxu0
        %v1071 = vpop.f32.mrb[0].mxu0
        %v1072 = vpop.f32.mrb[0].mxu0
        %1073 = vdwg.mxu0
        %v1074 = vmul.f32 %v1069, %v1021
        %v1075 = vpack.c.bf16 %v1074, %v1074
        %v1077 = vunpack.c.l.b16 %v1075
        %v1078 = vpack.c.b16 %v1077, %v1077
        %1079 = vrot.lane.b32.xlu0 %v1078, 8
        %v1080 = vpop.permute.xlu0 %1079
        %vm1082 = vcmask 126016
        %1083 = vst.msk [vmem:[#allocation7] sm:$0xf] %vm1082, %v1080
        %1084 = vrot.lane.b32.xlu0 %v842, 112
        %v1085 = vpop.permute.xlu0 %1084
        %1086 = vrot.lane.b32.xlu0 %v963, 112
        %v1087 = vpop.permute.xlu0 %1086
        %v1089 = vsel %vm849, %v1085, 0
        %v1092 = vsel %vm849, %v1087, 0
        %1094 = vmatprep.subr.bf16.mxu0 0
        %1095 = vmatpush1.bf16.xpose.msra.mxu0 %v1092
        %1096 = vmatprep.subr.bf16.mxu0 0
        %1097 = vmatpush1.bf16.xpose.msra.mxu0 0
        %1098 = vmatprep.subr.bf16.mxu0 0
        %1099 = vmatpush1.bf16.xpose.msra.mxu0 0
        %1100 = vmatprep.subr.bf16.mxu0 0
        %1101 = vmatpush1.bf16.xpose.msra.mxu0 0
        %1102 = vmatprep.subr.bf16.mxu0 0
        %1103 = vmatpush1.bf16.xpose.msra.mxu0 0
        %1104 = vmatprep.subr.bf16.mxu0 0
        %1105 = vmatpush1.bf16.xpose.msra.mxu0 0
        %1106 = vmatprep.subr.bf16.mxu0 0
        %1107 = vmatpush1.bf16.xpose.msra.mxu0 0
        %1108 = vmatprep.subr.bf16.mxu0 0
        %1109 = vmatpush1.bf16.xpose.msra.mxu0 0
        %1110 = vmatprep.subr.bf16.mxu0 0
        %1111 = vmatpush1.bf16.xpose.msra.mxu0 0
        %1112 = vmatprep.subr.bf16.mxu0 0
        %1113 = vmatpush1.bf16.xpose.msra.mxu0 0
        %1114 = vmatprep.subr.bf16.mxu0 0
        %1115 = vmatpush1.bf16.xpose.msra.mxu0 0
        %1116 = vmatprep.subr.bf16.mxu0 0
        %1117 = vmatpush1.bf16.xpose.msra.mxu0 0
        %1118 = vmatprep.subr.bf16.mxu0 0
        %1119 = vmatpush1.bf16.xpose.msra.mxu0 0
        %1120 = vmatprep.subr.bf16.mxu0 0
        %1121 = vmatpush1.bf16.xpose.msra.mxu0 0
        %1122 = vmatprep.subr.bf16.mxu0 0
        %1123 = vmatpush1.bf16.xpose.msra.mxu0 0
        %1124 = vmatprep.subr.bf16.mxu0 0
        %1125 = vmatpush1.bf16.xpose.msra.mxu0 0
        %1126 = vmatprep.mubr.bf16.mxu0 0
        %1127 = vmatmul.mubr.bf16.gmra.mrb[0].mxu0 %v1089
        %v1128 = vpop.f32.mrb[0].mxu0
        %v1129 = vadd.f32 0.0, %v1128
        %v1130 = vpop.f32.mrb[0].mxu0
        %v1131 = vpop.f32.mrb[0].mxu0
        %v1132 = vpop.f32.mrb[0].mxu0
        %1133 = vdwg.mxu0
        %v1134 = vsel %vm849, %v1129, -inf
        %1135 = vmax.xlane.f32.xlu0 %v1134
        %v1136 = vpop.xlane.xlu0 %1135
        %v1137 = vsub.f32 %v1129, %v1136
        %v1138 = vmul.f32 %v1137, 1.442695
        %v1139 = vpow.pop %v1138
        %v1140 = vsel %vm849, %v1139, 0.0
        %1141 = vadd.xlane.f32.xlu0 %v1140
        %v1142 = vpop.xlane.xlu0 %1141
        %v1143 = vrcp.pop %v1142
        %v1144 = vpack.c.bf16 %v1139, %v1139
        %1145 = vrot.lane.b32.xlu0 %v1025, 112
        %v1146 = vpop.permute.xlu0 %1145
        %v1148 = vsel %vm849, %v1144, 0
        %v1151 = vsel %vm910, %v1146, 0
        %1153 = vmatprep.subr.bf16.mxu0 0
        %1154 = vmatpush1.bf16.msra.mxu0 %v1151
        %1155 = vmatprep.subr.bf16.mxu0 0
        %1156 = vmatpush1.bf16.msra.mxu0 0
        %1157 = vmatprep.subr.bf16.mxu0 0
        %1158 = vmatpush1.bf16.msra.mxu0 0
        %1159 = vmatprep.subr.bf16.mxu0 0
        %1160 = vmatpush1.bf16.msra.mxu0 0
        %1161 = vmatprep.subr.bf16.mxu0 0
        %1162 = vmatpush1.bf16.msra.mxu0 0
        %1163 = vmatprep.subr.bf16.mxu0 0
        %1164 = vmatpush1.bf16.msra.mxu0 0
        %1165 = vmatprep.subr.bf16.mxu0 0
        %1166 = vmatpush1.bf16.msra.mxu0 0
        %1167 = vmatprep.subr.bf16.mxu0 0
        %1168 = vmatpush1.bf16.msra.mxu0 0
        %1169 = vmatprep.subr.bf16.mxu0 0
        %1170 = vmatpush1.bf16.msra.mxu0 0
        %1171 = vmatprep.subr.bf16.mxu0 0
        %1172 = vmatpush1.bf16.msra.mxu0 0
        %1173 = vmatprep.subr.bf16.mxu0 0
        %1174 = vmatpush1.bf16.msra.mxu0 0
        %1175 = vmatprep.subr.bf16.mxu0 0
        %1176 = vmatpush1.bf16.msra.mxu0 0
        %1177 = vmatprep.subr.bf16.mxu0 0
        %1178 = vmatpush1.bf16.msra.mxu0 0
        %1179 = vmatprep.subr.bf16.mxu0 0
        %1180 = vmatpush1.bf16.msra.mxu0 0
        %1181 = vmatprep.subr.bf16.mxu0 0
        %1182 = vmatpush1.bf16.msra.mxu0 0
        %1183 = vmatprep.subr.bf16.mxu0 0
        %1184 = vmatpush1.bf16.msra.mxu0 0
        %1185 = vmatprep.mubr.bf16.mxu0 0
        %1186 = vmatmul.mubr.bf16.gmra.mrb[0].mxu0 %v1148
        %v1187 = vpop.f32.mrb[0].mxu0
        %v1188 = vadd.f32 0.0, %v1187
        %v1189 = vpop.f32.mrb[0].mxu0
        %v1190 = vpop.f32.mrb[0].mxu0
        %v1191 = vpop.f32.mrb[0].mxu0
        %1192 = vdwg.mxu0
        %v1193 = vmul.f32 %v1188, %v1143
        %v1194 = vpack.c.bf16 %v1193, %v1193
        %v1196 = vunpack.c.l.b16 %v1194
        %v1197 = vpack.c.b16 %v1196, %v1196
        %1198 = vrot.lane.b32.xlu0 %v1197, 16
        %v1199 = vpop.permute.xlu0 %1198
        %vm1201 = vcmask 191616
        %1202 = vst.msk [vmem:[#allocation7] sm:$0xf] %vm1201, %v1199
        %1203 = vrot.lane.b32.xlu0 %v842, 104
        %v1204 = vpop.permute.xlu0 %1203
        %1205 = vrot.lane.b32.xlu0 %v963, 104
        %v1206 = vpop.permute.xlu0 %1205
        %v1208 = vsel %vm849, %v1204, 0
        %v1211 = vsel %vm849, %v1206, 0
        %1213 = vmatprep.subr.bf16.mxu0 0
        %1214 = vmatpush1.bf16.xpose.msra.mxu0 %v1211
        %1215 = vmatprep.subr.bf16.mxu0 0
        %1216 = vmatpush1.bf16.xpose.msra.mxu0 0
        %1217 = vmatprep.subr.bf16.mxu0 0
        %1218 = vmatpush1.bf16.xpose.msra.mxu0 0
        %1219 = vmatprep.subr.bf16.mxu0 0
        %1220 = vmatpush1.bf16.xpose.msra.mxu0 0
        %1221 = vmatprep.subr.bf16.mxu0 0
        %1222 = vmatpush1.bf16.xpose.msra.mxu0 0
        %1223 = vmatprep.subr.bf16.mxu0 0
        %1224 = vmatpush1.bf16.xpose.msra.mxu0 0
        %1225 = vmatprep.subr.bf16.mxu0 0
        %1226 = vmatpush1.bf16.xpose.msra.mxu0 0
        %1227 = vmatprep.subr.bf16.mxu0 0
        %1228 = vmatpush1.bf16.xpose.msra.mxu0 0
        %1229 = vmatprep.subr.bf16.mxu0 0
        %1230 = vmatpush1.bf16.xpose.msra.mxu0 0
        %1231 = vmatprep.subr.bf16.mxu0 0
        %1232 = vmatpush1.bf16.xpose.msra.mxu0 0
        %1233 = vmatprep.subr.bf16.mxu0 0
        %1234 = vmatpush1.bf16.xpose.msra.mxu0 0
        %1235 = vmatprep.subr.bf16.mxu0 0
        %1236 = vmatpush1.bf16.xpose.msra.mxu0 0
        %1237 = vmatprep.subr.bf16.mxu0 0
        %1238 = vmatpush1.bf16.xpose.msra.mxu0 0
        %1239 = vmatprep.subr.bf16.mxu0 0
        %1240 = vmatpush1.bf16.xpose.msra.mxu0 0
        %1241 = vmatprep.subr.bf16.mxu0 0
        %1242 = vmatpush1.bf16.xpose.msra.mxu0 0
        %1243 = vmatprep.subr.bf16.mxu0 0
        %1244 = vmatpush1.bf16.xpose.msra.mxu0 0
        %1245 = vmatprep.mubr.bf16.mxu0 0
        %1246 = vmatmul.mubr.bf16.gmra.mrb[0].mxu0 %v1208
        %v1247 = vpop.f32.mrb[0].mxu0
        %v1248 = vadd.f32 0.0, %v1247
        %v1249 = vpop.f32.mrb[0].mxu0
        %v1250 = vpop.f32.mrb[0].mxu0
        %v1251 = vpop.f32.mrb[0].mxu0
        %1252 = vdwg.mxu0
        %v1253 = vsel %vm849, %v1248, -inf
        %1254 = vmax.xlane.f32.xlu0 %v1253
        %v1255 = vpop.xlane.xlu0 %1254
        %v1256 = vsub.f32 %v1248, %v1255
        %v1257 = vmul.f32 %v1256, 1.442695
        %v1258 = vpow.pop %v1257
        %v1259 = vsel %vm849, %v1258, 0.0
        %1260 = vadd.xlane.f32.xlu0 %v1259
        %v1261 = vpop.xlane.xlu0 %1260
        %v1262 = vrcp.pop %v1261
        %v1263 = vpack.c.bf16 %v1258, %v1258
        %1264 = vrot.lane.b32.xlu0 %v1025, 104
        %v1265 = vpop.permute.xlu0 %1264
        %v1267 = vsel %vm849, %v1263, 0
        %v1270 = vsel %vm910, %v1265, 0
        %1272 = vmatprep.subr.bf16.mxu0 0
        %1273 = vmatpush1.bf16.msra.mxu0 %v1270
        %1274 = vmatprep.subr.bf16.mxu0 0
        %1275 = vmatpush1.bf16.msra.mxu0 0
        %1276 = vmatprep.subr.bf16.mxu0 0
        %1277 = vmatpush1.bf16.msra.mxu0 0
        %1278 = vmatprep.subr.bf16.mxu0 0
        %1279 = vmatpush1.bf16.msra.mxu0 0
        %1280 = vmatprep.subr.bf16.mxu0 0
        %1281 = vmatpush1.bf16.msra.mxu0 0
        %1282 = vmatprep.subr.bf16.mxu0 0
        %1283 = vmatpush1.bf16.msra.mxu0 0
        %1284 = vmatprep.subr.bf16.mxu0 0
        %1285 = vmatpush1.bf16.msra.mxu0 0
        %1286 = vmatprep.subr.bf16.mxu0 0
        %1287 = vmatpush1.bf16.msra.mxu0 0
        %1288 = vmatprep.subr.bf16.mxu0 0
        %1289 = vmatpush1.bf16.msra.mxu0 0
        %1290 = vmatprep.subr.bf16.mxu0 0
        %1291 = vmatpush1.bf16.msra.mxu0 0
        %1292 = vmatprep.subr.bf16.mxu0 0
        %1293 = vmatpush1.bf16.msra.mxu0 0
        %1294 = vmatprep.subr.bf16.mxu0 0
        %1295 = vmatpush1.bf16.msra.mxu0 0
        %1296 = vmatprep.subr.bf16.mxu0 0
        %1297 = vmatpush1.bf16.msra.mxu0 0
        %1298 = vmatprep.subr.bf16.mxu0 0
        %1299 = vmatpush1.bf16.msra.mxu0 0
        %1300 = vmatprep.subr.bf16.mxu0 0
        %1301 = vmatpush1.bf16.msra.mxu0 0
        %1302 = vmatprep.subr.bf16.mxu0 0
        %1303 = vmatpush1.bf16.msra.mxu0 0
        %1304 = vmatprep.mubr.bf16.mxu0 0
        %1305 = vmatmul.mubr.bf16.gmra.mrb[0].mxu0 %v1267
        %v1306 = vpop.f32.mrb[0].mxu0
        %v1307 = vadd.f32 0.0, %v1306
        %v1308 = vpop.f32.mrb[0].mxu0
        %v1309 = vpop.f32.mrb[0].mxu0
        %v1310 = vpop.f32.mrb[0].mxu0
        %1311 = vdwg.mxu0
        %v1312 = vmul.f32 %v1307, %v1262
        %v1313 = vpack.c.bf16 %v1312, %v1312
        %v1315 = vunpack.c.l.b16 %v1313
        %v1316 = vpack.c.b16 %v1315, %v1315
        %1317 = vrot.lane.b32.xlu0 %v1316, 24
        %v1318 = vpop.permute.xlu0 %1317
        %vm1320 = vcmask 257216
        %1321 = vst.msk [vmem:[#allocation7] sm:$0xf] %vm1320, %v1318
        %v1322 = vld [vmem:[#allocation8] sm:$0xff]
        %v1323 = vld [vmem:[#allocation7] sm:$0xf]
        %v1324 = vld [vmem:[#allocation18] sm:$0xf]
        %v1325 = vld [vmem:[#allocation18 + $0x4] sm:$0xf]
        %v1326 = vld [vmem:[#allocation18 + $0x8] sm:$0xf]
        %v1327 = vld [vmem:[#allocation18 + $0xc] sm:$0xf]
        %v1332 = vunpack.c.l.b16 %v1324
        %v1333 = vunpack.c.l.b16 %v1325
        %v1334 = vunpack.c.l.b16 %v1326
        %v1335 = vunpack.c.l.b16 %v1327
        %v1336 = vpack.c.b16 %v1333, %v1332
        %v1337 = vpack.c.b16 %v1335, %v1334
        %v1341 = vsel %vm797, %v1323, 0
        %1343 = vmatprep.subr.bf16.mxu0 0
        %1344 = vmatpush1.bf16.msra.mxu0 %v1336
        %1345 = vmatprep.subr.bf16.mxu0 0
        %1346 = vmatpush1.bf16.msra.mxu0 %v1337
        %1347 = vmatprep.subr.bf16.mxu0 0
        %1348 = vmatpush1.bf16.msra.mxu0 0
        %1349 = vmatprep.subr.bf16.mxu0 0
        %1350 = vmatpush1.bf16.msra.mxu0 0
        %1351 = vmatprep.subr.bf16.mxu0 0
        %1352 = vmatpush1.bf16.msra.mxu0 0
        %1353 = vmatprep.subr.bf16.mxu0 0
        %1354 = vmatpush1.bf16.msra.mxu0 0
        %1355 = vmatprep.subr.bf16.mxu0 0
        %1356 = vmatpush1.bf16.msra.mxu0 0
        %1357 = vmatprep.subr.bf16.mxu0 0
        %1358 = vmatpush1.bf16.msra.mxu0 0
        %1359 = vmatprep.subr.bf16.mxu0 0
        %1360 = vmatpush1.bf16.msra.mxu0 0
        %1361 = vmatprep.subr.bf16.mxu0 0
        %1362 = vmatpush1.bf16.msra.mxu0 0
        %1363 = vmatprep.subr.bf16.mxu0 0
        %1364 = vmatpush1.bf16.msra.mxu0 0
        %1365 = vmatprep.subr.bf16.mxu0 0
        %1366 = vmatpush1.bf16.msra.mxu0 0
        %1367 = vmatprep.subr.bf16.mxu0 0
        %1368 = vmatpush1.bf16.msra.mxu0 0
        %1369 = vmatprep.subr.bf16.mxu0 0
        %1370 = vmatpush1.bf16.msra.mxu0 0
        %1371 = vmatprep.subr.bf16.mxu0 0
        %1372 = vmatpush1.bf16.msra.mxu0 0
        %1373 = vmatprep.subr.bf16.mxu0 0
        %1374 = vmatpush1.bf16.msra.mxu0 0
        %1375 = vmatprep.mubr.bf16.mxu0 0
        %1376 = vmatmul.mubr.bf16.gmra.mrb[0].mxu0 %v1341
        %v1377 = vpop.f32.mrb[0].mxu0
        %v1378 = vadd.f32 0.0, %v1377
        %v1379 = vpop.f32.mrb[0].mxu0
        %v1380 = vpop.f32.mrb[0].mxu0
        %v1381 = vpop.f32.mrb[0].mxu0
        %1382 = vdwg.mxu0
        %v1383 = vadd.f32 %v1322, %v1378
        %1384 = vst.msk [vmem:[#allocation8] sm:$0xff] %vm797, %v1383
        // Predicated region
        $region97: #{tpu_custom_call.1} parent=59 // pred_check
          %p1385 = pneg %p528
        $region98: #{tpu_custom_call.1} parent=59 // pred_check_branch
          %1387 = sbr.rel (%p1385) target = $region100
        $region99: #{tpu_custom_call.1} parent=59 // pred_region
          %v1388 = vld [vmem:[#allocation8] sm:$0xff]
          %1389 = vst.msk [vmem:[%s520] sm:$0xff] %vm797, %v1388
        $region100: #{tpu_custom_call.1} parent=59 // pred_fallthru
          _
        %s1390 = sand.u32 %s306, 1
        %s1391 = scalar_lea.sflag [#allocation11], %s1390
        %s1392 = sand.u32 %s306, 1
        %s1393 = smul.addr %s1392, 8
        %s1394 = scalar_lea.vmem [#allocation20], %s1393
        // Predicated region
        $region101: #{tpu_custom_call.1} parent=59 // pred_check
          %p1395 = pneg %p316
        $region102: #{tpu_custom_call.1} parent=59 // pred_check_branch
          %1397 = sbr.rel (%p1395) target = $region104
        $region103: #{tpu_custom_call.1} parent=59 // pred_region
          %s1399 = ssub.s32 128, 128
          %1400 = vsyncadd %s1391, %s1399
          %s1401 = sadd.s32 %s36, %s35
          %s1402 = smul.addr %s1401, 128
          %s1403 = scalar_lea.hbm %s10, %s1402
          %s1405 = sshll.u32 %s1394, 4
          %s1406 = int_to_ptr.vmem [resolvable:$true] %s1405
          %1408 = dma.vmem_to_hbm [thread:$0]  %s1406, 128, %s1403, %s1391
        $region104: #{tpu_custom_call.1} parent=59 // pred_fallthru
          _
      $region60: #{tpu_custom_call.1} parent=5 // pred_fallthru
        _
      %p1409 = scmp.le.s32.totalorder 2, %s25
      // Predicated region
      $region105: #{tpu_custom_call.1} parent=5 // pred_check
        %p1410 = pneg %p1409
      $region106: #{tpu_custom_call.1} parent=5 // pred_check_branch
        %1412 = sbr.rel (%p1410) target = $region108
      $region107: #{tpu_custom_call.1} parent=5 // pred_region
        %s1413 = ssub.s32 %s25, 2
        // Predicated region
        $region109: #{tpu_custom_call.1} parent=107 // pred_check
          %p1414 = pneg %p322
        $region110: #{tpu_custom_call.1} parent=107 // pred_check_branch
          %1416 = sbr.rel (%p1414) target = $region112
        $region111: #{tpu_custom_call.1} parent=107 // pred_region
          %s1417 = sand.u32 %s307, 1
          %s1418 = scalar_lea.sflag [#allocation11], %s1417
          %s1419 = sand.u32 %s307, 1
          %s1420 = smul.addr %s1419, 8
          %s1421 = scalar_lea.vmem [#allocation20], %s1420
          %1422 = dma.done %s1418, 128
        $region112: #{tpu_custom_call.1} parent=107 // pred_fallthru
          _
      $region108: #{tpu_custom_call.1} parent=5 // pred_fallthru
        _
    $region6: #{tpu_custom_call.1} parent=1 // loop_footer
      %s29 = sadd.s32 1, %s25
    $region7: #{tpu_custom_call.1} parent=1 // loop_footer_branch
      %24 = sbr.rel target = $region3
    $region8: #{tpu_custom_call.1} parent=1 // loop_exit
      _
    %1423 = vsyncpa [#allocation10], 1
    %s1424 = scalar_lea.sflag [#allocation10], 1
    %1425 = vsyncpa %s1424, 1
    %1426 = vsyncpa [#allocation13], 1
    %1427 = vsyncpa [#allocation16], 1
    %1428 = vsyncpa [#allocation19], 1
    %1429 = vsyncpa [#allocation11], 1
    %s1430 = scalar_lea.sflag [#allocation11], 1
    %1431 = vsyncpa %s1430, 1

// kernel: tpu_custom_call.1
$region0: #{tpu_custom_call.1}
  #allocation0 [shape = 'u32[]', space=smem, size = 0x4, offset = 0x4, fixed_abs, tag = 'smem constant byte address 0x4 - core index']
  #allocation1 [shape = 'u32[144,128]{1,0:T(1,128)}', space=vmem, size = 0x12000, scoped, tag = 'internal scratch']
  #allocation2 [shape = 'bf16[8,32]{1,0:T(8,128)(2,1)}', space=vmem, size = 0x800, scoped, tag = 'scratch operand']
  #allocation3 [shape = 'bf16[8,32]{1,0:T(8,128)(2,1)}', space=vmem, size = 0x800, scoped, tag = 'scratch operand']
  #allocation4 [shape = 'bf16[8,32]{1,0:T(8,128)(2,1)}', space=vmem, size = 0x800, scoped, tag = 'scratch operand']
  #allocation5 [shape = 'bf16[1,8,32]{2,1,0:T(8,128)(2,1)}', space=vmem, size = 0x800, scoped, tag = 'scratch operand']
  #allocation6 [shape = 'bf16[1,8,32]{2,1,0:T(8,128)(2,1)}', space=vmem, size = 0x800, scoped, tag = 'scratch operand']
  #allocation7 [shape = 'bf16[8,32]{1,0:T(8,128)(2,1)}', space=vmem, size = 0x800, scoped, tag = 'scratch operand']
  #allocation8 [shape = 'f32[8,32]{1,0:T(8,128)}', space=vmem, size = 0x1000, scoped, tag = 'scratch operand']
  %s0 = inlined_call_operand.hbm [shape: f32[2,8,32], index: 0, kind: input, shape index: {}]
  %s1 = inlined_call_operand.hbm [shape: f32[2,8,32], index: 1, kind: input, shape index: {}]
  %s2 = inlined_call_operand.hbm [shape: f32[2,8,32], index: 2, kind: input, shape index: {}]
  %s3 = inlined_call_operand.vmem [shape: f32[1,32], index: 3, kind: input, shape index: {}]
  %s4 = inlined_call_operand.vmem [shape: f32[1,32], index: 4, kind: input, shape index: {}]
  %s5 = inlined_call_operand.vmem [shape: bf16[1,32,32], index: 5, kind: input, shape index: {}]
  %s6 = inlined_call_operand.hbm [shape: bf16[1,32,32], index: 6, kind: input, shape index: {}]
  %s7 = inlined_call_operand.hbm [shape: bf16[1,32,32], index: 7, kind: input, shape index: {}]
  %s8 = inlined_call_operand.hbm [shape: bf16[1,32,32], index: 8, kind: input, shape index: {}]
  %s9 = inlined_call_operand.vmem [shape: f32[1,32], index: 9, kind: input, shape index: {}]
  %s10 = inlined_call_operand.hbm [shape: f32[2,8,32], index: 10, kind: output, shape index: {}]
  %s11 = sld [smem:[#allocation0]]
  $region113: #{tpu_custom_call.1} parent=0
    _
  %s13 = ssub.s32 1, %s11
  %s14 = scalar_select 0, %s13, %s11
  $region1: #{tpu_custom_call.1} parent=0
    #allocation9 [shape = 'u8[8192]{0}', space=vmem, size = 0x2000, scoped, tag = 'input window, operand 0']
    #allocation10 [shape = 's32[2]{0}', space=sflag, size = 0x8, scoped, tag = 'scoped memory for tpu_custom_call.1']
    #allocation11 [shape = 's32[2]{0}', space=sflag, size = 0x8, scoped, tag = 'scoped memory for tpu_custom_call.1']
    #allocation12 [shape = 'u8[8192]{0}', space=vmem, size = 0x2000, scoped, tag = 'input window, operand 1']
    #allocation13 [shape = 's32[2]{0}', space=sflag, size = 0x8, scoped, tag = 'scoped memory for tpu_custom_call.1']
    #allocation14 [shape = 'u8[8192]{0}', space=vmem, size = 0x2000, scoped, tag = 'input window, operand 2']
    #allocation15 [shape = 'u8[8192]{0}', space=vmem, size = 0x2000, scoped, tag = 'input window, operand 6, single buffered']
    #allocation16 [shape = 's32[1]{0}', space=sflag, size = 0x4, scoped, tag = 'scoped memory for tpu_custom_call.1']
    #allocation17 [shape = 'u8[8192]{0}', space=vmem, size = 0x2000, scoped, tag = 'input window, operand 7, single buffered']
    #allocation18 [shape = 'u8[8192]{0}', space=vmem, size = 0x2000, scoped, tag = 'input window, operand 8, single buffered']
    #allocation19 [shape = 's32[1]{0}', space=sflag, size = 0x4, scoped, tag = 'scoped memory for tpu_custom_call.1']
    #allocation20 [shape = 'u8[8192]{0}', space=vmem, size = 0x2000, scoped, tag = 'output window, operand 0']
    %15 = vsyncpa [#allocation10], 0
    %s16 = scalar_lea.sflag [#allocation10], 1
    %17 = vsyncpa %s16, 0
    %18 = vsyncpa [#allocation13], 0
    %s19 = scalar_lea.sflag [#allocation13], 1
    %20 = vsyncpa %s19, 0
    %21 = vsyncpa [#allocation16], 0
    %22 = vsyncpa [#allocation19], 0
    %23 = vsyncpa [#allocation11], 0
    %s24 = scalar_lea.sflag [#allocation11], 1
    %25 = vsyncpa %s24, 0
    loop: start=0, step=1, limit=4
    $region2: #{tpu_custom_call.1} parent=1 // loop_pre_header
      _
    $region3: #{tpu_custom_call.1} parent=1 // loop_header
      %s27 = sphi 0, %s31
      %p28 = scmp.ge.s32.totalorder %s27, 4
      %s34 = sphi 0, %s53
      %s35 = sphi 0, %s49
      %s36 = sphi 0, %s45
      %s37 = sphi 0, %s34
      %s38 = sphi 0, %s35
      %s39 = sphi 0, %s36
      %s40 = sphi 0, %s37
      %s41 = sphi 0, %s38
      %s42 = sphi 0, %s39
      %s58 = sphi 0, %s60
      %s61 = sphi 0, %s58
      %s62 = sphi 0, %s61
      %s78 = sphi 0, %s62
      %s84 = sphi 0, %s86
      %s87 = sphi 0, %s84
      %s88 = sphi 0, %s87
      %s104 = sphi 0, %s88
      %s110 = sphi 0, %s112
      %s113 = sphi 0, %s110
      %s114 = sphi 0, %s113
      %s130 = sphi 0, %s114
      %s134 = sphi 0, %s134
      %s136 = sphi 0, %s134
      %s137 = sphi 0, %s136
      %s151 = sphi 0, %s137
      %s155 = sphi 0, %s155
      %s157 = sphi 0, %s155
      %s158 = sphi 0, %s157
      %s172 = sphi 0, %s158
      %s178 = sphi 0, %s180
      %s181 = sphi 0, %s178
      %s182 = sphi 0, %s181
      %s198 = sphi 0, %s182
      %s204 = sphi 0, %s206
      %s207 = sphi 0, %s204
      %s208 = sphi 0, %s207
      %s224 = sphi 0, %s208
      %s230 = sphi 0, %s232
      %s233 = sphi 0, %s230
      %s234 = sphi 0, %s233
      %s250 = sphi 0, %s234
      %s256 = sphi 0, %s258
      %s259 = sphi 0, %s256
      %s260 = sphi 0, %s259
      %s276 = sphi 0, %s260
      %s280 = sphi 0, %s280
      %s282 = sphi 0, %s280
      %s283 = sphi 0, %s282
      %s297 = sphi 0, %s283
      %s305 = sphi 0, %s307
      %s308 = sphi 0, %s305
      %s309 = sphi 0, %s308
      %s325 = sphi 0, %s309
    $region4: #{tpu_custom_call.1} parent=1 // loop_header_branch
      %30 = sbr.rel (%p28) target = $region8
    $region5: #{tpu_custom_call.1} parent=1 // loop_body
      %s32 = ssub.s32 %s27, 1
      %s33 = ssub.s32 %s27, 2
      %s43 = sadd.s32 1, %s36
      %p44 = scmp.ge.s32.totalorder %s43, 1
      %s45 = scalar_select %p44, 0, %s43
      %s46 = sadd.s32 1, %s35
      %s47 = scalar_select %p44, %s46, %s35
      %p48 = scmp.ge.s32.totalorder %s47, 1
      %s49 = scalar_select %p48, 0, %s47
      %s50 = sadd.s32 1, %s34
      %s51 = scalar_select %p48, %s50, %s34
      %p52 = scmp.ge.s32.totalorder %s51, 2
      %s53 = scalar_select %p52, 0, %s51
      %s54 = ssub.s32 %s34, %s53
      %s55 = ssub.s32 %s35, %s49
      %s56 = sor.u32 %s54, %s55
      %p57 = scmp.eq.s32.totalorder %s56, 0
      %s59 = sadd.s32 %s58, 1
      %s60 = scalar_select %p57, %s58, %s59
      %p63 = pneg %p57
      %p64 = scmp.eq.s32.totalorder %s27, 1
      %p65 = por %p63, %p64
      %p66 = scmp.ne.s32.totalorder %s58, %s61
      %p67 = scmp.eq.s32.totalorder %s27, 0
      %p68 = por %p66, %p67
      %p69 = scmp.ne.s32.totalorder %s58, %s61
      %p70 = scmp.eq.s32.totalorder %s32, 1
      %p71 = por %p69, %p70
      %p72 = scmp.ne.s32.totalorder %s61, %s62
      %p73 = scmp.eq.s32.totalorder %s32, 0
      %p74 = por %p72, %p73
      %p75 = scmp.ne.s32.totalorder %s61, %s62
      %p76 = scmp.eq.s32.totalorder %s33, 1
      %p77 = por %p75, %p76
      %p79 = scmp.ne.s32.totalorder %s62, %s78
      %p80 = scmp.eq.s32.totalorder %s33, 0
      %p81 = por %p79, %p80
      %s82 = ssub.s32 %s34, %s53
      %p83 = scmp.eq.s32.totalorder %s82, 0
      %s85 = sadd.s32 %s84, 1
      %s86 = scalar_select %p83, %s84, %s85
      %p89 = pneg %p83
      %p90 = scmp.eq.s32.totalorder %s27, 1
      %p91 = por %p89, %p90
      %p92 = scmp.ne.s32.totalorder %s84, %s87
      %p93 = scmp.eq.s32.totalorder %s27, 0
      %p94 = por %p92, %p93
      %p95 = scmp.ne.s32.totalorder %s84, %s87
      %p96 = scmp.eq.s32.totalorder %s32, 1
      %p97 = por %p95, %p96
      %p98 = scmp.ne.s32.totalorder %s87, %s88
      %p99 = scmp.eq.s32.totalorder %s32, 0
      %p100 = por %p98, %p99
      %p101 = scmp.ne.s32.totalorder %s87, %s88
      %p102 = scmp.eq.s32.totalorder %s33, 1
      %p103 = por %p101, %p102
      %p105 = scmp.ne.s32.totalorder %s88, %s104
      %p106 = scmp.eq.s32.totalorder %s33, 0
      %p107 = por %p105, %p106
      %s108 = ssub.s32 %s34, %s53
      %p109 = scmp.eq.s32.totalorder %s108, 0
      %s111 = sadd.s32 %s110, 1
      %s112 = scalar_select %p109, %s110, %s111
      %p115 = pneg %p109
      %p116 = scmp.eq.s32.totalorder %s27, 1
      %p117 = por %p115, %p116
      %p118 = scmp.ne.s32.totalorder %s110, %s113
      %p119 = scmp.eq.s32.totalorder %s27, 0
      %p120 = por %p118, %p119
      %p121 = scmp.ne.s32.totalorder %s110, %s113
      %p122 = scmp.eq.s32.totalorder %s32, 1
      %p123 = por %p121, %p122
      %p124 = scmp.ne.s32.totalorder %s113, %s114
      %p125 = scmp.eq.s32.totalorder %s32, 0
      %p126 = por %p124, %p125
      %p127 = scmp.ne.s32.totalorder %s113, %s114
      %p128 = scmp.eq.s32.totalorder %s33, 1
      %p129 = por %p127, %p128
      %p131 = scmp.ne.s32.totalorder %s114, %s130
      %p132 = scmp.eq.s32.totalorder %s33, 0
      %p133 = por %p131, %p132
      %s135 = sadd.s32 %s134, 1
      %p138 = scmp.eq.s32.totalorder %s27, 1
      %p139 = scmp.ne.s32.totalorder %s134, %s136
      %p140 = scmp.eq.s32.totalorder %s27, 0
      %p141 = por %p139, %p140
      %p142 = scmp.ne.s32.totalorder %s134, %s136
      %p143 = scmp.eq.s32.totalorder %s32, 1
      %p144 = por %p142, %p143
      %p145 = scmp.ne.s32.totalorder %s136, %s137
      %p146 = scmp.eq.s32.totalorder %s32, 0
      %p147 = por %p145, %p146
      %p148 = scmp.ne.s32.totalorder %s136, %s137
      %p149 = scmp.eq.s32.totalorder %s33, 1
      %p150 = por %p148, %p149
      %p152 = scmp.ne.s32.totalorder %s137, %s151
      %p153 = scmp.eq.s32.totalorder %s33, 0
      %p154 = por %p152, %p153
      %s156 = sadd.s32 %s155, 1
      %p159 = scmp.eq.s32.totalorder %s27, 1
      %p160 = scmp.ne.s32.totalorder %s155, %s157
      %p161 = scmp.eq.s32.totalorder %s27, 0
      %p162 = por %p160, %p161
      %p163 = scmp.ne.s32.totalorder %s155, %s157
      %p164 = scmp.eq.s32.totalorder %s32, 1
      %p165 = por %p163, %p164
      %p166 = scmp.ne.s32.totalorder %s157, %s158
      %p167 = scmp.eq.s32.totalorder %s32, 0
      %p168 = por %p166, %p167
      %p169 = scmp.ne.s32.totalorder %s157, %s158
      %p170 = scmp.eq.s32.totalorder %s33, 1
      %p171 = por %p169, %p170
      %p173 = scmp.ne.s32.totalorder %s158, %s172
      %p174 = scmp.eq.s32.totalorder %s33, 0
      %p175 = por %p173, %p174
      %s176 = ssub.s32 %s36, %s45
      %p177 = scmp.eq.s32.totalorder %s176, 0
      %s179 = sadd.s32 %s178, 1
      %s180 = scalar_select %p177, %s178, %s179
      %p183 = pneg %p177
      %p184 = scmp.eq.s32.totalorder %s27, 1
      %p185 = por %p183, %p184
      %p186 = scmp.ne.s32.totalorder %s178, %s181
      %p187 = scmp.eq.s32.totalorder %s27, 0
      %p188 = por %p186, %p187
      %p189 = scmp.ne.s32.totalorder %s178, %s181
      %p190 = scmp.eq.s32.totalorder %s32, 1
      %p191 = por %p189, %p190
      %p192 = scmp.ne.s32.totalorder %s181, %s182
      %p193 = scmp.eq.s32.totalorder %s32, 0
      %p194 = por %p192, %p193
      %p195 = scmp.ne.s32.totalorder %s181, %s182
      %p196 = scmp.eq.s32.totalorder %s33, 1
      %p197 = por %p195, %p196
      %p199 = scmp.ne.s32.totalorder %s182, %s198
      %p200 = scmp.eq.s32.totalorder %s33, 0
      %p201 = por %p199, %p200
      %s202 = ssub.s32 %s36, %s45
      %p203 = scmp.eq.s32.totalorder %s202, 0
      %s205 = sadd.s32 %s204, 1
      %s206 = scalar_select %p203, %s204, %s205
      %p209 = pneg %p203
      %p210 = scmp.eq.s32.totalorder %s27, 1
      %p211 = por %p209, %p210
      %p212 = scmp.ne.s32.totalorder %s204, %s207
      %p213 = scmp.eq.s32.totalorder %s27, 0
      %p214 = por %p212, %p213
      %p215 = scmp.ne.s32.totalorder %s204, %s207
      %p216 = scmp.eq.s32.totalorder %s32, 1
      %p217 = por %p215, %p216
      %p218 = scmp.ne.s32.totalorder %s207, %s208
      %p219 = scmp.eq.s32.totalorder %s32, 0
      %p220 = por %p218, %p219
      %p221 = scmp.ne.s32.totalorder %s207, %s208
      %p222 = scmp.eq.s32.totalorder %s33, 1
      %p223 = por %p221, %p222
      %p225 = scmp.ne.s32.totalorder %s208, %s224
      %p226 = scmp.eq.s32.totalorder %s33, 0
      %p227 = por %p225, %p226
      %s228 = ssub.s32 %s36, %s45
      %p229 = scmp.eq.s32.totalorder %s228, 0
      %s231 = sadd.s32 %s230, 1
      %s232 = scalar_select %p229, %s230, %s231
      %p235 = pneg %p229
      %p236 = scmp.eq.s32.totalorder %s27, 1
      %p237 = por %p235, %p236
      %p238 = scmp.ne.s32.totalorder %s230, %s233
      %p239 = scmp.eq.s32.totalorder %s27, 0
      %p240 = por %p238, %p239
      %p241 = scmp.ne.s32.totalorder %s230, %s233
      %p242 = scmp.eq.s32.totalorder %s32, 1
      %p243 = por %p241, %p242
      %p244 = scmp.ne.s32.totalorder %s233, %s234
      %p245 = scmp.eq.s32.totalorder %s32, 0
      %p246 = por %p244, %p245
      %p247 = scmp.ne.s32.totalorder %s233, %s234
      %p248 = scmp.eq.s32.totalorder %s33, 1
      %p249 = por %p247, %p248
      %p251 = scmp.ne.s32.totalorder %s234, %s250
      %p252 = scmp.eq.s32.totalorder %s33, 0
      %p253 = por %p251, %p252
      %s254 = ssub.s32 %s36, %s45
      %p255 = scmp.eq.s32.totalorder %s254, 0
      %s257 = sadd.s32 %s256, 1
      %s258 = scalar_select %p255, %s256, %s257
      %p261 = pneg %p255
      %p262 = scmp.eq.s32.totalorder %s27, 1
      %p263 = por %p261, %p262
      %p264 = scmp.ne.s32.totalorder %s256, %s259
      %p265 = scmp.eq.s32.totalorder %s27, 0
      %p266 = por %p264, %p265
      %p267 = scmp.ne.s32.totalorder %s256, %s259
      %p268 = scmp.eq.s32.totalorder %s32, 1
      %p269 = por %p267, %p268
      %p270 = scmp.ne.s32.totalorder %s259, %s260
      %p271 = scmp.eq.s32.totalorder %s32, 0
      %p272 = por %p270, %p271
      %p273 = scmp.ne.s32.totalorder %s259, %s260
      %p274 = scmp.eq.s32.totalorder %s33, 1
      %p275 = por %p273, %p274
      %p277 = scmp.ne.s32.totalorder %s260, %s276
      %p278 = scmp.eq.s32.totalorder %s33, 0
      %p279 = por %p277, %p278
      %s281 = sadd.s32 %s280, 1
      %p284 = scmp.eq.s32.totalorder %s27, 1
      %p285 = scmp.ne.s32.totalorder %s280, %s282
      %p286 = scmp.eq.s32.totalorder %s27, 0
      %p287 = por %p285, %p286
      %p288 = scmp.ne.s32.totalorder %s280, %s282
      %p289 = scmp.eq.s32.totalorder %s32, 1
      %p290 = por %p288, %p289
      %p291 = scmp.ne.s32.totalorder %s282, %s283
      %p292 = scmp.eq.s32.totalorder %s32, 0
      %p293 = por %p291, %p292
      %p294 = scmp.ne.s32.totalorder %s282, %s283
      %p295 = scmp.eq.s32.totalorder %s33, 1
      %p296 = por %p294, %p295
      %p298 = scmp.ne.s32.totalorder %s283, %s297
      %p299 = scmp.eq.s32.totalorder %s33, 0
      %p300 = por %p298, %p299
      %s301 = ssub.s32 %s34, %s53
      %s302 = ssub.s32 %s35, %s49
      %s303 = sor.u32 %s301, %s302
      %p304 = scmp.eq.s32.totalorder %s303, 0
      %s306 = sadd.s32 %s305, 1
      %s307 = scalar_select %p304, %s305, %s306
      %p310 = pneg %p304
      %p311 = scmp.eq.s32.totalorder %s27, 1
      %p312 = por %p310, %p311
      %p313 = scmp.ne.s32.totalorder %s305, %s308
      %p314 = scmp.eq.s32.totalorder %s27, 0
      %p315 = por %p313, %p314
      %p316 = scmp.ne.s32.totalorder %s305, %s308
      %p317 = scmp.eq.s32.totalorder %s32, 1
      %p318 = por %p316, %p317
      %p319 = scmp.ne.s32.totalorder %s308, %s309
      %p320 = scmp.eq.s32.totalorder %s32, 0
      %p321 = por %p319, %p320
      %p322 = scmp.ne.s32.totalorder %s308, %s309
      %p323 = scmp.eq.s32.totalorder %s33, 1
      %p324 = por %p322, %p323
      %p326 = scmp.ne.s32.totalorder %s309, %s325
      %p327 = scmp.eq.s32.totalorder %s33, 0
      %p328 = por %p326, %p327
      %p329 = scmp.le.s32.totalorder 1, %s27
      %p330 = scmp.lt.s32.totalorder %s27, 3
      %p331 = pnand %p329, %p330
      %p332 = pneg %p331
      // Predicated region
      $region9: #{tpu_custom_call.1} parent=5 // pred_check
        _
      $region10: #{tpu_custom_call.1} parent=5 // pred_check_branch
        %334 = sbr.rel (%p331) target = $region12
      $region11: #{tpu_custom_call.1} parent=5 // pred_region
        %s335 = ssub.s32 %s27, 1
        // Predicated region
        $region13: #{tpu_custom_call.1} parent=11 // pred_check
          %p336 = pneg %p147
        $region14: #{tpu_custom_call.1} parent=11 // pred_check_branch
          %338 = sbr.rel (%p336) target = $region16
        $region15: #{tpu_custom_call.1} parent=11 // pred_region
          _
        $region16: #{tpu_custom_call.1} parent=11 // pred_fallthru
          _
        // Predicated region
        $region17: #{tpu_custom_call.1} parent=11 // pred_check
          %p339 = pneg %p168
        $region18: #{tpu_custom_call.1} parent=11 // pred_check_branch
          %341 = sbr.rel (%p339) target = $region20
        $region19: #{tpu_custom_call.1} parent=11 // pred_region
          _
        $region20: #{tpu_custom_call.1} parent=11 // pred_fallthru
          _
        // Predicated region
        $region21: #{tpu_custom_call.1} parent=11 // pred_check
          %p342 = pneg %p194
        $region22: #{tpu_custom_call.1} parent=11 // pred_check_branch
          %344 = sbr.rel (%p342) target = $region24
        $region23: #{tpu_custom_call.1} parent=11 // pred_region
          %p345 = scmp.lt.s32.totalorder %s39, 0
          %s346 = scalar_select %p345, %s39, 0
          %s347 = smul.addr %s346, 4
          %s348 = smul.addr %s347, 4
          %s349 = scalar_lea.vmem %s5, %s348
        $region24: #{tpu_custom_call.1} parent=11 // pred_fallthru
          _
        // Predicated region
        $region25: #{tpu_custom_call.1} parent=11 // pred_check
          %p350 = pneg %p220
        $region26: #{tpu_custom_call.1} parent=11 // pred_check_branch
          %352 = sbr.rel (%p350) target = $region28
        $region27: #{tpu_custom_call.1} parent=11 // pred_region
          %s354 = ssub.s32 256, 256
          %355 = vsyncadd [#allocation16], %s354
          %s356 = smul.addr %s39, 4
          %s357 = smul.addr %s356, 64
          %s358 = scalar_lea.hbm %s6, %s357
          %s359 = sshll.u32 [#allocation15], 4
          %s360 = int_to_ptr.vmem [resolvable:$true] %s359
          %365 = dma.hbm_to_vmem [thread:$0]  %s358, 256, %s360, [#allocation16], 64, 64, 4
        $region28: #{tpu_custom_call.1} parent=11 // pred_fallthru
          _
        // Predicated region
        $region29: #{tpu_custom_call.1} parent=11 // pred_check
          %p366 = pneg %p246
        $region30: #{tpu_custom_call.1} parent=11 // pred_check_branch
          %368 = sbr.rel (%p366) target = $region32
        $region31: #{tpu_custom_call.1} parent=11 // pred_region
          %s370 = ssub.s32 256, 256
          %371 = vsyncadd [#allocation16], %s370
          %s372 = smul.addr %s39, 4
          %s373 = smul.addr %s372, 64
          %s374 = scalar_lea.hbm %s7, %s373
          %s375 = sshll.u32 [#allocation17], 4
          %s376 = int_to_ptr.vmem [resolvable:$true] %s375
          %381 = dma.hbm_to_vmem [thread:$0]  %s374, 256, %s376, [#allocation16], 64, 64, 4
        $region32: #{tpu_custom_call.1} parent=11 // pred_fallthru
          _
        // Predicated region
        $region33: #{tpu_custom_call.1} parent=11 // pred_check
          %p382 = pneg %p272
        $region34: #{tpu_custom_call.1} parent=11 // pred_check_branch
          %384 = sbr.rel (%p382) target = $region36
        $region35: #{tpu_custom_call.1} parent=11 // pred_region
          %s386 = ssub.s32 256, 256
          %387 = vsyncadd [#allocation19], %s386
          %s388 = smul.addr %s39, 4
          %s389 = smul.addr %s388, 64
          %s390 = scalar_lea.hbm %s8, %s389
          %s391 = sshll.u32 [#allocation18], 4
          %s392 = int_to_ptr.vmem [resolvable:$true] %s391
          %397 = dma.hbm_to_vmem [thread:$0]  %s390, 256, %s392, [#allocation19], 64, 64, 4
        $region36: #{tpu_custom_call.1} parent=11 // pred_fallthru
          _
        // Predicated region
        $region37: #{tpu_custom_call.1} parent=11 // pred_check
          %p398 = pneg %p293
        $region38: #{tpu_custom_call.1} parent=11 // pred_check_branch
          %400 = sbr.rel (%p398) target = $region40
        $region39: #{tpu_custom_call.1} parent=11 // pred_region
          _
        $region40: #{tpu_custom_call.1} parent=11 // pred_fallthru
          _
      $region12: #{tpu_custom_call.1} parent=5 // pred_fallthru
        _
      %p401 = scmp.lt.s32.totalorder %s27, 2
      // Predicated region
      $region41: #{tpu_custom_call.1} parent=5 // pred_check
        %p402 = pneg %p401
      $region42: #{tpu_custom_call.1} parent=5 // pred_check_branch
        %404 = sbr.rel (%p402) target = $region44
      $region43: #{tpu_custom_call.1} parent=5 // pred_region
        // Predicated region
        $region45: #{tpu_custom_call.1} parent=43 // pred_check
          %p405 = pneg %p68
        $region46: #{tpu_custom_call.1} parent=43 // pred_check_branch
          %407 = sbr.rel (%p405) target = $region48
        $region47: #{tpu_custom_call.1} parent=43 // pred_region
          %s408 = sand.u32 %s58, 1
          %s409 = scalar_lea.sflag [#allocation10], %s408
          %s410 = sand.u32 %s58, 1
          %s411 = smul.addr %s410, 8
          %s412 = scalar_lea.vmem [#allocation9], %s411
          %s414 = ssub.s32 128, 128
          %415 = vsyncadd %s409, %s414
          %s416 = sadd.s32 %s35, %s34
          %s417 = smul.addr %s416, 128
          %s418 = scalar_lea.hbm %s0, %s417
          %s420 = sshll.u32 %s412, 4
          %s421 = int_to_ptr.vmem [resolvable:$true] %s420
          %423 = dma.hbm_to_vmem [thread:$0]  %s418, 128, %s421, %s409
        $region48: #{tpu_custom_call.1} parent=43 // pred_fallthru
          _
        // Predicated region
        $region49: #{tpu_custom_call.1} parent=43 // pred_check
          %p424 = pneg %p94
        $region50: #{tpu_custom_call.1} parent=43 // pred_check_branch
          %426 = sbr.rel (%p424) target = $region52
        $region51: #{tpu_custom_call.1} parent=43 // pred_region
          %s427 = sand.u32 %s27, 1
          %s428 = scalar_lea.sflag [#allocation13], %s427
          %s429 = sand.u32 %s84, 1
          %s430 = smul.addr %s429, 8
          %s431 = scalar_lea.vmem [#allocation12], %s430
          %s433 = ssub.s32 128, 128
          %434 = vsyncadd %s428, %s433
          %s435 = smul.addr %s34, 128
          %s436 = scalar_lea.hbm %s1, %s435
          %s438 = sshll.u32 %s431, 4
          %s439 = int_to_ptr.vmem [resolvable:$true] %s438
          %441 = dma.hbm_to_vmem [thread:$0]  %s436, 128, %s439, %s428
        $region52: #{tpu_custom_call.1} parent=43 // pred_fallthru
          _
        // Predicated region
        $region53: #{tpu_custom_call.1} parent=43 // pred_check
          %p442 = pneg %p120
        $region54: #{tpu_custom_call.1} parent=43 // pred_check_branch
          %444 = sbr.rel (%p442) target = $region56
        $region55: #{tpu_custom_call.1} parent=43 // pred_region
          %s445 = sand.u32 %s27, 1
          %s446 = scalar_lea.sflag [#allocation13], %s445
          %s447 = sand.u32 %s110, 1
          %s448 = smul.addr %s447, 8
          %s449 = scalar_lea.vmem [#allocation14], %s448
          %s451 = ssub.s32 128, 128
          %452 = vsyncadd %s446, %s451
          %s453 = smul.addr %s34, 128
          %s454 = scalar_lea.hbm %s2, %s453
          %s456 = sshll.u32 %s449, 4
          %s457 = int_to_ptr.vmem [resolvable:$true] %s456
          %459 = dma.hbm_to_vmem [thread:$0]  %s454, 128, %s457, %s446
        $region56: #{tpu_custom_call.1} parent=43 // pred_fallthru
          _
      $region44: #{tpu_custom_call.1} parent=5 // pred_fallthru
        _
      %p460 = scmp.le.s32.totalorder 1, %s27
      %p461 = scmp.lt.s32.totalorder %s27, 3
      %p462 = pnand %p460, %p461
      %p463 = pneg %p462
      // Predicated region
      $region57: #{tpu_custom_call.1} parent=5 // pred_check
        _
      $region58: #{tpu_custom_call.1} parent=5 // pred_check_branch
        %465 = sbr.rel (%p462) target = $region60
      $region59: #{tpu_custom_call.1} parent=5 // pred_region
        %s466 = ssub.s32 %s27, 1
        %s467 = sand.u32 %s61, 1
        %s468 = scalar_lea.sflag [#allocation10], %s467
        %s469 = sand.u32 %s61, 1
        %s470 = smul.addr %s469, 8
        %s471 = scalar_lea.vmem [#allocation9], %s470
        // Predicated region
        $region61: #{tpu_custom_call.1} parent=59 // pred_check
          %p472 = pneg %p74
        $region62: #{tpu_custom_call.1} parent=59 // pred_check_branch
          %474 = sbr.rel (%p472) target = $region64
        $region63: #{tpu_custom_call.1} parent=59 // pred_region
          %475 = dma.done %s468, 128
        $region64: #{tpu_custom_call.1} parent=59 // pred_fallthru
          _
        %s476 = sand.u32 %s32, 1
        %s477 = scalar_lea.sflag [#allocation13], %s476
        %s478 = sand.u32 %s87, 1
        %s479 = smul.addr %s478, 8
        %s480 = scalar_lea.vmem [#allocation12], %s479
        // Predicated region
        $region65: #{tpu_custom_call.1} parent=59 // pred_check
          %p481 = pneg %p100
        $region66: #{tpu_custom_call.1} parent=59 // pred_check_branch
          %483 = sbr.rel (%p481) target = $region68
        $region67: #{tpu_custom_call.1} parent=59 // pred_region
          %484 = dma.done %s477, 128
        $region68: #{tpu_custom_call.1} parent=59 // pred_fallthru
          _
        %s485 = sand.u32 %s32, 1
        %s486 = scalar_lea.sflag [#allocation13], %s485
        %s487 = sand.u32 %s113, 1
        %s488 = smul.addr %s487, 8
        %s489 = scalar_lea.vmem [#allocation14], %s488
        // Predicated region
        $region69: #{tpu_custom_call.1} parent=59 // pred_check
          %p490 = pneg %p126
        $region70: #{tpu_custom_call.1} parent=59 // pred_check_branch
          %492 = sbr.rel (%p490) target = $region72
        $region71: #{tpu_custom_call.1} parent=59 // pred_region
          %493 = dma.done %s486, 128
        $region72: #{tpu_custom_call.1} parent=59 // pred_fallthru
          _
        // Predicated region
        $region73: #{tpu_custom_call.1} parent=59 // pred_check
          %p494 = pneg %p220
        $region74: #{tpu_custom_call.1} parent=59 // pred_check_branch
          %496 = sbr.rel (%p494) target = $region76
        $region75: #{tpu_custom_call.1} parent=59 // pred_region
          %497 = dma.done [#allocation16], 256
        $region76: #{tpu_custom_call.1} parent=59 // pred_fallthru
          _
        // Predicated region
        $region77: #{tpu_custom_call.1} parent=59 // pred_check
          %p498 = pneg %p246
        $region78: #{tpu_custom_call.1} parent=59 // pred_check_branch
          %500 = sbr.rel (%p498) target = $region80
        $region79: #{tpu_custom_call.1} parent=59 // pred_region
          %501 = dma.done [#allocation16], 256
        $region80: #{tpu_custom_call.1} parent=59 // pred_fallthru
          _
        // Predicated region
        $region81: #{tpu_custom_call.1} parent=59 // pred_check
          %p502 = pneg %p272
        $region82: #{tpu_custom_call.1} parent=59 // pred_check_branch
          %504 = sbr.rel (%p502) target = $region84
        $region83: #{tpu_custom_call.1} parent=59 // pred_region
          %505 = dma.done [#allocation19], 256
        $region84: #{tpu_custom_call.1} parent=59 // pred_fallthru
          _
        %s506 = sand.u32 %s61, 1
        %s507 = scalar_lea.sflag [#allocation10], %s506
        %s508 = sand.u32 %s61, 1
        %s509 = smul.addr %s508, 8
        %s510 = scalar_lea.vmem [#allocation9], %s509
        %p511 = pneg %p74
        %p512 = pneg %p71
        %s513 = sand.u32 %s32, 1
        %s514 = scalar_lea.sflag [#allocation13], %s513
        %s515 = sand.u32 %s87, 1
        %s516 = smul.addr %s515, 8
        %s517 = scalar_lea.vmem [#allocation12], %s516
        %p518 = pneg %p100
        %p519 = pneg %p97
        %s520 = sand.u32 %s32, 1
        %s521 = scalar_lea.sflag [#allocation13], %s520
        %s522 = sand.u32 %s113, 1
        %s523 = smul.addr %s522, 8
        %s524 = scalar_lea.vmem [#allocation14], %s523
        %p525 = pneg %p126
        %p526 = pneg %p123
        %p527 = pneg %p147
        %p528 = pneg %p144
        %p529 = pneg %p168
        %p530 = pneg %p165
        %p531 = scmp.lt.s32.totalorder %s39, 0
        %s532 = scalar_select %p531, %s39, 0
        %s533 = smul.addr %s532, 4
        %s534 = smul.addr %s533, 4
        %s535 = scalar_lea.vmem %s5, %s534
        %p536 = pneg %p194
        %p537 = pneg %p191
        %p538 = pneg %p220
        %p539 = pneg %p217
        %p540 = pneg %p246
        %p541 = pneg %p243
        %p542 = pneg %p272
        %p543 = pneg %p269
        %p544 = pneg %p293
        %p545 = pneg %p290
        %p546 = pneg %p321
        %p547 = pneg %p318
        %s548 = sand.u32 %s308, 1
        %s549 = scalar_lea.sflag [#allocation11], %s548
        %s550 = sand.u32 %s308, 1
        %s551 = smul.addr %s550, 8
        %s552 = scalar_lea.vmem [#allocation20], %s551
        %p553 = scmp.lt.s32.totalorder %s39, 0
        %s554 = scalar_select %p553, %s39, 0
        %s555 = smul.addr %s554, 4
        %s556 = smul.addr %s555, 4
        %s557 = scalar_lea.vmem %s5, %s556
        %p559 = scmp.eq.s32.totalorder %s38, 0
        %p560 = scmp.eq.s32.totalorder %s39, 0
        %p561 = pnand %p559, %p560
        %p562 = pneg %p561
        // Predicated region
        $region85: #{tpu_custom_call.1} parent=59 // pred_check
          _
        $region86: #{tpu_custom_call.1} parent=59 // pred_check_branch
          %564 = sbr.rel (%p561) target = $region88
        $region87: #{tpu_custom_call.1} parent=59 // pred_region
          %v565 = vld [vmem:[%s480] sm:$0xff]
          %vm566 = vcmask 261120
          %v567 = vsel %vm566, %v565, 0.0
          %568 = vadd.xlane.f32.xlu0 %v567
          %v569 = vpop.xlane.xlu0 %568
          %v570 = vrcp.pop 32.0
          %v571 = vmul.f32 %v569, %v570
          %v572 = vsub.f32 %v565, %v571
          %v573 = vmul.f32 %v572, %v572
          %v574 = vsel %vm566, %v573, 0.0
          %575 = vadd.xlane.f32.xlu0 %v574
          %v576 = vpop.xlane.xlu0 %575
          %v577 = vmul.f32 %v576, %v570
          %v578 = vadd.f32 %v577, 1e-05
          %v579 = vrsqrt.pop %v578
          %v580 = vmul.f32 %v572, %v579
          %v581 = vld [vmem:[%s3] sm:$0x1]
          %v583 = vlaneseq
          %v584 = vshrl.u32 %v583, 7
          %v585 = vsub.s32 0, %v584
          %v586 = vrot.slane %v581, %v585
          %v588 = vmul.f32 %v580, %v586
          %v589 = vld [vmem:[%s4] sm:$0x1]
          %v591 = vlaneseq
          %v592 = vshrl.u32 %v591, 7
          %v593 = vsub.s32 0, %v592
          %v594 = vrot.slane %v589, %v593
          %v596 = vadd.f32 %v588, %v594
          %v597 = vpack.c.bf16 %v596, %v596
          %vm598 = vcmask 257024
          %599 = vst.msk [vmem:[#allocation3] sm:$0xf] %vm598, %v597
          %v600 = vld [vmem:[%s489] sm:$0xff]
          %v601 = vsel %vm566, %v600, 0.0
          %602 = vadd.xlane.f32.xlu0 %v601
          %v603 = vpop.xlane.xlu0 %602
          %v604 = vmul.f32 %v603, %v570
          %v605 = vsub.f32 %v600, %v604
          %v606 = vmul.f32 %v605, %v605
          %v607 = vsel %vm566, %v606, 0.0
          %608 = vadd.xlane.f32.xlu0 %v607
          %v609 = vpop.xlane.xlu0 %608
          %v610 = vmul.f32 %v609, %v570
          %v611 = vadd.f32 %v610, 1e-05
          %v612 = vrsqrt.pop %v611
          %v613 = vmul.f32 %v605, %v612
          %v614 = vld [vmem:[%s3] sm:$0x1]
          %v616 = vlaneseq
          %v617 = vshrl.u32 %v616, 7
          %v618 = vsub.s32 0, %v617
          %v619 = vrot.slane %v614, %v618
          %v621 = vmul.f32 %v613, %v619
          %v622 = vld [vmem:[%s4] sm:$0x1]
          %v624 = vlaneseq
          %v625 = vshrl.u32 %v624, 7
          %v626 = vsub.s32 0, %v625
          %v627 = vrot.slane %v622, %v626
          %v629 = vadd.f32 %v621, %v627
          %v630 = vpack.c.bf16 %v629, %v629
          %631 = vst.msk [vmem:[#allocation4] sm:$0xf] %vm598, %v630
        $region88: #{tpu_custom_call.1} parent=59 // pred_fallthru
          _
        // Predicated region
        $region89: #{tpu_custom_call.1} parent=59 // pred_check
          %p632 = pneg %p560
        $region90: #{tpu_custom_call.1} parent=59 // pred_check_branch
          %634 = sbr.rel (%p632) target = $region92
        $region91: #{tpu_custom_call.1} parent=59 // pred_region
          %v635 = vld [vmem:[%s471] sm:$0xff]
          %vm636 = vcmask 261120
          %v637 = vsel %vm636, %v635, 0.0
          %638 = vadd.xlane.f32.xlu0 %v637
          %v639 = vpop.xlane.xlu0 %638
          %v640 = vrcp.pop 32.0
          %v641 = vmul.f32 %v639, %v640
          %v642 = vsub.f32 %v635, %v641
          %v643 = vmul.f32 %v642, %v642
          %v644 = vsel %vm636, %v643, 0.0
          %645 = vadd.xlane.f32.xlu0 %v644
          %v646 = vpop.xlane.xlu0 %645
          %v647 = vmul.f32 %v646, %v640
          %v648 = vadd.f32 %v647, 1e-05
          %v649 = vrsqrt.pop %v648
          %v650 = vmul.f32 %v642, %v649
          %v651 = vld [vmem:[%s3] sm:$0x1]
          %v653 = vlaneseq
          %v654 = vshrl.u32 %v653, 7
          %v655 = vsub.s32 0, %v654
          %v656 = vrot.slane %v651, %v655
          %v658 = vmul.f32 %v650, %v656
          %v659 = vld [vmem:[%s4] sm:$0x1]
          %v661 = vlaneseq
          %v662 = vshrl.u32 %v661, 7
          %v663 = vsub.s32 0, %v662
          %v664 = vrot.slane %v659, %v663
          %v666 = vadd.f32 %v658, %v664
          %v667 = vpack.c.bf16 %v666, %v666
          %vm668 = vcmask 257024
          %669 = vst.msk [vmem:[#allocation2] sm:$0xf] %vm668, %v667
          %v670 = vld [vmem:[%s9] sm:$0x1]
          %v672 = vlaneseq
          %v673 = vshrl.u32 %v672, 7
          %v674 = vsub.s32 0, %v673
          %v675 = vrot.slane %v670, %v674
          %v677 = vadd.f32 %v635, %v675
          %678 = vst.msk [vmem:[#allocation8] sm:$0xff] %vm636, %v677
        $region92: #{tpu_custom_call.1} parent=59 // pred_fallthru
          _
        // Predicated region
        $region93: #{tpu_custom_call.1} parent=59 // pred_check
          %p679 = pneg %p559
        $region94: #{tpu_custom_call.1} parent=59 // pred_check_branch
          %681 = sbr.rel (%p679) target = $region96
        $region95: #{tpu_custom_call.1} parent=59 // pred_region
          %v682 = vld [vmem:[#allocation3] sm:$0xf]
          %v683 = vld [vmem:[#allocation15] sm:$0xf]
          %v684 = vld [vmem:[#allocation15 + $0x4] sm:$0xf]
          %v685 = vld [vmem:[#allocation15 + $0x8] sm:$0xf]
          %v686 = vld [vmem:[#allocation15 + $0xc] sm:$0xf]
          %v691 = vunpack.c.l.b16 %v683
          %v692 = vunpack.c.l.b16 %v684
          %v693 = vunpack.c.l.b16 %v685
          %v694 = vunpack.c.l.b16 %v686
          %v695 = vpack.c.b16 %v692, %v691
          %v696 = vpack.c.b16 %v694, %v693
          %vm699 = vcmask 261120
          %v701 = vsel %vm699, %v682, 0
          %703 = vmatprep.subr.bf16.mxu0 0
          %704 = vmatpush1.bf16.msra.mxu0 %v695
          %705 = vmatprep.subr.bf16.mxu0 0
          %706 = vmatpush1.bf16.msra.mxu0 %v696
          %707 = vmatprep.subr.bf16.mxu0 0
          %708 = vmatpush1.bf16.msra.mxu0 0
          %709 = vmatprep.subr.bf16.mxu0 0
          %710 = vmatpush1.bf16.msra.mxu0 0
          %711 = vmatprep.subr.bf16.mxu0 0
          %712 = vmatpush1.bf16.msra.mxu0 0
          %713 = vmatprep.subr.bf16.mxu0 0
          %714 = vmatpush1.bf16.msra.mxu0 0
          %715 = vmatprep.subr.bf16.mxu0 0
          %716 = vmatpush1.bf16.msra.mxu0 0
          %717 = vmatprep.subr.bf16.mxu0 0
          %718 = vmatpush1.bf16.msra.mxu0 0
          %719 = vmatprep.subr.bf16.mxu0 0
          %720 = vmatpush1.bf16.msra.mxu0 0
          %721 = vmatprep.subr.bf16.mxu0 0
          %722 = vmatpush1.bf16.msra.mxu0 0
          %723 = vmatprep.subr.bf16.mxu0 0
          %724 = vmatpush1.bf16.msra.mxu0 0
          %725 = vmatprep.subr.bf16.mxu0 0
          %726 = vmatpush1.bf16.msra.mxu0 0
          %727 = vmatprep.subr.bf16.mxu0 0
          %728 = vmatpush1.bf16.msra.mxu0 0
          %729 = vmatprep.subr.bf16.mxu0 0
          %730 = vmatpush1.bf16.msra.mxu0 0
          %731 = vmatprep.subr.bf16.mxu0 0
          %732 = vmatpush1.bf16.msra.mxu0 0
          %733 = vmatprep.subr.bf16.mxu0 0
          %734 = vmatpush1.bf16.msra.mxu0 0
          %735 = vmatprep.mubr.bf16.mxu0 0
          %736 = vmatmul.mubr.bf16.gmra.mrb[0].mxu0 %v701
          %v737 = vpop.f32.mrb[0].mxu0
          %v738 = vadd.f32 0.0, %v737
          %v739 = vpop.f32.mrb[0].mxu0
          %v740 = vpop.f32.mrb[0].mxu0
          %v741 = vpop.f32.mrb[0].mxu0
          %742 = vdwg.mxu0
          %v743 = vpack.c.bf16 %v738, %v738
          %s744 = smul.addr %s39, 4
          %s745 = scalar_lea.vmem [#allocation5], %s744
          %vm746 = vcmask 257024
          %747 = vst.msk [vmem:[%s745] sm:$0xf] %vm746, %v743
          %v748 = vld [vmem:[#allocation4] sm:$0xf]
          %v749 = vld [vmem:[#allocation17] sm:$0xf]
          %v750 = vld [vmem:[#allocation17 + $0x4] sm:$0xf]
          %v751 = vld [vmem:[#allocation17 + $0x8] sm:$0xf]
          %v752 = vld [vmem:[#allocation17 + $0xc] sm:$0xf]
          %v757 = vunpack.c.l.b16 %v749
          %v758 = vunpack.c.l.b16 %v750
          %v759 = vunpack.c.l.b16 %v751
          %v760 = vunpack.c.l.b16 %v752
          %v761 = vpack.c.b16 %v758, %v757
          %v762 = vpack.c.b16 %v760, %v759
          %v766 = vsel %vm699, %v748, 0
          %768 = vmatprep.subr.bf16.mxu0 0
          %769 = vmatpush1.bf16.msra.mxu0 %v761
          %770 = vmatprep.subr.bf16.mxu0 0
          %771 = vmatpush1.bf16.msra.mxu0 %v762
          %772 = vmatprep.subr.bf16.mxu0 0
          %773 = vmatpush1.bf16.msra.mxu0 0
          %774 = vmatprep.subr.bf16.mxu0 0
          %775 = vmatpush1.bf16.msra.mxu0 0
          %776 = vmatprep.subr.bf16.mxu0 0
          %777 = vmatpush1.bf16.msra.mxu0 0
          %778 = vmatprep.subr.bf16.mxu0 0
          %779 = vmatpush1.bf16.msra.mxu0 0
          %780 = vmatprep.subr.bf16.mxu0 0
          %781 = vmatpush1.bf16.msra.mxu0 0
          %782 = vmatprep.subr.bf16.mxu0 0
          %783 = vmatpush1.bf16.msra.mxu0 0
          %784 = vmatprep.subr.bf16.mxu0 0
          %785 = vmatpush1.bf16.msra.mxu0 0
          %786 = vmatprep.subr.bf16.mxu0 0
          %787 = vmatpush1.bf16.msra.mxu0 0
          %788 = vmatprep.subr.bf16.mxu0 0
          %789 = vmatpush1.bf16.msra.mxu0 0
          %790 = vmatprep.subr.bf16.mxu0 0
          %791 = vmatpush1.bf16.msra.mxu0 0
          %792 = vmatprep.subr.bf16.mxu0 0
          %793 = vmatpush1.bf16.msra.mxu0 0
          %794 = vmatprep.subr.bf16.mxu0 0
          %795 = vmatpush1.bf16.msra.mxu0 0
          %796 = vmatprep.subr.bf16.mxu0 0
          %797 = vmatpush1.bf16.msra.mxu0 0
          %798 = vmatprep.subr.bf16.mxu0 0
          %799 = vmatpush1.bf16.msra.mxu0 0
          %800 = vmatprep.mubr.bf16.mxu0 0
          %801 = vmatmul.mubr.bf16.gmra.mrb[0].mxu0 %v766
          %v802 = vpop.f32.mrb[0].mxu0
          %v803 = vadd.f32 0.0, %v802
          %v804 = vpop.f32.mrb[0].mxu0
          %v805 = vpop.f32.mrb[0].mxu0
          %v806 = vpop.f32.mrb[0].mxu0
          %807 = vdwg.mxu0
          %v808 = vpack.c.bf16 %v803, %v803
          %s809 = smul.addr %s39, 4
          %s810 = scalar_lea.vmem [#allocation6], %s809
          %811 = vst.msk [vmem:[%s810] sm:$0xf] %vm746, %v808
        $region96: #{tpu_custom_call.1} parent=59 // pred_fallthru
          _
        %v812 = vld [vmem:[#allocation2] sm:$0xf]
        %v813 = vld [vmem:[%s557] sm:$0xf]
        %v814 = vld [vmem:[%s557 + $0x4] sm:$0xf]
        %v815 = vld [vmem:[%s557 + $0x8] sm:$0xf]
        %v816 = vld [vmem:[%s557 + $0xc] sm:$0xf]
        %v821 = vunpack.c.l.b16 %v813
        %v822 = vunpack.c.l.b16 %v814
        %v823 = vunpack.c.l.b16 %v815
        %v824 = vunpack.c.l.b16 %v816
        %v825 = vpack.c.b16 %v822, %v821
        %v826 = vpack.c.b16 %v824, %v823
        %vm829 = vcmask 261120
        %v831 = vsel %vm829, %v812, 0
        %833 = vmatprep.subr.bf16.mxu0 0
        %834 = vmatpush1.bf16.msra.mxu0 %v825
        %835 = vmatprep.subr.bf16.mxu0 0
        %836 = vmatpush1.bf16.msra.mxu0 %v826
        %837 = vmatprep.subr.bf16.mxu0 0
        %838 = vmatpush1.bf16.msra.mxu0 0
        %839 = vmatprep.subr.bf16.mxu0 0
        %840 = vmatpush1.bf16.msra.mxu0 0
        %841 = vmatprep.subr.bf16.mxu0 0
        %842 = vmatpush1.bf16.msra.mxu0 0
        %843 = vmatprep.subr.bf16.mxu0 0
        %844 = vmatpush1.bf16.msra.mxu0 0
        %845 = vmatprep.subr.bf16.mxu0 0
        %846 = vmatpush1.bf16.msra.mxu0 0
        %847 = vmatprep.subr.bf16.mxu0 0
        %848 = vmatpush1.bf16.msra.mxu0 0
        %849 = vmatprep.subr.bf16.mxu0 0
        %850 = vmatpush1.bf16.msra.mxu0 0
        %851 = vmatprep.subr.bf16.mxu0 0
        %852 = vmatpush1.bf16.msra.mxu0 0
        %853 = vmatprep.subr.bf16.mxu0 0
        %854 = vmatpush1.bf16.msra.mxu0 0
        %855 = vmatprep.subr.bf16.mxu0 0
        %856 = vmatpush1.bf16.msra.mxu0 0
        %857 = vmatprep.subr.bf16.mxu0 0
        %858 = vmatpush1.bf16.msra.mxu0 0
        %859 = vmatprep.subr.bf16.mxu0 0
        %860 = vmatpush1.bf16.msra.mxu0 0
        %861 = vmatprep.subr.bf16.mxu0 0
        %862 = vmatpush1.bf16.msra.mxu0 0
        %863 = vmatprep.subr.bf16.mxu0 0
        %864 = vmatpush1.bf16.msra.mxu0 0
        %865 = vmatprep.mubr.bf16.mxu0 0
        %866 = vmatmul.mubr.bf16.gmra.mrb[0].mxu0 %v831
        %v867 = vpop.f32.mrb[0].mxu0
        %v868 = vadd.f32 0.0, %v867
        %v869 = vpop.f32.mrb[0].mxu0
        %v870 = vpop.f32.mrb[0].mxu0
        %v871 = vpop.f32.mrb[0].mxu0
        %872 = vdwg.mxu0
        %v873 = vmul.f32 %v868, 0.35355338
        %v874 = vpack.c.bf16 %v873, %v873
        %s875 = smul.addr %s39, 4
        %s876 = scalar_lea.vmem [#allocation5], %s875
        %v877 = vld [vmem:[%s876] sm:$0xf]
        %s878 = smul.addr %s39, 4
        %s879 = scalar_lea.vmem [#allocation6], %s878
        %v880 = vld [vmem:[%s879] sm:$0xf]
        %vm881 = vcmask 64512
        %v883 = vsel %vm881, %v874, 0
        %v886 = vsel %vm881, %v877, 0
        %888 = vmatprep.subr.bf16.mxu0 0
        %889 = vmatpush1.bf16.xpose.msra.mxu0 %v886
        %890 = vmatprep.subr.bf16.mxu0 0
        %891 = vmatpush1.bf16.xpose.msra.mxu0 0
        %892 = vmatprep.subr.bf16.mxu0 0
        %893 = vmatpush1.bf16.xpose.msra.mxu0 0
        %894 = vmatprep.subr.bf16.mxu0 0
        %895 = vmatpush1.bf16.xpose.msra.mxu0 0
        %896 = vmatprep.subr.bf16.mxu0 0
        %897 = vmatpush1.bf16.xpose.msra.mxu0 0
        %898 = vmatprep.subr.bf16.mxu0 0
        %899 = vmatpush1.bf16.xpose.msra.mxu0 0
        %900 = vmatprep.subr.bf16.mxu0 0
        %901 = vmatpush1.bf16.xpose.msra.mxu0 0
        %902 = vmatprep.subr.bf16.mxu0 0
        %903 = vmatpush1.bf16.xpose.msra.mxu0 0
        %904 = vmatprep.subr.bf16.mxu0 0
        %905 = vmatpush1.bf16.xpose.msra.mxu0 0
        %906 = vmatprep.subr.bf16.mxu0 0
        %907 = vmatpush1.bf16.xpose.msra.mxu0 0
        %908 = vmatprep.subr.bf16.mxu0 0
        %909 = vmatpush1.bf16.xpose.msra.mxu0 0
        %910 = vmatprep.subr.bf16.mxu0 0
        %911 = vmatpush1.bf16.xpose.msra.mxu0 0
        %912 = vmatprep.subr.bf16.mxu0 0
        %913 = vmatpush1.bf16.xpose.msra.mxu0 0
        %914 = vmatprep.subr.bf16.mxu0 0
        %915 = vmatpush1.bf16.xpose.msra.mxu0 0
        %916 = vmatprep.subr.bf16.mxu0 0
        %917 = vmatpush1.bf16.xpose.msra.mxu0 0
        %918 = vmatprep.subr.bf16.mxu0 0
        %919 = vmatpush1.bf16.xpose.msra.mxu0 0
        %920 = vmatprep.mubr.bf16.mxu0 0
        %921 = vmatmul.mubr.bf16.gmra.mrb[0].mxu0 %v883
        %v922 = vpop.f32.mrb[0].mxu0
        %v923 = vadd.f32 0.0, %v922
        %v924 = vpop.f32.mrb[0].mxu0
        %v925 = vpop.f32.mrb[0].mxu0
        %v926 = vpop.f32.mrb[0].mxu0
        %927 = vdwg.mxu0
        %v928 = vsel %vm881, %v923, -inf
        %929 = vmax.xlane.f32.xlu0 %v928
        %v930 = vpop.xlane.xlu0 %929
        %v931 = vsub.f32 %v923, %v930
        %v932 = vmul.f32 %v931, 1.442695
        %v933 = vpow.pop %v932
        %v934 = vsel %vm881, %v933, 0.0
        %935 = vadd.xlane.f32.xlu0 %v934
        %v936 = vpop.xlane.xlu0 %935
        %v937 = vrcp.pop %v936
        %v938 = vpack.c.bf16 %v933, %v933
        %v940 = vsel %vm881, %v938, 0
        %vm942 = vcmask 1043456
        %v944 = vsel %vm942, %v880, 0
        %946 = vmatprep.subr.bf16.mxu0 0
        %947 = vmatpush1.bf16.msra.mxu0 %v944
        %948 = vmatprep.subr.bf16.mxu0 0
        %949 = vmatpush1.bf16.msra.mxu0 0
        %950 = vmatprep.subr.bf16.mxu0 0
        %951 = vmatpush1.bf16.msra.mxu0 0
        %952 = vmatprep.subr.bf16.mxu0 0
        %953 = vmatpush1.bf16.msra.mxu0 0
        %954 = vmatprep.subr.bf16.mxu0 0
        %955 = vmatpush1.bf16.msra.mxu0 0
        %956 = vmatprep.subr.bf16.mxu0 0
        %957 = vmatpush1.bf16.msra.mxu0 0
        %958 = vmatprep.subr.bf16.mxu0 0
        %959 = vmatpush1.bf16.msra.mxu0 0
        %960 = vmatprep.subr.bf16.mxu0 0
        %961 = vmatpush1.bf16.msra.mxu0 0
        %962 = vmatprep.subr.bf16.mxu0 0
        %963 = vmatpush1.bf16.msra.mxu0 0
        %964 = vmatprep.subr.bf16.mxu0 0
        %965 = vmatpush1.bf16.msra.mxu0 0
        %966 = vmatprep.subr.bf16.mxu0 0
        %967 = vmatpush1.bf16.msra.mxu0 0
        %968 = vmatprep.subr.bf16.mxu0 0
        %969 = vmatpush1.bf16.msra.mxu0 0
        %970 = vmatprep.subr.bf16.mxu0 0
        %971 = vmatpush1.bf16.msra.mxu0 0
        %972 = vmatprep.subr.bf16.mxu0 0
        %973 = vmatpush1.bf16.msra.mxu0 0
        %974 = vmatprep.subr.bf16.mxu0 0
        %975 = vmatpush1.bf16.msra.mxu0 0
        %976 = vmatprep.subr.bf16.mxu0 0
        %977 = vmatpush1.bf16.msra.mxu0 0
        %978 = vmatprep.mubr.bf16.mxu0 0
        %979 = vmatmul.mubr.bf16.gmra.mrb[0].mxu0 %v940
        %v980 = vpop.f32.mrb[0].mxu0
        %v981 = vadd.f32 0.0, %v980
        %v982 = vpop.f32.mrb[0].mxu0
        %v983 = vpop.f32.mrb[0].mxu0
        %v984 = vpop.f32.mrb[0].mxu0
        %985 = vdwg.mxu0
        %v986 = vmul.f32 %v981, %v937
        %v987 = vpack.c.bf16 %v986, %v986
        %vm988 = vcmask 60416
        %989 = vst.msk [vmem:[#allocation7] sm:$0xf] %vm988, %v987
        %991 = vrot.lane.b32.xlu0 %v874, 120
        %v992 = vpop.permute.xlu0 %991
        %v994 = vunpack.c.l.b16 %v877
        %v995 = vpack.c.b16 %v994, %v994
        %996 = vrot.lane.b32.xlu0 %v995, 120
        %v997 = vpop.permute.xlu0 %996
        %v999 = vsel %vm881, %v992, 0
        %v1002 = vsel %vm881, %v997, 0
        %1004 = vmatprep.subr.bf16.mxu0 0
        %1005 = vmatpush1.bf16.xpose.msra.mxu0 %v1002
        %1006 = vmatprep.subr.bf16.mxu0 0
        %1007 = vmatpush1.bf16.xpose.msra.mxu0 0
        %1008 = vmatprep.subr.bf16.mxu0 0
        %1009 = vmatpush1.bf16.xpose.msra.mxu0 0
        %1010 = vmatprep.subr.bf16.mxu0 0
        %1011 = vmatpush1.bf16.xpose.msra.mxu0 0
        %1012 = vmatprep.subr.bf16.mxu0 0
        %1013 = vmatpush1.bf16.xpose.msra.mxu0 0
        %1014 = vmatprep.subr.bf16.mxu0 0
        %1015 = vmatpush1.bf16.xpose.msra.mxu0 0
        %1016 = vmatprep.subr.bf16.mxu0 0
        %1017 = vmatpush1.bf16.xpose.msra.mxu0 0
        %1018 = vmatprep.subr.bf16.mxu0 0
        %1019 = vmatpush1.bf16.xpose.msra.mxu0 0
        %1020 = vmatprep.subr.bf16.mxu0 0
        %1021 = vmatpush1.bf16.xpose.msra.mxu0 0
        %1022 = vmatprep.subr.bf16.mxu0 0
        %1023 = vmatpush1.bf16.xpose.msra.mxu0 0
        %1024 = vmatprep.subr.bf16.mxu0 0
        %1025 = vmatpush1.bf16.xpose.msra.mxu0 0
        %1026 = vmatprep.subr.bf16.mxu0 0
        %1027 = vmatpush1.bf16.xpose.msra.mxu0 0
        %1028 = vmatprep.subr.bf16.mxu0 0
        %1029 = vmatpush1.bf16.xpose.msra.mxu0 0
        %1030 = vmatprep.subr.bf16.mxu0 0
        %1031 = vmatpush1.bf16.xpose.msra.mxu0 0
        %1032 = vmatprep.subr.bf16.mxu0 0
        %1033 = vmatpush1.bf16.xpose.msra.mxu0 0
        %1034 = vmatprep.subr.bf16.mxu0 0
        %1035 = vmatpush1.bf16.xpose.msra.mxu0 0
        %1036 = vmatprep.mubr.bf16.mxu0 0
        %1037 = vmatmul.mubr.bf16.gmra.mrb[0].mxu0 %v999
        %v1038 = vpop.f32.mrb[0].mxu0
        %v1039 = vadd.f32 0.0, %v1038
        %v1040 = vpop.f32.mrb[0].mxu0
        %v1041 = vpop.f32.mrb[0].mxu0
        %v1042 = vpop.f32.mrb[0].mxu0
        %1043 = vdwg.mxu0
        %v1044 = vsel %vm881, %v1039, -inf
        %1045 = vmax.xlane.f32.xlu0 %v1044
        %v1046 = vpop.xlane.xlu0 %1045
        %v1047 = vsub.f32 %v1039, %v1046
        %v1048 = vmul.f32 %v1047, 1.442695
        %v1049 = vpow.pop %v1048
        %v1050 = vsel %vm881, %v1049, 0.0
        %1051 = vadd.xlane.f32.xlu0 %v1050
        %v1052 = vpop.xlane.xlu0 %1051
        %v1053 = vrcp.pop %v1052
        %v1054 = vpack.c.bf16 %v1049, %v1049
        %v1056 = vunpack.c.l.b16 %v880
        %v1057 = vpack.c.b16 %v1056, %v1056
        %1058 = vrot.lane.b32.xlu0 %v1057, 120
        %v1059 = vpop.permute.xlu0 %1058
        %v1061 = vsel %vm881, %v1054, 0
        %v1064 = vsel %vm942, %v1059, 0
        %1066 = vmatprep.subr.bf16.mxu0 0
        %1067 = vmatpush1.bf16.msra.mxu0 %v1064
        %1068 = vmatprep.subr.bf16.mxu0 0
        %1069 = vmatpush1.bf16.msra.mxu0 0
        %1070 = vmatprep.subr.bf16.mxu0 0
        %1071 = vmatpush1.bf16.msra.mxu0 0
        %1072 = vmatprep.subr.bf16.mxu0 0
        %1073 = vmatpush1.bf16.msra.mxu0 0
        %1074 = vmatprep.subr.bf16.mxu0 0
        %1075 = vmatpush1.bf16.msra.mxu0 0
        %1076 = vmatprep.subr.bf16.mxu0 0
        %1077 = vmatpush1.bf16.msra.mxu0 0
        %1078 = vmatprep.subr.bf16.mxu0 0
        %1079 = vmatpush1.bf16.msra.mxu0 0
        %1080 = vmatprep.subr.bf16.mxu0 0
        %1081 = vmatpush1.bf16.msra.mxu0 0
        %1082 = vmatprep.subr.bf16.mxu0 0
        %1083 = vmatpush1.bf16.msra.mxu0 0
        %1084 = vmatprep.subr.bf16.mxu0 0
        %1085 = vmatpush1.bf16.msra.mxu0 0
        %1086 = vmatprep.subr.bf16.mxu0 0
        %1087 = vmatpush1.bf16.msra.mxu0 0
        %1088 = vmatprep.subr.bf16.mxu0 0
        %1089 = vmatpush1.bf16.msra.mxu0 0
        %1090 = vmatprep.subr.bf16.mxu0 0
        %1091 = vmatpush1.bf16.msra.mxu0 0
        %1092 = vmatprep.subr.bf16.mxu0 0
        %1093 = vmatpush1.bf16.msra.mxu0 0
        %1094 = vmatprep.subr.bf16.mxu0 0
        %1095 = vmatpush1.bf16.msra.mxu0 0
        %1096 = vmatprep.subr.bf16.mxu0 0
        %1097 = vmatpush1.bf16.msra.mxu0 0
        %1098 = vmatprep.mubr.bf16.mxu0 0
        %1099 = vmatmul.mubr.bf16.gmra.mrb[0].mxu0 %v1061
        %v1100 = vpop.f32.mrb[0].mxu0
        %v1101 = vadd.f32 0.0, %v1100
        %v1102 = vpop.f32.mrb[0].mxu0
        %v1103 = vpop.f32.mrb[0].mxu0
        %v1104 = vpop.f32.mrb[0].mxu0
        %1105 = vdwg.mxu0
        %v1106 = vmul.f32 %v1101, %v1053
        %v1107 = vpack.c.bf16 %v1106, %v1106
        %v1109 = vunpack.c.l.b16 %v1107
        %v1110 = vpack.c.b16 %v1109, %v1109
        %1111 = vrot.lane.b32.xlu0 %v1110, 8
        %v1112 = vpop.permute.xlu0 %1111
        %vm1114 = vcmask 126016
        %1115 = vst.msk [vmem:[#allocation7] sm:$0xf] %vm1114, %v1112
        %1116 = vrot.lane.b32.xlu0 %v874, 112
        %v1117 = vpop.permute.xlu0 %1116
        %1118 = vrot.lane.b32.xlu0 %v995, 112
        %v1119 = vpop.permute.xlu0 %1118
        %v1121 = vsel %vm881, %v1117, 0
        %v1124 = vsel %vm881, %v1119, 0
        %1126 = vmatprep.subr.bf16.mxu0 0
        %1127 = vmatpush1.bf16.xpose.msra.mxu0 %v1124
        %1128 = vmatprep.subr.bf16.mxu0 0
        %1129 = vmatpush1.bf16.xpose.msra.mxu0 0
        %1130 = vmatprep.subr.bf16.mxu0 0
        %1131 = vmatpush1.bf16.xpose.msra.mxu0 0
        %1132 = vmatprep.subr.bf16.mxu0 0
        %1133 = vmatpush1.bf16.xpose.msra.mxu0 0
        %1134 = vmatprep.subr.bf16.mxu0 0
        %1135 = vmatpush1.bf16.xpose.msra.mxu0 0
        %1136 = vmatprep.subr.bf16.mxu0 0
        %1137 = vmatpush1.bf16.xpose.msra.mxu0 0
        %1138 = vmatprep.subr.bf16.mxu0 0
        %1139 = vmatpush1.bf16.xpose.msra.mxu0 0
        %1140 = vmatprep.subr.bf16.mxu0 0
        %1141 = vmatpush1.bf16.xpose.msra.mxu0 0
        %1142 = vmatprep.subr.bf16.mxu0 0
        %1143 = vmatpush1.bf16.xpose.msra.mxu0 0
        %1144 = vmatprep.subr.bf16.mxu0 0
        %1145 = vmatpush1.bf16.xpose.msra.mxu0 0
        %1146 = vmatprep.subr.bf16.mxu0 0
        %1147 = vmatpush1.bf16.xpose.msra.mxu0 0
        %1148 = vmatprep.subr.bf16.mxu0 0
        %1149 = vmatpush1.bf16.xpose.msra.mxu0 0
        %1150 = vmatprep.subr.bf16.mxu0 0
        %1151 = vmatpush1.bf16.xpose.msra.mxu0 0
        %1152 = vmatprep.subr.bf16.mxu0 0
        %1153 = vmatpush1.bf16.xpose.msra.mxu0 0
        %1154 = vmatprep.subr.bf16.mxu0 0
        %1155 = vmatpush1.bf16.xpose.msra.mxu0 0
        %1156 = vmatprep.subr.bf16.mxu0 0
        %1157 = vmatpush1.bf16.xpose.msra.mxu0 0
        %1158 = vmatprep.mubr.bf16.mxu0 0
        %1159 = vmatmul.mubr.bf16.gmra.mrb[0].mxu0 %v1121
        %v1160 = vpop.f32.mrb[0].mxu0
        %v1161 = vadd.f32 0.0, %v1160
        %v1162 = vpop.f32.mrb[0].mxu0
        %v1163 = vpop.f32.mrb[0].mxu0
        %v1164 = vpop.f32.mrb[0].mxu0
        %1165 = vdwg.mxu0
        %v1166 = vsel %vm881, %v1161, -inf
        %1167 = vmax.xlane.f32.xlu0 %v1166
        %v1168 = vpop.xlane.xlu0 %1167
        %v1169 = vsub.f32 %v1161, %v1168
        %v1170 = vmul.f32 %v1169, 1.442695
        %v1171 = vpow.pop %v1170
        %v1172 = vsel %vm881, %v1171, 0.0
        %1173 = vadd.xlane.f32.xlu0 %v1172
        %v1174 = vpop.xlane.xlu0 %1173
        %v1175 = vrcp.pop %v1174
        %v1176 = vpack.c.bf16 %v1171, %v1171
        %1177 = vrot.lane.b32.xlu0 %v1057, 112
        %v1178 = vpop.permute.xlu0 %1177
        %v1180 = vsel %vm881, %v1176, 0
        %v1183 = vsel %vm942, %v1178, 0
        %1185 = vmatprep.subr.bf16.mxu0 0
        %1186 = vmatpush1.bf16.msra.mxu0 %v1183
        %1187 = vmatprep.subr.bf16.mxu0 0
        %1188 = vmatpush1.bf16.msra.mxu0 0
        %1189 = vmatprep.subr.bf16.mxu0 0
        %1190 = vmatpush1.bf16.msra.mxu0 0
        %1191 = vmatprep.subr.bf16.mxu0 0
        %1192 = vmatpush1.bf16.msra.mxu0 0
        %1193 = vmatprep.subr.bf16.mxu0 0
        %1194 = vmatpush1.bf16.msra.mxu0 0
        %1195 = vmatprep.subr.bf16.mxu0 0
        %1196 = vmatpush1.bf16.msra.mxu0 0
        %1197 = vmatprep.subr.bf16.mxu0 0
        %1198 = vmatpush1.bf16.msra.mxu0 0
        %1199 = vmatprep.subr.bf16.mxu0 0
        %1200 = vmatpush1.bf16.msra.mxu0 0
        %1201 = vmatprep.subr.bf16.mxu0 0
        %1202 = vmatpush1.bf16.msra.mxu0 0
        %1203 = vmatprep.subr.bf16.mxu0 0
        %1204 = vmatpush1.bf16.msra.mxu0 0
        %1205 = vmatprep.subr.bf16.mxu0 0
        %1206 = vmatpush1.bf16.msra.mxu0 0
        %1207 = vmatprep.subr.bf16.mxu0 0
        %1208 = vmatpush1.bf16.msra.mxu0 0
        %1209 = vmatprep.subr.bf16.mxu0 0
        %1210 = vmatpush1.bf16.msra.mxu0 0
        %1211 = vmatprep.subr.bf16.mxu0 0
        %1212 = vmatpush1.bf16.msra.mxu0 0
        %1213 = vmatprep.subr.bf16.mxu0 0
        %1214 = vmatpush1.bf16.msra.mxu0 0
        %1215 = vmatprep.subr.bf16.mxu0 0
        %1216 = vmatpush1.bf16.msra.mxu0 0
        %1217 = vmatprep.mubr.bf16.mxu0 0
        %1218 = vmatmul.mubr.bf16.gmra.mrb[0].mxu0 %v1180
        %v1219 = vpop.f32.mrb[0].mxu0
        %v1220 = vadd.f32 0.0, %v1219
        %v1221 = vpop.f32.mrb[0].mxu0
        %v1222 = vpop.f32.mrb[0].mxu0
        %v1223 = vpop.f32.mrb[0].mxu0
        %1224 = vdwg.mxu0
        %v1225 = vmul.f32 %v1220, %v1175
        %v1226 = vpack.c.bf16 %v1225, %v1225
        %v1228 = vunpack.c.l.b16 %v1226
        %v1229 = vpack.c.b16 %v1228, %v1228
        %1230 = vrot.lane.b32.xlu0 %v1229, 16
        %v1231 = vpop.permute.xlu0 %1230
        %vm1233 = vcmask 191616
        %1234 = vst.msk [vmem:[#allocation7] sm:$0xf] %vm1233, %v1231
        %1235 = vrot.lane.b32.xlu0 %v874, 104
        %v1236 = vpop.permute.xlu0 %1235
        %1237 = vrot.lane.b32.xlu0 %v995, 104
        %v1238 = vpop.permute.xlu0 %1237
        %v1240 = vsel %vm881, %v1236, 0
        %v1243 = vsel %vm881, %v1238, 0
        %1245 = vmatprep.subr.bf16.mxu0 0
        %1246 = vmatpush1.bf16.xpose.msra.mxu0 %v1243
        %1247 = vmatprep.subr.bf16.mxu0 0
        %1248 = vmatpush1.bf16.xpose.msra.mxu0 0
        %1249 = vmatprep.subr.bf16.mxu0 0
        %1250 = vmatpush1.bf16.xpose.msra.mxu0 0
        %1251 = vmatprep.subr.bf16.mxu0 0
        %1252 = vmatpush1.bf16.xpose.msra.mxu0 0
        %1253 = vmatprep.subr.bf16.mxu0 0
        %1254 = vmatpush1.bf16.xpose.msra.mxu0 0
        %1255 = vmatprep.subr.bf16.mxu0 0
        %1256 = vmatpush1.bf16.xpose.msra.mxu0 0
        %1257 = vmatprep.subr.bf16.mxu0 0
        %1258 = vmatpush1.bf16.xpose.msra.mxu0 0
        %1259 = vmatprep.subr.bf16.mxu0 0
        %1260 = vmatpush1.bf16.xpose.msra.mxu0 0
        %1261 = vmatprep.subr.bf16.mxu0 0
        %1262 = vmatpush1.bf16.xpose.msra.mxu0 0
        %1263 = vmatprep.subr.bf16.mxu0 0
        %1264 = vmatpush1.bf16.xpose.msra.mxu0 0
        %1265 = vmatprep.subr.bf16.mxu0 0
        %1266 = vmatpush1.bf16.xpose.msra.mxu0 0
        %1267 = vmatprep.subr.bf16.mxu0 0
        %1268 = vmatpush1.bf16.xpose.msra.mxu0 0
        %1269 = vmatprep.subr.bf16.mxu0 0
        %1270 = vmatpush1.bf16.xpose.msra.mxu0 0
        %1271 = vmatprep.subr.bf16.mxu0 0
        %1272 = vmatpush1.bf16.xpose.msra.mxu0 0
        %1273 = vmatprep.subr.bf16.mxu0 0
        %1274 = vmatpush1.bf16.xpose.msra.mxu0 0
        %1275 = vmatprep.subr.bf16.mxu0 0
        %1276 = vmatpush1.bf16.xpose.msra.mxu0 0
        %1277 = vmatprep.mubr.bf16.mxu0 0
        %1278 = vmatmul.mubr.bf16.gmra.mrb[0].mxu0 %v1240
        %v1279 = vpop.f32.mrb[0].mxu0
        %v1280 = vadd.f32 0.0, %v1279
        %v1281 = vpop.f32.mrb[0].mxu0
        %v1282 = vpop.f32.mrb[0].mxu0
        %v1283 = vpop.f32.mrb[0].mxu0
        %1284 = vdwg.mxu0
        %v1285 = vsel %vm881, %v1280, -inf
        %1286 = vmax.xlane.f32.xlu0 %v1285
        %v1287 = vpop.xlane.xlu0 %1286
        %v1288 = vsub.f32 %v1280, %v1287
        %v1289 = vmul.f32 %v1288, 1.442695
        %v1290 = vpow.pop %v1289
        %v1291 = vsel %vm881, %v1290, 0.0
        %1292 = vadd.xlane.f32.xlu0 %v1291
        %v1293 = vpop.xlane.xlu0 %1292
        %v1294 = vrcp.pop %v1293
        %v1295 = vpack.c.bf16 %v1290, %v1290
        %1296 = vrot.lane.b32.xlu0 %v1057, 104
        %v1297 = vpop.permute.xlu0 %1296
        %v1299 = vsel %vm881, %v1295, 0
        %v1302 = vsel %vm942, %v1297, 0
        %1304 = vmatprep.subr.bf16.mxu0 0
        %1305 = vmatpush1.bf16.msra.mxu0 %v1302
        %1306 = vmatprep.subr.bf16.mxu0 0
        %1307 = vmatpush1.bf16.msra.mxu0 0
        %1308 = vmatprep.subr.bf16.mxu0 0
        %1309 = vmatpush1.bf16.msra.mxu0 0
        %1310 = vmatprep.subr.bf16.mxu0 0
        %1311 = vmatpush1.bf16.msra.mxu0 0
        %1312 = vmatprep.subr.bf16.mxu0 0
        %1313 = vmatpush1.bf16.msra.mxu0 0
        %1314 = vmatprep.subr.bf16.mxu0 0
        %1315 = vmatpush1.bf16.msra.mxu0 0
        %1316 = vmatprep.subr.bf16.mxu0 0
        %1317 = vmatpush1.bf16.msra.mxu0 0
        %1318 = vmatprep.subr.bf16.mxu0 0
        %1319 = vmatpush1.bf16.msra.mxu0 0
        %1320 = vmatprep.subr.bf16.mxu0 0
        %1321 = vmatpush1.bf16.msra.mxu0 0
        %1322 = vmatprep.subr.bf16.mxu0 0
        %1323 = vmatpush1.bf16.msra.mxu0 0
        %1324 = vmatprep.subr.bf16.mxu0 0
        %1325 = vmatpush1.bf16.msra.mxu0 0
        %1326 = vmatprep.subr.bf16.mxu0 0
        %1327 = vmatpush1.bf16.msra.mxu0 0
        %1328 = vmatprep.subr.bf16.mxu0 0
        %1329 = vmatpush1.bf16.msra.mxu0 0
        %1330 = vmatprep.subr.bf16.mxu0 0
        %1331 = vmatpush1.bf16.msra.mxu0 0
        %1332 = vmatprep.subr.bf16.mxu0 0
        %1333 = vmatpush1.bf16.msra.mxu0 0
        %1334 = vmatprep.subr.bf16.mxu0 0
        %1335 = vmatpush1.bf16.msra.mxu0 0
        %1336 = vmatprep.mubr.bf16.mxu0 0
        %1337 = vmatmul.mubr.bf16.gmra.mrb[0].mxu0 %v1299
        %v1338 = vpop.f32.mrb[0].mxu0
        %v1339 = vadd.f32 0.0, %v1338
        %v1340 = vpop.f32.mrb[0].mxu0
        %v1341 = vpop.f32.mrb[0].mxu0
        %v1342 = vpop.f32.mrb[0].mxu0
        %1343 = vdwg.mxu0
        %v1344 = vmul.f32 %v1339, %v1294
        %v1345 = vpack.c.bf16 %v1344, %v1344
        %v1347 = vunpack.c.l.b16 %v1345
        %v1348 = vpack.c.b16 %v1347, %v1347
        %1349 = vrot.lane.b32.xlu0 %v1348, 24
        %v1350 = vpop.permute.xlu0 %1349
        %vm1352 = vcmask 257216
        %1353 = vst.msk [vmem:[#allocation7] sm:$0xf] %vm1352, %v1350
        %v1354 = vld [vmem:[#allocation8] sm:$0xff]
        %v1355 = vld [vmem:[#allocation7] sm:$0xf]
        %v1356 = vld [vmem:[#allocation18] sm:$0xf]
        %v1357 = vld [vmem:[#allocation18 + $0x4] sm:$0xf]
        %v1358 = vld [vmem:[#allocation18 + $0x8] sm:$0xf]
        %v1359 = vld [vmem:[#allocation18 + $0xc] sm:$0xf]
        %v1364 = vunpack.c.l.b16 %v1356
        %v1365 = vunpack.c.l.b16 %v1357
        %v1366 = vunpack.c.l.b16 %v1358
        %v1367 = vunpack.c.l.b16 %v1359
        %v1368 = vpack.c.b16 %v1365, %v1364
        %v1369 = vpack.c.b16 %v1367, %v1366
        %v1373 = vsel %vm829, %v1355, 0
        %1375 = vmatprep.subr.bf16.mxu0 0
        %1376 = vmatpush1.bf16.msra.mxu0 %v1368
        %1377 = vmatprep.subr.bf16.mxu0 0
        %1378 = vmatpush1.bf16.msra.mxu0 %v1369
        %1379 = vmatprep.subr.bf16.mxu0 0
        %1380 = vmatpush1.bf16.msra.mxu0 0
        %1381 = vmatprep.subr.bf16.mxu0 0
        %1382 = vmatpush1.bf16.msra.mxu0 0
        %1383 = vmatprep.subr.bf16.mxu0 0
        %1384 = vmatpush1.bf16.msra.mxu0 0
        %1385 = vmatprep.subr.bf16.mxu0 0
        %1386 = vmatpush1.bf16.msra.mxu0 0
        %1387 = vmatprep.subr.bf16.mxu0 0
        %1388 = vmatpush1.bf16.msra.mxu0 0
        %1389 = vmatprep.subr.bf16.mxu0 0
        %1390 = vmatpush1.bf16.msra.mxu0 0
        %1391 = vmatprep.subr.bf16.mxu0 0
        %1392 = vmatpush1.bf16.msra.mxu0 0
        %1393 = vmatprep.subr.bf16.mxu0 0
        %1394 = vmatpush1.bf16.msra.mxu0 0
        %1395 = vmatprep.subr.bf16.mxu0 0
        %1396 = vmatpush1.bf16.msra.mxu0 0
        %1397 = vmatprep.subr.bf16.mxu0 0
        %1398 = vmatpush1.bf16.msra.mxu0 0
        %1399 = vmatprep.subr.bf16.mxu0 0
        %1400 = vmatpush1.bf16.msra.mxu0 0
        %1401 = vmatprep.subr.bf16.mxu0 0
        %1402 = vmatpush1.bf16.msra.mxu0 0
        %1403 = vmatprep.subr.bf16.mxu0 0
        %1404 = vmatpush1.bf16.msra.mxu0 0
        %1405 = vmatprep.subr.bf16.mxu0 0
        %1406 = vmatpush1.bf16.msra.mxu0 0
        %1407 = vmatprep.mubr.bf16.mxu0 0
        %1408 = vmatmul.mubr.bf16.gmra.mrb[0].mxu0 %v1373
        %v1409 = vpop.f32.mrb[0].mxu0
        %v1410 = vadd.f32 0.0, %v1409
        %v1411 = vpop.f32.mrb[0].mxu0
        %v1412 = vpop.f32.mrb[0].mxu0
        %v1413 = vpop.f32.mrb[0].mxu0
        %1414 = vdwg.mxu0
        %v1415 = vadd.f32 %v1354, %v1410
        %1416 = vst.msk [vmem:[#allocation8] sm:$0xff] %vm829, %v1415
        // Predicated region
        $region97: #{tpu_custom_call.1} parent=59 // pred_check
          %p1417 = pneg %p560
        $region98: #{tpu_custom_call.1} parent=59 // pred_check_branch
          %1419 = sbr.rel (%p1417) target = $region100
        $region99: #{tpu_custom_call.1} parent=59 // pred_region
          %v1420 = vld [vmem:[#allocation8] sm:$0xff]
          %1421 = vst.msk [vmem:[%s552] sm:$0xff] %vm829, %v1420
        $region100: #{tpu_custom_call.1} parent=59 // pred_fallthru
          _
        %s1422 = sand.u32 %s308, 1
        %s1423 = scalar_lea.sflag [#allocation11], %s1422
        %s1424 = sand.u32 %s308, 1
        %s1425 = smul.addr %s1424, 8
        %s1426 = scalar_lea.vmem [#allocation20], %s1425
        // Predicated region
        $region101: #{tpu_custom_call.1} parent=59 // pred_check
          %p1427 = pneg %p318
        $region102: #{tpu_custom_call.1} parent=59 // pred_check_branch
          %1429 = sbr.rel (%p1427) target = $region104
        $region103: #{tpu_custom_call.1} parent=59 // pred_region
          %s1431 = ssub.s32 128, 128
          %1432 = vsyncadd %s1423, %s1431
          %s1433 = sadd.s32 %s38, %s37
          %s1434 = smul.addr %s1433, 128
          %s1435 = scalar_lea.hbm %s10, %s1434
          %s1437 = sshll.u32 %s1426, 4
          %s1438 = int_to_ptr.vmem [resolvable:$true] %s1437
          %1440 = dma.vmem_to_hbm [thread:$0]  %s1438, 128, %s1435, %s1423
        $region104: #{tpu_custom_call.1} parent=59 // pred_fallthru
          _
      $region60: #{tpu_custom_call.1} parent=5 // pred_fallthru
        _
      %p1441 = scmp.le.s32.totalorder 2, %s27
      // Predicated region
      $region105: #{tpu_custom_call.1} parent=5 // pred_check
        %p1442 = pneg %p1441
      $region106: #{tpu_custom_call.1} parent=5 // pred_check_branch
        %1444 = sbr.rel (%p1442) target = $region108
      $region107: #{tpu_custom_call.1} parent=5 // pred_region
        %s1445 = ssub.s32 %s27, 2
        // Predicated region
        $region109: #{tpu_custom_call.1} parent=107 // pred_check
          %p1446 = pneg %p324
        $region110: #{tpu_custom_call.1} parent=107 // pred_check_branch
          %1448 = sbr.rel (%p1446) target = $region112
        $region111: #{tpu_custom_call.1} parent=107 // pred_region
          %s1449 = sand.u32 %s309, 1
          %s1450 = scalar_lea.sflag [#allocation11], %s1449
          %s1451 = sand.u32 %s309, 1
          %s1452 = smul.addr %s1451, 8
          %s1453 = scalar_lea.vmem [#allocation20], %s1452
          %1454 = dma.done %s1450, 128
        $region112: #{tpu_custom_call.1} parent=107 // pred_fallthru
          _
      $region108: #{tpu_custom_call.1} parent=5 // pred_fallthru
        _
    $region6: #{tpu_custom_call.1} parent=1 // loop_footer
      %s31 = sadd.s32 1, %s27
    $region7: #{tpu_custom_call.1} parent=1 // loop_footer_branch
      %26 = sbr.rel target = $region3
    $region8: #{tpu_custom_call.1} parent=1 // loop_exit
      _
    %1455 = vsyncpa [#allocation10], 1
    %s1456 = scalar_lea.sflag [#allocation10], 1
    %1457 = vsyncpa %s1456, 1
    %1458 = vsyncpa [#allocation13], 1
    %s1459 = scalar_lea.sflag [#allocation13], 1
    %1460 = vsyncpa %s1459, 1
    %1461 = vsyncpa [#allocation16], 1
    %1462 = vsyncpa [#allocation19], 1
    %1463 = vsyncpa [#allocation11], 1
    %s1464 = scalar_lea.sflag [#allocation11], 1
    %1465 = vsyncpa %s1464, 1

</llo_original>
